<compile_context>
chip_gen: v5e
topology: v5e:2x2
jax: 0.10.0
libtpu: 0.0.40
codegen_flags: <defaults>
</compile_context>

<pallas_src>
import jax
import jax.numpy as jnp
from jax.experimental import pallas as pl
from jax.experimental.pallas import tpu as pltpu

# ---- TabCT hyper-params (small, consistent with the module) ----------------
ATTN_FILTERS = 64      # self.attn_filters (C); query/key dim = C // 8 = 8
N_TAB        = 8       # hyp.n_tab
FC_DIM       = 32      # self.fc_dim
N_ATTN       = 2       # self.n_attn_layers
H = W = 16             # ct_cnn output is .view(-1, attn_filters, 16, 16)
N  = H * W             # 256 spatial tokens
B  = 2                 # batch
LANES = 128            # lane-padded slab width for the scalar head output


def _tpu_generation():
    """Best-effort chip-generation detection; falls back to safe defaults."""
    try:
        kind = jax.devices()[0].device_kind.lower()
    except Exception:
        return "unknown"
    if "v5 lite" in kind or "v5e" in kind or "v5litepod" in kind:
        return "v5e"
    if "v6" in kind:
        return "v6e"
    if "v7" in kind or "tpu7" in kind:
        return "v7x"
    return "unknown"


# =============================================================================
# Fused Pallas kernel: 2 x Self_Attn + avgpool + fc_inter + fc
# =============================================================================
def _make_tabct_kernel(bb, n, c, n_layers, tq, softmax_bf16):
    """bb = batch elements processed per grid step (1 on v7x, B on v5e/v6e)."""
    n_tiles = n // tq

    def kernel(x_ref, ws_ref, bs_ref, gamma_ref, tab_ref,
               w1at_ref, w1bt_ref, b1_ref, w2_ref, b2_ref, o_ref):
        x = x_ref[...]                                         # (C, bb*N) f32

        for l in range(n_layers):                              # unrolled L=2
            x16 = x.astype(jnp.bfloat16)                       # bf16 MXU operand
            # Fused [Mf^T ; Wv] projection: one lane-dense (2C, bb*N) matmul.
            y = jax.lax.dot_general(
                ws_ref[l], x16, (((1,), (0,)), ((), ())),
                preferred_element_type=jnp.float32) + bs_ref[l]    # (2C, bb*N) f32
            qmT = y[:c]                                        # (C, bb*N) f32
            v16 = y[c:].astype(jnp.bfloat16)                   # (C, bb*N) bf16
            gamma_l = gamma_ref[l]                             # scalar (SMEM)

            cols = []
            for b in range(bb):                                # per batch element
                x_b = x16[:, b * n:(b + 1) * n]                # (C, N) keys
                v_b = v16[:, b * n:(b + 1) * n]                # (C, N) values
                # one small XLU transpose per (layer, batch): (C,N) -> (N,C)
                q_b = jnp.transpose(qmT[:, b * n:(b + 1) * n]).astype(jnp.bfloat16)

                for t in range(n_tiles):                       # row-tiled softmax
                    qt = q_b[t * tq:(t + 1) * tq]              # (TQ, C) bf16
                    # energy[i,j] = x_i^T Mf x_j + (Wk^T bq) . x_j
                    e = jnp.dot(qt, x_b,
                                preferred_element_type=jnp.float32)   # (TQ, N) f32
                    m = jnp.max(e, axis=-1, keepdims=True)
                    d = e - m
                    p = jnp.exp(d.astype(jnp.bfloat16) if softmax_bf16 else d)
                    s = jnp.sum(p, axis=-1, keepdims=True).astype(jnp.float32)
                    # gamma folded into the normalization (EUP reciprocal).
                    scale = gamma_l * pl.reciprocal(s, approx=True)   # (TQ, 1)
                    attn16 = (p * scale.astype(p.dtype)).astype(jnp.bfloat16)
                    # out[c,i] = sum_j v[c,j] * attn[i,j]  (trans-B, no transpose)
                    out_t = jax.lax.dot_general(
                        v_b, attn16, (((1,), (1,)), ((), ())),
                        preferred_element_type=jnp.float32)           # (C, TQ) f32
                    lo = b * n + t * tq
                    cols.append(out_t + x[:, lo:lo + tq])      # residual (f32)
            x = jnp.concatenate(cols, axis=1)                  # (C, bb*N) f32

        # ---- head: avgpool -> concat(x_tab) -> fc_inter -> fc (off the MXU) ----
        for b in range(bb):
            pooled = jnp.mean(x[:, b * n:(b + 1) * n], axis=1, keepdims=True)  # (C,1)
            h = (jnp.sum(w1at_ref[...] * pooled, axis=0, keepdims=True)
                 + jnp.sum(w1bt_ref[...] * tab_ref[b], axis=0, keepdims=True)
                 + b1_ref[...])                                              # (1, fd)
            yv = jnp.sum(w2_ref[...] * h, axis=1, keepdims=True) + b2_ref[0]  # (1, 1)
            o_ref[b] = jnp.broadcast_to(yv, (1, LANES))        # lane-dense store

    return kernel


# =============================================================================
# Weight preparation — hoisted out of the forward path (once per param set)
# =============================================================================
def prepare_tabct_weights(params):
    c = params["attn"][0]["wv"].shape[0]
    w_stack, b_stack, gammas = [], [], []
    for lp in params["attn"]:
        mf_t = lp["wk"].T @ lp["wq"]                 # (C, C) == (Wq^T Wk)^T
        wkb_t = (lp["bq"] @ lp["wk"])[:, None]       # (C, 1) == Wk^T bq
        w_stack.append(jnp.concatenate([mf_t, lp["wv"]], axis=0))            # (2C, C)
        b_stack.append(jnp.concatenate([wkb_t, lp["bv"][:, None]], axis=0))  # (2C, 1)
        gammas.append(lp["gamma"])
    return {
        "w_stack": jnp.stack(w_stack).astype(jnp.bfloat16),    # (L, 2C, C) bf16 (MXU)
        "b_stack": jnp.stack(b_stack).astype(jnp.float32),     # (L, 2C, 1)
        "gamma":   jnp.concatenate(gammas).astype(jnp.float32),  # (L,)   -> SMEM
        "w1aT":    params["W1"][:, :c].T.astype(jnp.float32),  # (C, fd)
        "w1bT":    params["W1"][:, c:].T.astype(jnp.float32),  # (n_tab, fd)
        "b1_row":  params["b1"][None, :].astype(jnp.float32),  # (1, fd)
        "w2_row":  params["W2"].astype(jnp.float32),           # (1, fd)
        "b2":      params["b2"].astype(jnp.float32),           # (1,)   -> SMEM
    }


# =============================================================================
# Wrapper
# =============================================================================
def tabct_forward_pallas(ct_f_nchw, x_tab, prepped,
                         collapse_batch=None, softmax_bf16=None):
    gen = _tpu_generation()
    if collapse_batch is None:
        collapse_batch = gen in ("v5e", "v6e")     # single-TC: fold batch into lanes
    if softmax_bf16 is None:
        softmax_bf16 = gen in ("v6e", "v7x")       # bf16 EUP/VPU available

    b, c, hh, ww = ct_f_nchw.shape
    n = hh * ww
    nt = x_tab.shape[1]
    fd = prepped["w1aT"].shape[1]
    L = prepped["w_stack"].shape[0]

    # (C, B*N): channels on sublanes, all tokens on lanes (lane-dense everywhere).
    x_cbn = jnp.transpose(ct_f_nchw.reshape(b, c, n), (1, 0, 2)).reshape(c, b * n)
    tab_col = x_tab[:, :, None]                    # (B, n_tab, 1)

    bb = b if collapse_batch else 1
    grid = (b // bb,)
    tq = 128 if n % 128 == 0 else n

    kernel = _make_tabct_kernel(bb=bb, n=n, c=c, n_layers=L, tq=tq,
                                softmax_bf16=softmax_bf16)

    cost = pl.CostEstimate(
        flops=2 * L * b * ((2 * c) * c * n + 2 * c * n * n),
        transcendentals=L * b * n * n,
        bytes_accessed=int(c * b * n * 4 + L * 2 * c * c * 2 + L * 2 * c * 4
                           + (c * fd + nt * fd + 2 * fd) * 4
                           + b * nt * 4 + b * LANES * 4),
    )

    out = pl.pallas_call(
        kernel,
        out_shape=jax.ShapeDtypeStruct((b, 1, LANES), jnp.float32),
        grid=grid,
        in_specs=[
            pl.BlockSpec((c, bb * n),     lambda i: (0, i)),        # x (lane-dense)
            pl.BlockSpec((L, 2 * c, c),   lambda i: (0, 0, 0)),     # [Mf^T ; Wv] bf16
            pl.BlockSpec((L, 2 * c, 1),   lambda i: (0, 0, 0)),     # [Wk^T bq ; bv]
            pl.BlockSpec(memory_space=pltpu.MemorySpace.SMEM),      # gamma (L,)
            pl.BlockSpec((bb, nt, 1),     lambda i: (i, 0, 0)),     # x_tab columns
            pl.BlockSpec((c, fd),         lambda i: (0, 0)),        # W1[:, :C]^T
            pl.BlockSpec((nt, fd),        lambda i: (0, 0)),        # W1[:, C:]^T
            pl.BlockSpec((1, fd),         lambda i: (0, 0)),        # b1 row
            pl.BlockSpec((1, fd),         lambda i: (0, 0)),        # W2 row
            pl.BlockSpec(memory_space=pltpu.MemorySpace.SMEM),      # b2 (1,)
        ],
        out_specs=pl.BlockSpec((bb, 1, LANES), lambda i: (i, 0, 0)),
        compiler_params=pltpu.CompilerParams(
            dimension_semantics=("parallel",) if bb == 1 else ("arbitrary",)),
        cost_estimate=cost,
    )(x_cbn, prepped["w_stack"], prepped["b_stack"], prepped["gamma"], tab_col,
      prepped["w1aT"], prepped["w1bT"], prepped["b1_row"], prepped["w2_row"],
      prepped["b2"])
    return out[:, 0, :1]                            # (B, 1)


# =============================================================================
# Parameter init (deterministic, PyTorch-like uniform fan-in scaling)
# =============================================================================
def _uniform(key, shape, fan_in):
    bound = 1.0 / jnp.sqrt(jnp.float32(fan_in))
    return jax.random.uniform(key, shape, jnp.float32, -bound, bound)


def init_params(key):
    C, C8 = ATTN_FILTERS, ATTN_FILTERS // 8
    params = {"attn": []}
    for _ in range(N_ATTN):
        key, *ks = jax.random.split(key, 8)
        params["attn"].append({
            "wq": _uniform(ks[0], (C8, C), C), "bq": _uniform(ks[1], (C8,), C),
            "wk": _uniform(ks[2], (C8, C), C), "bk": _uniform(ks[3], (C8,), C),
            "wv": _uniform(ks[4], (C, C),  C), "bv": _uniform(ks[5], (C,),  C),
            # NOTE: module uses torch.rand(1) for gamma (not zeros).
            "gamma": jax.random.uniform(ks[6], (1,), jnp.float32),
        })
    key, k1, k2, k3, k4 = jax.random.split(key, 5)
    params["W1"] = _uniform(k1, (FC_DIM, ATTN_FILTERS + N_TAB), ATTN_FILTERS + N_TAB)
    params["b1"] = _uniform(k2, (FC_DIM,), ATTN_FILTERS + N_TAB)
    params["W2"] = _uniform(k3, (1, FC_DIM), FC_DIM)
    params["b2"] = _uniform(k4, (1,), FC_DIM)
    return params


# =============================================================================
# Pure-JAX reference (mirrors the PyTorch forward exactly)
# =============================================================================
def _ref_self_attn(x, wq, bq, wk, bk, wv, bv, gamma):
    b, c, hh, ww = x.shape
    n = hh * ww
    xf = x.reshape(b, c, n)
    q = jnp.einsum("oc,bcn->bon", wq, xf) + bq[None, :, None]
    k = jnp.einsum("oc,bcn->bon", wk, xf) + bk[None, :, None]
    v = jnp.einsum("oc,bcn->bon", wv, xf) + bv[None, :, None]
    energy = jnp.einsum("bnc,bcm->bnm", jnp.transpose(q, (0, 2, 1)), k)
    attn = jax.nn.softmax(energy, axis=-1)
    out = jnp.einsum("bcn,bmn->bcm", v, attn).reshape(b, c, hh, ww)
    return gamma[0] * out + x


def tabct_forward_ref(ct_f_nchw, x_tab, params):
    x = ct_f_nchw
    for lp in params["attn"]:
        x = _ref_self_attn(x, lp["wq"], lp["bq"], lp["wk"], lp["bk"],
                           lp["wv"], lp["bv"], lp["gamma"])
    pooled = jnp.mean(x, axis=(2, 3))
    xx = jnp.concatenate([pooled, x_tab], axis=-1)
    hdn = xx @ params["W1"].T + params["b1"]
    return hdn @ params["W2"].T + params["b2"]


# =============================================================================
if __name__ == "__main__":
    key = jax.random.PRNGKey(0)
    k_feat, k_tab, k_par = jax.random.split(key, 3)

    # ct_f: backbone output feature map (NCHW), x_tab: tabular features.
    ct_f = jax.random.normal(k_feat, (B, ATTN_FILTERS, H, W), jnp.float32)
    x_tab = jax.random.normal(k_tab, (B, N_TAB), jnp.float32)
    params = init_params(k_par)

    # Weight prep hoisted out of the forward path (once per parameter set).
    prepped = prepare_tabct_weights(params)
    fwd = jax.jit(lambda ct, tab: tabct_forward_pallas(ct, tab, prepped))

    out = jax.block_until_ready(fwd(ct_f, x_tab))

    ref = tabct_forward_ref(ct_f, x_tab, params)
    assert out.shape == (B, 1), out.shape
    assert jnp.allclose(out, ref, atol=1e-3, rtol=1e-3), (out, ref)

    print("KERNEL_OK")
</pallas_src>

<mosaic_0001>
module attributes {stable_mosaic.version = 11 : i64} {
  func.func @kernel(%arg0: i32, %arg1: memref<64x256xf32, #tpu.memory_space<vmem>>, %arg2: memref<2x128x64xbf16, #tpu.memory_space<vmem>>, %arg3: memref<2x128x1xf32, #tpu.memory_space<vmem>>, %arg4: memref<2xf32, #tpu.memory_space<smem>>, %arg5: memref<1x8x1xf32, #tpu.memory_space<vmem>>, %arg6: memref<64x32xf32, #tpu.memory_space<vmem>>, %arg7: memref<8x32xf32, #tpu.memory_space<vmem>>, %arg8: memref<1x32xf32, #tpu.memory_space<vmem>>, %arg9: memref<1x32xf32, #tpu.memory_space<vmem>>, %arg10: memref<1xf32, #tpu.memory_space<smem>>, %arg11: memref<1x1x128xf32, #tpu.memory_space<vmem>>) attributes {dimension_semantics = [#tpu.dimension_semantics<parallel>], iteration_bounds = array<i64: 2>, scalar_prefetch = 0 : i64, scratch_operands = 0 : i64, tpu.core_type = #tpu.core_type<tc>, window_params = [{transform_indices = @transform_0, window_bounds = array<i64: 64, 256>}, {pipeline_mode = #tpu.pipeline_mode<synchronous>, transform_indices = @transform_1, window_bounds = array<i64: 2, 128, 64>}, {pipeline_mode = #tpu.pipeline_mode<synchronous>, transform_indices = @transform_2, window_bounds = array<i64: 2, 128, 1>}, {transform_indices = @transform_3, window_bounds = array<i64: 2>}, {transform_indices = @transform_4, window_bounds = array<i64: 1, 8, 1>}, {pipeline_mode = #tpu.pipeline_mode<synchronous>, transform_indices = @transform_5, window_bounds = array<i64: 64, 32>}, {pipeline_mode = #tpu.pipeline_mode<synchronous>, transform_indices = @transform_6, window_bounds = array<i64: 8, 32>}, {pipeline_mode = #tpu.pipeline_mode<synchronous>, transform_indices = @transform_7, window_bounds = array<i64: 1, 32>}, {pipeline_mode = #tpu.pipeline_mode<synchronous>, transform_indices = @transform_8, window_bounds = array<i64: 1, 32>}, {transform_indices = @transform_9, window_bounds = array<i64: 1>}, {transform_indices = @transform_10, window_bounds = array<i64: 1, 1, 128>}]} {
    %c0 = arith.constant 0 : index
    %c0_0 = arith.constant 0 : index
    %0 = vector.load %arg1[%c0, %c0_0] : memref<64x256xf32, #tpu.memory_space<vmem>>, vector<64x256xf32>
    %1 = arith.truncf %0 : vector<64x256xf32> to vector<64x256xbf16>
    %c0_1 = arith.constant 0 : index
    %c0_2 = arith.constant 0 : index
    %c0_3 = arith.constant 0 : index
    %2 = vector.load %arg2[%c0_1, %c0_2, %c0_3] : memref<2x128x64xbf16, #tpu.memory_space<vmem>>, vector<1x128x64xbf16>
    %3 = vector.shape_cast %2 : vector<1x128x64xbf16> to vector<128x64xbf16>
    %cst = arith.constant dense<0.000000e+00> : vector<128x256xf32>
    %4 = tpu.matmul %3, %1, %cst {dimension_numbers = #tpu.dot_dimension_numbers<[1], [0], [0], [1], [0, 0, 1, 1], [], []>} : vector<128x64xbf16>, vector<64x256xbf16>, vector<128x256xf32> -> vector<128x256xf32>
    %c0_4 = arith.constant 0 : index
    %c0_5 = arith.constant 0 : index
    %c0_6 = arith.constant 0 : index
    %5 = vector.load %arg3[%c0_4, %c0_5, %c0_6] : memref<2x128x1xf32, #tpu.memory_space<vmem>>, vector<1x128x1xf32>
    %6 = vector.shape_cast %5 : vector<1x128x1xf32> to vector<128x1xf32>
    %7 = vector.broadcast %6 : vector<128x1xf32> to vector<128x256xf32>
    %8 = arith.addf %4, %7 : vector<128x256xf32>
    %9 = vector.extract_strided_slice %8 {offsets = [0, 0], sizes = [64, 256], strides = [1, 1]} : vector<128x256xf32> to vector<64x256xf32>
    %10 = vector.extract_strided_slice %8 {offsets = [64, 0], sizes = [64, 256], strides = [1, 1]} : vector<128x256xf32> to vector<64x256xf32>
    %11 = arith.truncf %10 : vector<64x256xf32> to vector<64x256xbf16>
    %c0_7 = arith.constant 0 : index
    %12 = memref.load %arg4[%c0_7] : memref<2xf32, #tpu.memory_space<smem>>
    %13 = tpu.transpose %9, [1, 0] : vector<64x256xf32> -> vector<256x64xf32>
    %14 = arith.truncf %13 : vector<256x64xf32> to vector<256x64xbf16>
    %15 = vector.extract_strided_slice %14 {offsets = [0, 0], sizes = [128, 64], strides = [1, 1]} : vector<256x64xbf16> to vector<128x64xbf16>
    %cst_8 = arith.constant dense<0.000000e+00> : vector<128x256xf32>
    %16 = tpu.matmul %15, %1, %cst_8 {dimension_numbers = #tpu.dot_dimension_numbers<[1], [0], [0], [1], [0, 0, 1, 1], [], []>} : vector<128x64xbf16>, vector<64x256xbf16>, vector<128x256xf32> -> vector<128x256xf32>
    %cst_9 = arith.constant dense<0xFF800000> : vector<128xf32>
    %17 = vector.multi_reduction <maximumf>, %16, %cst_9 [1] : vector<128x256xf32> to vector<128xf32>
    %18 = vector.shape_cast %17 : vector<128xf32> to vector<128x1xf32>
    %19 = vector.broadcast %18 : vector<128x1xf32> to vector<128x256xf32>
    %20 = arith.subf %16, %19 : vector<128x256xf32>
    %21 = math.exp %20 : vector<128x256xf32>
    %cst_10 = arith.constant dense<0.000000e+00> : vector<128xf32>
    %22 = vector.multi_reduction <add>, %21, %cst_10 [1] : vector<128x256xf32> to vector<128xf32>
    %23 = vector.shape_cast %22 : vector<128xf32> to vector<128x1xf32>
    %24 = tpu.reciprocal %23 {approx = true} : vector<128x1xf32> -> vector<128x1xf32>
    %25 = vector.broadcast %12 : f32 to vector<128x1xf32>
    %26 = arith.mulf %25, %24 : vector<128x1xf32>
    %27 = vector.broadcast %26 : vector<128x1xf32> to vector<128x256xf32>
    %28 = arith.mulf %21, %27 : vector<128x256xf32>
    %29 = arith.truncf %28 : vector<128x256xf32> to vector<128x256xbf16>
    %cst_11 = arith.constant dense<0.000000e+00> : vector<64x128xf32>
    %30 = tpu.matmul %11, %29, %cst_11 {dimension_numbers = #tpu.dot_dimension_numbers<[1], [1], [0], [0], [0, 0, 1, 0], [], []>} : vector<64x256xbf16>, vector<128x256xbf16>, vector<64x128xf32> -> vector<64x128xf32>
    %31 = vector.extract_strided_slice %0 {offsets = [0, 0], sizes = [64, 128], strides = [1, 1]} : vector<64x256xf32> to vector<64x128xf32>
    %32 = arith.addf %30, %31 : vector<64x128xf32>
    %33 = vector.extract_strided_slice %14 {offsets = [128, 0], sizes = [128, 64], strides = [1, 1]} : vector<256x64xbf16> to vector<128x64xbf16>
    %cst_12 = arith.constant dense<0.000000e+00> : vector<128x256xf32>
    %34 = tpu.matmul %33, %1, %cst_12 {dimension_numbers = #tpu.dot_dimension_numbers<[1], [0], [0], [1], [0, 0, 1, 1], [], []>} : vector<128x64xbf16>, vector<64x256xbf16>, vector<128x256xf32> -> vector<128x256xf32>
    %cst_13 = arith.constant dense<0xFF800000> : vector<128xf32>
    %35 = vector.multi_reduction <maximumf>, %34, %cst_13 [1] : vector<128x256xf32> to vector<128xf32>
    %36 = vector.shape_cast %35 : vector<128xf32> to vector<128x1xf32>
    %37 = vector.broadcast %36 : vector<128x1xf32> to vector<128x256xf32>
    %38 = arith.subf %34, %37 : vector<128x256xf32>
    %39 = math.exp %38 : vector<128x256xf32>
    %cst_14 = arith.constant dense<0.000000e+00> : vector<128xf32>
    %40 = vector.multi_reduction <add>, %39, %cst_14 [1] : vector<128x256xf32> to vector<128xf32>
    %41 = vector.shape_cast %40 : vector<128xf32> to vector<128x1xf32>
    %42 = tpu.reciprocal %41 {approx = true} : vector<128x1xf32> -> vector<128x1xf32>
    %43 = vector.broadcast %12 : f32 to vector<128x1xf32>
    %44 = arith.mulf %43, %42 : vector<128x1xf32>
    %45 = vector.broadcast %44 : vector<128x1xf32> to vector<128x256xf32>
    %46 = arith.mulf %39, %45 : vector<128x256xf32>
    %47 = arith.truncf %46 : vector<128x256xf32> to vector<128x256xbf16>
    %cst_15 = arith.constant dense<0.000000e+00> : vector<64x128xf32>
    %48 = tpu.matmul %11, %47, %cst_15 {dimension_numbers = #tpu.dot_dimension_numbers<[1], [1], [0], [0], [0, 0, 1, 0], [], []>} : vector<64x256xbf16>, vector<128x256xbf16>, vector<64x128xf32> -> vector<64x128xf32>
    %49 = vector.extract_strided_slice %0 {offsets = [0, 128], sizes = [64, 128], strides = [1, 1]} : vector<64x256xf32> to vector<64x128xf32>
    %50 = arith.addf %48, %49 : vector<64x128xf32>
    %51 = tpu.concatenate %32, %50 in 1 : vector<64x128xf32>, vector<64x128xf32> -> vector<64x256xf32>
    %52 = arith.truncf %51 : vector<64x256xf32> to vector<64x256xbf16>
    %c1 = arith.constant 1 : index
    %c0_16 = arith.constant 0 : index
    %c0_17 = arith.constant 0 : index
    %53 = vector.load %arg2[%c1, %c0_16, %c0_17] : memref<2x128x64xbf16, #tpu.memory_space<vmem>>, vector<1x128x64xbf16>
    %54 = vector.shape_cast %53 : vector<1x128x64xbf16> to vector<128x64xbf16>
    %cst_18 = arith.constant dense<0.000000e+00> : vector<128x256xf32>
    %55 = tpu.matmul %54, %52, %cst_18 {dimension_numbers = #tpu.dot_dimension_numbers<[1], [0], [0], [1], [0, 0, 1, 1], [], []>} : vector<128x64xbf16>, vector<64x256xbf16>, vector<128x256xf32> -> vector<128x256xf32>
    %c1_19 = arith.constant 1 : index
    %c0_20 = arith.constant 0 : index
    %c0_21 = arith.constant 0 : index
    %56 = vector.load %arg3[%c1_19, %c0_20, %c0_21] : memref<2x128x1xf32, #tpu.memory_space<vmem>>, vector<1x128x1xf32>
    %57 = vector.shape_cast %56 : vector<1x128x1xf32> to vector<128x1xf32>
    %58 = vector.broadcast %57 : vector<128x1xf32> to vector<128x256xf32>
    %59 = arith.addf %55, %58 : vector<128x256xf32>
    %60 = vector.extract_strided_slice %59 {offsets = [0, 0], sizes = [64, 256], strides = [1, 1]} : vector<128x256xf32> to vector<64x256xf32>
    %61 = vector.extract_strided_slice %59 {offsets = [64, 0], sizes = [64, 256], strides = [1, 1]} : vector<128x256xf32> to vector<64x256xf32>
    %62 = arith.truncf %61 : vector<64x256xf32> to vector<64x256xbf16>
    %c1_22 = arith.constant 1 : index
    %63 = memref.load %arg4[%c1_22] : memref<2xf32, #tpu.memory_space<smem>>
    %64 = tpu.transpose %60, [1, 0] : vector<64x256xf32> -> vector<256x64xf32>
    %65 = arith.truncf %64 : vector<256x64xf32> to vector<256x64xbf16>
    %66 = vector.extract_strided_slice %65 {offsets = [0, 0], sizes = [128, 64], strides = [1, 1]} : vector<256x64xbf16> to vector<128x64xbf16>
    %cst_23 = arith.constant dense<0.000000e+00> : vector<128x256xf32>
    %67 = tpu.matmul %66, %52, %cst_23 {dimension_numbers = #tpu.dot_dimension_numbers<[1], [0], [0], [1], [0, 0, 1, 1], [], []>} : vector<128x64xbf16>, vector<64x256xbf16>, vector<128x256xf32> -> vector<128x256xf32>
    %cst_24 = arith.constant dense<0xFF800000> : vector<128xf32>
    %68 = vector.multi_reduction <maximumf>, %67, %cst_24 [1] : vector<128x256xf32> to vector<128xf32>
    %69 = vector.shape_cast %68 : vector<128xf32> to vector<128x1xf32>
    %70 = vector.broadcast %69 : vector<128x1xf32> to vector<128x256xf32>
    %71 = arith.subf %67, %70 : vector<128x256xf32>
    %72 = math.exp %71 : vector<128x256xf32>
    %cst_25 = arith.constant dense<0.000000e+00> : vector<128xf32>
    %73 = vector.multi_reduction <add>, %72, %cst_25 [1] : vector<128x256xf32> to vector<128xf32>
    %74 = vector.shape_cast %73 : vector<128xf32> to vector<128x1xf32>
    %75 = tpu.reciprocal %74 {approx = true} : vector<128x1xf32> -> vector<128x1xf32>
    %76 = vector.broadcast %63 : f32 to vector<128x1xf32>
    %77 = arith.mulf %76, %75 : vector<128x1xf32>
    %78 = vector.broadcast %77 : vector<128x1xf32> to vector<128x256xf32>
    %79 = arith.mulf %72, %78 : vector<128x256xf32>
    %80 = arith.truncf %79 : vector<128x256xf32> to vector<128x256xbf16>
    %cst_26 = arith.constant dense<0.000000e+00> : vector<64x128xf32>
    %81 = tpu.matmul %62, %80, %cst_26 {dimension_numbers = #tpu.dot_dimension_numbers<[1], [1], [0], [0], [0, 0, 1, 0], [], []>} : vector<64x256xbf16>, vector<128x256xbf16>, vector<64x128xf32> -> vector<64x128xf32>
    %82 = vector.extract_strided_slice %51 {offsets = [0, 0], sizes = [64, 128], strides = [1, 1]} : vector<64x256xf32> to vector<64x128xf32>
    %83 = arith.addf %81, %82 : vector<64x128xf32>
    %84 = vector.extract_strided_slice %65 {offsets = [128, 0], sizes = [128, 64], strides = [1, 1]} : vector<256x64xbf16> to vector<128x64xbf16>
    %cst_27 = arith.constant dense<0.000000e+00> : vector<128x256xf32>
    %85 = tpu.matmul %84, %52, %cst_27 {dimension_numbers = #tpu.dot_dimension_numbers<[1], [0], [0], [1], [0, 0, 1, 1], [], []>} : vector<128x64xbf16>, vector<64x256xbf16>, vector<128x256xf32> -> vector<128x256xf32>
    %cst_28 = arith.constant dense<0xFF800000> : vector<128xf32>
    %86 = vector.multi_reduction <maximumf>, %85, %cst_28 [1] : vector<128x256xf32> to vector<128xf32>
    %87 = vector.shape_cast %86 : vector<128xf32> to vector<128x1xf32>
    %88 = vector.broadcast %87 : vector<128x1xf32> to vector<128x256xf32>
    %89 = arith.subf %85, %88 : vector<128x256xf32>
    %90 = math.exp %89 : vector<128x256xf32>
    %cst_29 = arith.constant dense<0.000000e+00> : vector<128xf32>
    %91 = vector.multi_reduction <add>, %90, %cst_29 [1] : vector<128x256xf32> to vector<128xf32>
    %92 = vector.shape_cast %91 : vector<128xf32> to vector<128x1xf32>
    %93 = tpu.reciprocal %92 {approx = true} : vector<128x1xf32> -> vector<128x1xf32>
    %94 = vector.broadcast %63 : f32 to vector<128x1xf32>
    %95 = arith.mulf %94, %93 : vector<128x1xf32>
    %96 = vector.broadcast %95 : vector<128x1xf32> to vector<128x256xf32>
    %97 = arith.mulf %90, %96 : vector<128x256xf32>
    %98 = arith.truncf %97 : vector<128x256xf32> to vector<128x256xbf16>
    %cst_30 = arith.constant dense<0.000000e+00> : vector<64x128xf32>
    %99 = tpu.matmul %62, %98, %cst_30 {dimension_numbers = #tpu.dot_dimension_numbers<[1], [1], [0], [0], [0, 0, 1, 0], [], []>} : vector<64x256xbf16>, vector<128x256xbf16>, vector<64x128xf32> -> vector<64x128xf32>
    %100 = vector.extract_strided_slice %51 {offsets = [0, 128], sizes = [64, 128], strides = [1, 1]} : vector<64x256xf32> to vector<64x128xf32>
    %101 = arith.addf %99, %100 : vector<64x128xf32>
    %102 = tpu.concatenate %83, %101 in 1 : vector<64x128xf32>, vector<64x128xf32> -> vector<64x256xf32>
    %cst_31 = arith.constant dense<0.000000e+00> : vector<64xf32>
    %103 = vector.multi_reduction <add>, %102, %cst_31 [1] : vector<64x256xf32> to vector<64xf32>
    %104 = vector.shape_cast %103 : vector<64xf32> to vector<64x1xf32>
    %cst_32 = arith.constant 2.560000e+02 : f32
    %105 = vector.broadcast %cst_32 : f32 to vector<64x1xf32>
    %106 = arith.divf %104, %105 : vector<64x1xf32>
    %c0_33 = arith.constant 0 : index
    %c0_34 = arith.constant 0 : index
    %107 = vector.load %arg6[%c0_33, %c0_34] : memref<64x32xf32, #tpu.memory_space<vmem>>, vector<64x32xf32>
    %108 = vector.broadcast %106 : vector<64x1xf32> to vector<64x32xf32>
    %109 = arith.mulf %107, %108 : vector<64x32xf32>
    %cst_35 = arith.constant dense<0.000000e+00> : vector<32xf32>
    %110 = vector.multi_reduction <add>, %109, %cst_35 [0] : vector<64x32xf32> to vector<32xf32>
    %111 = vector.shape_cast %110 : vector<32xf32> to vector<1x32xf32>
    %c0_36 = arith.constant 0 : index
    %c0_37 = arith.constant 0 : index
    %112 = vector.load %arg7[%c0_36, %c0_37] : memref<8x32xf32, #tpu.memory_space<vmem>>, vector<8x32xf32>
    %c0_38 = arith.constant 0 : index
    %c0_39 = arith.constant 0 : index
    %c0_40 = arith.constant 0 : index
    %113 = vector.load %arg5[%c0_38, %c0_39, %c0_40] : memref<1x8x1xf32, #tpu.memory_space<vmem>>, vector<1x8x1xf32>
    %114 = vector.shape_cast %113 : vector<1x8x1xf32> to vector<8x1xf32>
    %115 = vector.broadcast %114 : vector<8x1xf32> to vector<8x32xf32>
    %116 = arith.mulf %112, %115 : vector<8x32xf32>
    %cst_41 = arith.constant dense<0.000000e+00> : vector<32xf32>
    %117 = vector.multi_reduction <add>, %116, %cst_41 [0] : vector<8x32xf32> to vector<32xf32>
    %118 = vector.shape_cast %117 : vector<32xf32> to vector<1x32xf32>
    %119 = arith.addf %111, %118 : vector<1x32xf32>
    %c0_42 = arith.constant 0 : index
    %c0_43 = arith.constant 0 : index
    %120 = vector.load %arg8[%c0_42, %c0_43] : memref<1x32xf32, #tpu.memory_space<vmem>>, vector<1x32xf32>
    %121 = arith.addf %119, %120 : vector<1x32xf32>
    %c0_44 = arith.constant 0 : index
    %c0_45 = arith.constant 0 : index
    %122 = vector.load %arg9[%c0_44, %c0_45] : memref<1x32xf32, #tpu.memory_space<vmem>>, vector<1x32xf32>
    %123 = arith.mulf %122, %121 : vector<1x32xf32>
    %cst_46 = arith.constant dense<0.000000e+00> : vector<1xf32>
    %124 = vector.multi_reduction <add>, %123, %cst_46 [1] : vector<1x32xf32> to vector<1xf32>
    %125 = vector.shape_cast %124 : vector<1xf32> to vector<1x1xf32>
    %c0_47 = arith.constant 0 : index
    %126 = memref.load %arg10[%c0_47] : memref<1xf32, #tpu.memory_space<smem>>
    %127 = vector.broadcast %126 : f32 to vector<1x1xf32>
    %128 = arith.addf %125, %127 : vector<1x1xf32>
    %129 = vector.shape_cast %128 : vector<1x1xf32> to vector<1x1xf32>
    %130 = vector.broadcast %129 : vector<1x1xf32> to vector<1x128xf32>
    %c0_48 = arith.constant 0 : index
    %c0_49 = arith.constant 0 : index
    %c0_50 = arith.constant 0 : index
    %131 = vector.load %arg11[%c0_48, %c0_49, %c0_50] : memref<1x1x128xf32, #tpu.memory_space<vmem>>, vector<1x1x128xf32>
    %132 = vector.shape_cast %131 : vector<1x1x128xf32> to vector<1x128xf32>
    %133 = vector.shape_cast %130 : vector<1x128xf32> to vector<1x1x128xf32>
    tpu.vector_store %arg11[%c0_48, %c0_49, %c0_50], %133 {strides = array<i32>} : memref<1x1x128xf32, #tpu.memory_space<vmem>>, vector<1x1x128xf32>,
    return
  }
  func.func @transform_0(%arg0: i32) -> (i32, i32) {
    %c0_i32 = arith.constant 0 : i32
    %c0_i32_0 = arith.constant 0 : i32
    return %c0_i32, %arg0 : i32, i32
  }
  func.func @transform_1(%arg0: i32) -> (i32, i32, i32) {
    %c0_i32 = arith.constant 0 : i32
    %c0_i32_0 = arith.constant 0 : i32
    %c0_i32_1 = arith.constant 0 : i32
    %c0_i32_2 = arith.constant 0 : i32
    return %c0_i32, %c0_i32_0, %c0_i32_1 : i32, i32, i32
  }
  func.func @transform_2(%arg0: i32) -> (i32, i32, i32) {
    %c0_i32 = arith.constant 0 : i32
    %c0_i32_0 = arith.constant 0 : i32
    %c0_i32_1 = arith.constant 0 : i32
    %c0_i32_2 = arith.constant 0 : i32
    return %c0_i32, %c0_i32_0, %c0_i32_1 : i32, i32, i32
  }
  func.func @transform_3(%arg0: i32) -> i32 {
    %c0_i32 = arith.constant 0 : i32
    %c0_i32_0 = arith.constant 0 : i32
    return %c0_i32 : i32
  }
  func.func @transform_4(%arg0: i32) -> (i32, i32, i32) {
    %c0_i32 = arith.constant 0 : i32
    %c0_i32_0 = arith.constant 0 : i32
    %c0_i32_1 = arith.constant 0 : i32
    return %arg0, %c0_i32, %c0_i32_0 : i32, i32, i32
  }
  func.func @transform_5(%arg0: i32) -> (i32, i32) {
    %c0_i32 = arith.constant 0 : i32
    %c0_i32_0 = arith.constant 0 : i32
    %c0_i32_1 = arith.constant 0 : i32
    return %c0_i32, %c0_i32_0 : i32, i32
  }
  func.func @transform_6(%arg0: i32) -> (i32, i32) {
    %c0_i32 = arith.constant 0 : i32
    %c0_i32_0 = arith.constant 0 : i32
    %c0_i32_1 = arith.constant 0 : i32
    return %c0_i32, %c0_i32_0 : i32, i32
  }
  func.func @transform_7(%arg0: i32) -> (i32, i32) {
    %c0_i32 = arith.constant 0 : i32
    %c0_i32_0 = arith.constant 0 : i32
    %c0_i32_1 = arith.constant 0 : i32
    return %c0_i32, %c0_i32_0 : i32, i32
  }
  func.func @transform_8(%arg0: i32) -> (i32, i32) {
    %c0_i32 = arith.constant 0 : i32
    %c0_i32_0 = arith.constant 0 : i32
    %c0_i32_1 = arith.constant 0 : i32
    return %c0_i32, %c0_i32_0 : i32, i32
  }
  func.func @transform_9(%arg0: i32) -> i32 {
    %c0_i32 = arith.constant 0 : i32
    %c0_i32_0 = arith.constant 0 : i32
    return %c0_i32 : i32
  }
  func.func @transform_10(%arg0: i32) -> (i32, i32, i32) {
    %c0_i32 = arith.constant 0 : i32
    %c0_i32_0 = arith.constant 0 : i32
    %c0_i32_1 = arith.constant 0 : i32
    return %arg0, %c0_i32, %c0_i32_0 : i32, i32, i32
  }
}

</mosaic_0001>

<llo_original>
// kernel: _lambda_.1
$region0: #{_lambda_.1}
  #allocation0 [shape = 'u32[]', space=smem, size = 0x4, offset = 0x4, fixed_abs, tag = 'smem constant byte address 0x4 - core index']
  #allocation1 [shape = 'u32[72,128]{1,0:T(1,128)}', space=vmem, size = 0x9000, scoped, tag = 'internal scratch']
  #allocation2 [shape = 'f32[1]{0:T(128)S(6)}', space=smem, size = 0x200, scoped, tag = 'scoped memory for _lambda_.1']
  %s0 = inlined_call_operand.vmem [shape: f32[64,512], index: 0, kind: input, shape index: {}]
  %s1 = inlined_call_operand.vmem [shape: bf16[2,128,64], index: 1, kind: input, shape index: {}]
  %s2 = inlined_call_operand.vmem [shape: f32[2,128,1], index: 2, kind: input, shape index: {}]
  %s3 = inlined_call_operand.vmem [shape: f32[2], index: 3, kind: input, shape index: {}]
  %s4 = inlined_call_operand.vmem [shape: f32[2,8,1], index: 4, kind: input, shape index: {}]
  %s5 = inlined_call_operand.vmem [shape: f32[64,32], index: 5, kind: input, shape index: {}]
  %s6 = inlined_call_operand.vmem [shape: f32[8,32], index: 6, kind: input, shape index: {}]
  %s7 = inlined_call_operand.vmem [shape: f32[1,32], index: 7, kind: input, shape index: {}]
  %s8 = inlined_call_operand.vmem [shape: f32[1,32], index: 8, kind: input, shape index: {}]
  %s9 = inlined_call_operand.<no memory space> [shape: f32[1], index: 9, kind: input, shape index: {}]
  %s10 = inlined_call_operand.vmem [shape: f32[2,1,128], index: 10, kind: output, shape index: {}]
  %s11 = sld [smem:[#allocation0]]
  $region100: #{_lambda_.1} parent=0
    _
  %s13 = ssub.s32 1, %s11
  %s14 = scalar_select 0, %s13, %s11
  %15 = sst [smem:[#allocation2]] %s9
  $region1: #{_lambda_.1} parent=0
    #allocation3 [shape = 'u8[131072]{0}', space=vmem, size = 0x20000, scoped, tag = 'input window, operand 0']
    #allocation4 [shape = 'u8[512]{0}', space=smem, size = 0x200, scoped, tag = 'input window, operand 3, single buffered']
    #allocation5 [shape = 's32[2]{0}', space=sflag, size = 0x8, scoped, tag = 'scoped memory for _lambda_.1']
    %16 = vsyncpa [#allocation5], 0
    loop: start=0, step=1, limit=4
    $region2: #{_lambda_.1} parent=1 // loop_pre_header
      _
    $region3: #{_lambda_.1} parent=1 // loop_header
      %s18 = sphi 0, %s22
      %p19 = scmp.ge.s32.totalorder %s18, 4
      %s28 = sphi 0, %s30
      %s31 = sphi 0, %s28
      %s32 = sphi 0, %s31
      %s48 = sphi 0, %s32
      %s52 = sphi 0, %s52
      %s54 = sphi 0, %s52
      %s55 = sphi 0, %s54
      %s69 = sphi 0, %s55
      %s73 = sphi 0, %s73
      %s75 = sphi 0, %s73
      %s76 = sphi 0, %s75
      %s90 = sphi 0, %s76
      %s94 = sphi 0, %s94
      %s96 = sphi 0, %s94
      %s97 = sphi 0, %s96
      %s111 = sphi 0, %s97
      %s117 = sphi 0, %s119
      %s120 = sphi 0, %s117
      %s121 = sphi 0, %s120
      %s137 = sphi 0, %s121
      %s141 = sphi 0, %s141
      %s143 = sphi 0, %s141
      %s144 = sphi 0, %s143
      %s158 = sphi 0, %s144
      %s162 = sphi 0, %s162
      %s164 = sphi 0, %s162
      %s165 = sphi 0, %s164
      %s179 = sphi 0, %s165
      %s183 = sphi 0, %s183
      %s185 = sphi 0, %s183
      %s186 = sphi 0, %s185
      %s200 = sphi 0, %s186
      %s204 = sphi 0, %s204
      %s206 = sphi 0, %s204
      %s207 = sphi 0, %s206
      %s221 = sphi 0, %s207
      %s225 = sphi 0, %s225
      %s227 = sphi 0, %s225
      %s228 = sphi 0, %s227
      %s242 = sphi 0, %s228
      %s248 = sphi 0, %s250
      %s251 = sphi 0, %s248
      %s252 = sphi 0, %s251
      %s268 = sphi 0, %s252
    $region4: #{_lambda_.1} parent=1 // loop_header_branch
      %21 = sbr.rel (%p19) target = $region8
    $region5: #{_lambda_.1} parent=1 // loop_body
      %s23 = ssub.s32 %s18, 1
      %s24 = ssub.s32 %s18, 2
      %s25 = sadd.s32 %s18, 1
      %s26 = ssub.s32 %s18, %s25
      %p27 = scmp.eq.s32.totalorder %s26, 0
      %s29 = sadd.s32 %s28, 1
      %s30 = scalar_select %p27, %s28, %s29
      %p33 = pneg %p27
      %p34 = scmp.eq.s32.totalorder %s18, 1
      %p35 = por %p33, %p34
      %p36 = scmp.ne.s32.totalorder %s28, %s31
      %p37 = scmp.eq.s32.totalorder %s18, 0
      %p38 = por %p36, %p37
      %p39 = scmp.ne.s32.totalorder %s28, %s31
      %p40 = scmp.eq.s32.totalorder %s23, 1
      %p41 = por %p39, %p40
      %p42 = scmp.ne.s32.totalorder %s31, %s32
      %p43 = scmp.eq.s32.totalorder %s23, 0
      %p44 = por %p42, %p43
      %p45 = scmp.ne.s32.totalorder %s31, %s32
      %p46 = scmp.eq.s32.totalorder %s24, 1
      %p47 = por %p45, %p46
      %p49 = scmp.ne.s32.totalorder %s32, %s48
      %p50 = scmp.eq.s32.totalorder %s24, 0
      %p51 = por %p49, %p50
      %s53 = sadd.s32 %s52, 1
      %p56 = scmp.eq.s32.totalorder %s18, 1
      %p57 = scmp.ne.s32.totalorder %s52, %s54
      %p58 = scmp.eq.s32.totalorder %s18, 0
      %p59 = por %p57, %p58
      %p60 = scmp.ne.s32.totalorder %s52, %s54
      %p61 = scmp.eq.s32.totalorder %s23, 1
      %p62 = por %p60, %p61
      %p63 = scmp.ne.s32.totalorder %s54, %s55
      %p64 = scmp.eq.s32.totalorder %s23, 0
      %p65 = por %p63, %p64
      %p66 = scmp.ne.s32.totalorder %s54, %s55
      %p67 = scmp.eq.s32.totalorder %s24, 1
      %p68 = por %p66, %p67
      %p70 = scmp.ne.s32.totalorder %s55, %s69
      %p71 = scmp.eq.s32.totalorder %s24, 0
      %p72 = por %p70, %p71
      %s74 = sadd.s32 %s73, 1
      %p77 = scmp.eq.s32.totalorder %s18, 1
      %p78 = scmp.ne.s32.totalorder %s73, %s75
      %p79 = scmp.eq.s32.totalorder %s18, 0
      %p80 = por %p78, %p79
      %p81 = scmp.ne.s32.totalorder %s73, %s75
      %p82 = scmp.eq.s32.totalorder %s23, 1
      %p83 = por %p81, %p82
      %p84 = scmp.ne.s32.totalorder %s75, %s76
      %p85 = scmp.eq.s32.totalorder %s23, 0
      %p86 = por %p84, %p85
      %p87 = scmp.ne.s32.totalorder %s75, %s76
      %p88 = scmp.eq.s32.totalorder %s24, 1
      %p89 = por %p87, %p88
      %p91 = scmp.ne.s32.totalorder %s76, %s90
      %p92 = scmp.eq.s32.totalorder %s24, 0
      %p93 = por %p91, %p92
      %s95 = sadd.s32 %s94, 1
      %p98 = scmp.eq.s32.totalorder %s18, 1
      %p99 = scmp.ne.s32.totalorder %s94, %s96
      %p100 = scmp.eq.s32.totalorder %s18, 0
      %p101 = por %p99, %p100
      %p102 = scmp.ne.s32.totalorder %s94, %s96
      %p103 = scmp.eq.s32.totalorder %s23, 1
      %p104 = por %p102, %p103
      %p105 = scmp.ne.s32.totalorder %s96, %s97
      %p106 = scmp.eq.s32.totalorder %s23, 0
      %p107 = por %p105, %p106
      %p108 = scmp.ne.s32.totalorder %s96, %s97
      %p109 = scmp.eq.s32.totalorder %s24, 1
      %p110 = por %p108, %p109
      %p112 = scmp.ne.s32.totalorder %s97, %s111
      %p113 = scmp.eq.s32.totalorder %s24, 0
      %p114 = por %p112, %p113
      %s115 = ssub.s32 %s18, %s25
      %p116 = scmp.eq.s32.totalorder %s115, 0
      %s118 = sadd.s32 %s117, 1
      %s119 = scalar_select %p116, %s117, %s118
      %p122 = pneg %p116
      %p123 = scmp.eq.s32.totalorder %s18, 1
      %p124 = por %p122, %p123
      %p125 = scmp.ne.s32.totalorder %s117, %s120
      %p126 = scmp.eq.s32.totalorder %s18, 0
      %p127 = por %p125, %p126
      %p128 = scmp.ne.s32.totalorder %s117, %s120
      %p129 = scmp.eq.s32.totalorder %s23, 1
      %p130 = por %p128, %p129
      %p131 = scmp.ne.s32.totalorder %s120, %s121
      %p132 = scmp.eq.s32.totalorder %s23, 0
      %p133 = por %p131, %p132
      %p134 = scmp.ne.s32.totalorder %s120, %s121
      %p135 = scmp.eq.s32.totalorder %s24, 1
      %p136 = por %p134, %p135
      %p138 = scmp.ne.s32.totalorder %s121, %s137
      %p139 = scmp.eq.s32.totalorder %s24, 0
      %p140 = por %p138, %p139
      %s142 = sadd.s32 %s141, 1
      %p145 = scmp.eq.s32.totalorder %s18, 1
      %p146 = scmp.ne.s32.totalorder %s141, %s143
      %p147 = scmp.eq.s32.totalorder %s18, 0
      %p148 = por %p146, %p147
      %p149 = scmp.ne.s32.totalorder %s141, %s143
      %p150 = scmp.eq.s32.totalorder %s23, 1
      %p151 = por %p149, %p150
      %p152 = scmp.ne.s32.totalorder %s143, %s144
      %p153 = scmp.eq.s32.totalorder %s23, 0
      %p154 = por %p152, %p153
      %p155 = scmp.ne.s32.totalorder %s143, %s144
      %p156 = scmp.eq.s32.totalorder %s24, 1
      %p157 = por %p155, %p156
      %p159 = scmp.ne.s32.totalorder %s144, %s158
      %p160 = scmp.eq.s32.totalorder %s24, 0
      %p161 = por %p159, %p160
      %s163 = sadd.s32 %s162, 1
      %p166 = scmp.eq.s32.totalorder %s18, 1
      %p167 = scmp.ne.s32.totalorder %s162, %s164
      %p168 = scmp.eq.s32.totalorder %s18, 0
      %p169 = por %p167, %p168
      %p170 = scmp.ne.s32.totalorder %s162, %s164
      %p171 = scmp.eq.s32.totalorder %s23, 1
      %p172 = por %p170, %p171
      %p173 = scmp.ne.s32.totalorder %s164, %s165
      %p174 = scmp.eq.s32.totalorder %s23, 0
      %p175 = por %p173, %p174
      %p176 = scmp.ne.s32.totalorder %s164, %s165
      %p177 = scmp.eq.s32.totalorder %s24, 1
      %p178 = por %p176, %p177
      %p180 = scmp.ne.s32.totalorder %s165, %s179
      %p181 = scmp.eq.s32.totalorder %s24, 0
      %p182 = por %p180, %p181
      %s184 = sadd.s32 %s183, 1
      %p187 = scmp.eq.s32.totalorder %s18, 1
      %p188 = scmp.ne.s32.totalorder %s183, %s185
      %p189 = scmp.eq.s32.totalorder %s18, 0
      %p190 = por %p188, %p189
      %p191 = scmp.ne.s32.totalorder %s183, %s185
      %p192 = scmp.eq.s32.totalorder %s23, 1
      %p193 = por %p191, %p192
      %p194 = scmp.ne.s32.totalorder %s185, %s186
      %p195 = scmp.eq.s32.totalorder %s23, 0
      %p196 = por %p194, %p195
      %p197 = scmp.ne.s32.totalorder %s185, %s186
      %p198 = scmp.eq.s32.totalorder %s24, 1
      %p199 = por %p197, %p198
      %p201 = scmp.ne.s32.totalorder %s186, %s200
      %p202 = scmp.eq.s32.totalorder %s24, 0
      %p203 = por %p201, %p202
      %s205 = sadd.s32 %s204, 1
      %p208 = scmp.eq.s32.totalorder %s18, 1
      %p209 = scmp.ne.s32.totalorder %s204, %s206
      %p210 = scmp.eq.s32.totalorder %s18, 0
      %p211 = por %p209, %p210
      %p212 = scmp.ne.s32.totalorder %s204, %s206
      %p213 = scmp.eq.s32.totalorder %s23, 1
      %p214 = por %p212, %p213
      %p215 = scmp.ne.s32.totalorder %s206, %s207
      %p216 = scmp.eq.s32.totalorder %s23, 0
      %p217 = por %p215, %p216
      %p218 = scmp.ne.s32.totalorder %s206, %s207
      %p219 = scmp.eq.s32.totalorder %s24, 1
      %p220 = por %p218, %p219
      %p222 = scmp.ne.s32.totalorder %s207, %s221
      %p223 = scmp.eq.s32.totalorder %s24, 0
      %p224 = por %p222, %p223
      %s226 = sadd.s32 %s225, 1
      %p229 = scmp.eq.s32.totalorder %s18, 1
      %p230 = scmp.ne.s32.totalorder %s225, %s227
      %p231 = scmp.eq.s32.totalorder %s18, 0
      %p232 = por %p230, %p231
      %p233 = scmp.ne.s32.totalorder %s225, %s227
      %p234 = scmp.eq.s32.totalorder %s23, 1
      %p235 = por %p233, %p234
      %p236 = scmp.ne.s32.totalorder %s227, %s228
      %p237 = scmp.eq.s32.totalorder %s23, 0
      %p238 = por %p236, %p237
      %p239 = scmp.ne.s32.totalorder %s227, %s228
      %p240 = scmp.eq.s32.totalorder %s24, 1
      %p241 = por %p239, %p240
      %p243 = scmp.ne.s32.totalorder %s228, %s242
      %p244 = scmp.eq.s32.totalorder %s24, 0
      %p245 = por %p243, %p244
      %s246 = ssub.s32 %s18, %s25
      %p247 = scmp.eq.s32.totalorder %s246, 0
      %s249 = sadd.s32 %s248, 1
      %s250 = scalar_select %p247, %s248, %s249
      %p253 = pneg %p247
      %p254 = scmp.eq.s32.totalorder %s18, 1
      %p255 = por %p253, %p254
      %p256 = scmp.ne.s32.totalorder %s248, %s251
      %p257 = scmp.eq.s32.totalorder %s18, 0
      %p258 = por %p256, %p257
      %p259 = scmp.ne.s32.totalorder %s248, %s251
      %p260 = scmp.eq.s32.totalorder %s23, 1
      %p261 = por %p259, %p260
      %p262 = scmp.ne.s32.totalorder %s251, %s252
      %p263 = scmp.eq.s32.totalorder %s23, 0
      %p264 = por %p262, %p263
      %p265 = scmp.ne.s32.totalorder %s251, %s252
      %p266 = scmp.eq.s32.totalorder %s24, 1
      %p267 = por %p265, %p266
      %p269 = scmp.ne.s32.totalorder %s252, %s268
      %p270 = scmp.eq.s32.totalorder %s24, 0
      %p271 = por %p269, %p270
      %p272 = scmp.le.s32.totalorder 1, %s18
      %p273 = scmp.lt.s32.totalorder %s18, 3
      %p274 = pnand %p272, %p273
      %p275 = pneg %p274
      // Predicated region
      $region9: #{_lambda_.1} parent=5 // pred_check
        _
      $region10: #{_lambda_.1} parent=5 // pred_check_branch
        %277 = sbr.rel (%p274) target = $region12
      $region11: #{_lambda_.1} parent=5 // pred_region
        %s278 = ssub.s32 %s18, 1
        // Predicated region
        $region13: #{_lambda_.1} parent=11 // pred_check
          %p279 = pneg %p65
        $region14: #{_lambda_.1} parent=11 // pred_check_branch
          %281 = sbr.rel (%p279) target = $region16
        $region15: #{_lambda_.1} parent=11 // pred_region
          _
        $region16: #{_lambda_.1} parent=11 // pred_fallthru
          _
        // Predicated region
        $region17: #{_lambda_.1} parent=11 // pred_check
          %p282 = pneg %p86
        $region18: #{_lambda_.1} parent=11 // pred_check_branch
          %284 = sbr.rel (%p282) target = $region20
        $region19: #{_lambda_.1} parent=11 // pred_region
          _
        $region20: #{_lambda_.1} parent=11 // pred_fallthru
          _
        // Predicated region
        $region21: #{_lambda_.1} parent=11 // pred_check
          %p285 = pneg %p107
        $region22: #{_lambda_.1} parent=11 // pred_check_branch
          %287 = sbr.rel (%p285) target = $region24
        $region23: #{_lambda_.1} parent=11 // pred_region
          %289 = vsyncadd [#allocation5], 0
          %s291 = sshll.u32 %s3, 4
          %s292 = int_to_ptr.vmem [resolvable:$true] %s291
          %294 = dma.vmem_to_smem %s292, 16, [#allocation4], [#allocation5]
        $region24: #{_lambda_.1} parent=11 // pred_fallthru
          _
        // Predicated region
        $region25: #{_lambda_.1} parent=11 // pred_check
          %p295 = pneg %p154
        $region26: #{_lambda_.1} parent=11 // pred_check_branch
          %297 = sbr.rel (%p295) target = $region28
        $region27: #{_lambda_.1} parent=11 // pred_region
          _
        $region28: #{_lambda_.1} parent=11 // pred_fallthru
          _
        // Predicated region
        $region29: #{_lambda_.1} parent=11 // pred_check
          %p298 = pneg %p175
        $region30: #{_lambda_.1} parent=11 // pred_check_branch
          %300 = sbr.rel (%p298) target = $region32
        $region31: #{_lambda_.1} parent=11 // pred_region
          _
        $region32: #{_lambda_.1} parent=11 // pred_fallthru
          _
        // Predicated region
        $region33: #{_lambda_.1} parent=11 // pred_check
          %p301 = pneg %p196
        $region34: #{_lambda_.1} parent=11 // pred_check_branch
          %303 = sbr.rel (%p301) target = $region36
        $region35: #{_lambda_.1} parent=11 // pred_region
          _
        $region36: #{_lambda_.1} parent=11 // pred_fallthru
          _
        // Predicated region
        $region37: #{_lambda_.1} parent=11 // pred_check
          %p304 = pneg %p217
        $region38: #{_lambda_.1} parent=11 // pred_check_branch
          %306 = sbr.rel (%p304) target = $region40
        $region39: #{_lambda_.1} parent=11 // pred_region
          _
        $region40: #{_lambda_.1} parent=11 // pred_fallthru
          _
        // Predicated region
        $region41: #{_lambda_.1} parent=11 // pred_check
          %p307 = pneg %p238
        $region42: #{_lambda_.1} parent=11 // pred_check_branch
          %309 = sbr.rel (%p307) target = $region44
        $region43: #{_lambda_.1} parent=11 // pred_region
          _
        $region44: #{_lambda_.1} parent=11 // pred_fallthru
          _
      $region12: #{_lambda_.1} parent=5 // pred_fallthru
        _
      %p310 = scmp.lt.s32.totalorder %s18, 2
      // Predicated region
      $region45: #{_lambda_.1} parent=5 // pred_check
        %p311 = pneg %p310
      $region46: #{_lambda_.1} parent=5 // pred_check_branch
        %313 = sbr.rel (%p311) target = $region48
      $region47: #{_lambda_.1} parent=5 // pred_region
        // Predicated region
        $region49: #{_lambda_.1} parent=47 // pred_check
          %p314 = pneg %p38
        $region50: #{_lambda_.1} parent=47 // pred_check_branch
          %316 = sbr.rel (%p314) target = $region52
        $region51: #{_lambda_.1} parent=47 // pred_region
          %s317 = sand.u32 %s28, 1
          %s318 = sand.u32 %s28, 1
          %s319 = smul.addr %s318, 128
          %s320 = scalar_lea.vmem [#allocation3], %s319
          %s321 = smul.u32 2, %s18
          %s322 = smul.addr %s321, 8
          %s323 = scalar_lea.vmem %s0, %s322
          // Predicated region
          $region53: #{_lambda_.1} parent=51 // pred_check
            _
          $region54: #{_lambda_.1} parent=51 // pred_check_branch
            %325 = sbr.rel (0) target = $region56
          $region55: #{_lambda_.1} parent=51 // pred_region
            // Predicated region
            $region57: #{_lambda_.1} parent=55 // pred_check
              _
            $region58: #{_lambda_.1} parent=55 // pred_check_branch
              %327 = sbr.rel (0) target = $region60
            $region59: #{_lambda_.1} parent=55 // pred_region
              loop: start=0, step=1, limit=1
              $region61: #{_lambda_.1} parent=59 // loop_pre_header
                _
              $region62: #{_lambda_.1} parent=59 // loop_header
                %s329 = sphi 0, %s333
                %p330 = scmp.ge.s32.totalorder %s329, 1
                %s334 = sphi %s323, %s323
                %s335 = sphi %s320, %s320
              $region63: #{_lambda_.1} parent=59 // loop_header_branch
                %332 = sbr.rel (%p330) target = $region67
              $region64: #{_lambda_.1} parent=59 // loop_body
                %v336 = vld [vmem:[%s334] sm:$0xff]
                %337 = vst [vmem:[%s335] sm:$0xff] %v336
                %v338 = vld [vmem:[%s334 + $0x8] sm:$0xff]
                %339 = vst [vmem:[%s335 + $0x8] sm:$0xff] %v338
                %v340 = vld [vmem:[%s334 + $0x20] sm:$0xff]
                %341 = vst [vmem:[%s335 + $0x10] sm:$0xff] %v340
                %v342 = vld [vmem:[%s334 + $0x28] sm:$0xff]
                %343 = vst [vmem:[%s335 + $0x18] sm:$0xff] %v342
                %v344 = vld [vmem:[%s334 + $0x40] sm:$0xff]
                %345 = vst [vmem:[%s335 + $0x20] sm:$0xff] %v344
                %v346 = vld [vmem:[%s334 + $0x48] sm:$0xff]
                %347 = vst [vmem:[%s335 + $0x28] sm:$0xff] %v346
                %v348 = vld [vmem:[%s334 + $0x60] sm:$0xff]
                %349 = vst [vmem:[%s335 + $0x30] sm:$0xff] %v348
                %v350 = vld [vmem:[%s334 + $0x68] sm:$0xff]
                %351 = vst [vmem:[%s335 + $0x38] sm:$0xff] %v350
                %v352 = vld [vmem:[%s334 + $0x80] sm:$0xff]
                %353 = vst [vmem:[%s335 + $0x40] sm:$0xff] %v352
                %v354 = vld [vmem:[%s334 + $0x88] sm:$0xff]
                %355 = vst [vmem:[%s335 + $0x48] sm:$0xff] %v354
                %v356 = vld [vmem:[%s334 + $0xa0] sm:$0xff]
                %357 = vst [vmem:[%s335 + $0x50] sm:$0xff] %v356
                %v358 = vld [vmem:[%s334 + $0xa8] sm:$0xff]
                %359 = vst [vmem:[%s335 + $0x58] sm:$0xff] %v358
                %v360 = vld [vmem:[%s334 + $0xc0] sm:$0xff]
                %361 = vst [vmem:[%s335 + $0x60] sm:$0xff] %v360
                %v362 = vld [vmem:[%s334 + $0xc8] sm:$0xff]
                %363 = vst [vmem:[%s335 + $0x68] sm:$0xff] %v362
                %v364 = vld [vmem:[%s334 + $0xe0] sm:$0xff]
                %365 = vst [vmem:[%s335 + $0x70] sm:$0xff] %v364
                %v366 = vld [vmem:[%s334 + $0xe8] sm:$0xff]
                %367 = vst [vmem:[%s335 + $0x78] sm:$0xff] %v366
              $region65: #{_lambda_.1} parent=59 // loop_footer
                %s333 = sadd.s32 1, %s329
              $region66: #{_lambda_.1} parent=59 // loop_footer_branch
                %328 = sbr.rel target = $region62
              $region67: #{_lambda_.1} parent=59 // loop_exit
                _
            $region60: #{_lambda_.1} parent=55 // pred_fallthru
              _
            // Predicated region
            $region68: #{_lambda_.1} parent=55 // pred_check
              _
            $region69: #{_lambda_.1} parent=55 // pred_check_branch
              %369 = sbr.rel target = $region71
            $region70: #{_lambda_.1} parent=55 // pred_region
              _
            $region71: #{_lambda_.1} parent=55 // pred_fallthru
              _
          $region56: #{_lambda_.1} parent=51 // pred_fallthru
            _
          %370 = vnop
        $region52: #{_lambda_.1} parent=47 // pred_fallthru
          _
        // Predicated region
        $region72: #{_lambda_.1} parent=47 // pred_check
          %p371 = pneg %p127
        $region73: #{_lambda_.1} parent=47 // pred_check_branch
          %373 = sbr.rel (%p371) target = $region75
        $region74: #{_lambda_.1} parent=47 // pred_region
          %p374 = scmp.lt.s32.totalorder %s18, 1
          %s375 = scalar_select %p374, %s18, 1
          %s376 = smul.addr %s375, 8
          %s377 = scalar_lea.vmem %s4, %s376
        $region75: #{_lambda_.1} parent=47 // pred_fallthru
          _
      $region48: #{_lambda_.1} parent=5 // pred_fallthru
        _
      %p378 = scmp.le.s32.totalorder 1, %s18
      %p379 = scmp.lt.s32.totalorder %s18, 3
      %p380 = pnand %p378, %p379
      %p381 = pneg %p380
      // Predicated region
      $region76: #{_lambda_.1} parent=5 // pred_check
        _
      $region77: #{_lambda_.1} parent=5 // pred_check_branch
        %383 = sbr.rel (%p380) target = $region79
      $region78: #{_lambda_.1} parent=5 // pred_region
        %s384 = ssub.s32 %s18, 1
        %s385 = sand.u32 %s31, 1
        %s386 = sand.u32 %s31, 1
        %s387 = smul.addr %s386, 128
        %s388 = scalar_lea.vmem [#allocation3], %s387
        // Predicated region
        $region80: #{_lambda_.1} parent=78 // pred_check
          %p389 = pneg %p44
        $region81: #{_lambda_.1} parent=78 // pred_check_branch
          %391 = sbr.rel (%p389) target = $region83
        $region82: #{_lambda_.1} parent=78 // pred_region
          _
        $region83: #{_lambda_.1} parent=78 // pred_fallthru
          _
        // Predicated region
        $region84: #{_lambda_.1} parent=78 // pred_check
          %p392 = pneg %p107
        $region85: #{_lambda_.1} parent=78 // pred_check_branch
          %394 = sbr.rel (%p392) target = $region87
        $region86: #{_lambda_.1} parent=78 // pred_region
          %396 = dma.done [#allocation5], 16
        $region87: #{_lambda_.1} parent=78 // pred_fallthru
          _
        %397 = sfence
        %s398 = sand.u32 %s31, 1
        %s399 = sand.u32 %s31, 1
        %s400 = smul.addr %s399, 128
        %s401 = scalar_lea.vmem [#allocation3], %s400
        %p402 = pneg %p44
        %p403 = pneg %p41
        %p404 = pneg %p65
        %p405 = pneg %p62
        %p406 = pneg %p86
        %p407 = pneg %p83
        %p408 = pneg %p107
        %p409 = pneg %p104
        %p410 = scmp.lt.s32.totalorder %s23, 1
        %s411 = scalar_select %p410, %s23, 1
        %s412 = smul.addr %s411, 8
        %s413 = scalar_lea.vmem %s4, %s412
        %p414 = pneg %p133
        %p415 = pneg %p130
        %p416 = pneg %p154
        %p417 = pneg %p151
        %p418 = pneg %p175
        %p419 = pneg %p172
        %p420 = pneg %p196
        %p421 = pneg %p193
        %p422 = pneg %p217
        %p423 = pneg %p214
        %p424 = pneg %p238
        %p425 = pneg %p235
        %p426 = pneg %p264
        %p427 = pneg %p261
        %p428 = scmp.lt.s32.totalorder %s23, 1
        %s429 = scalar_select %p428, %s23, 1
        %s430 = scalar_lea.vmem %s10, %s429
        %s431 = smul.u32 2, %s23
        %p432 = scmp.lt.s32.totalorder %s23, 1
        %s433 = scalar_select %p432, %s23, 1
        %s434 = smul.addr %s433, 8
        %s435 = scalar_lea.vmem %s4, %s434
        %p436 = scmp.lt.s32.totalorder %s23, 1
        %s437 = scalar_select %p436, %s23, 1
        %s438 = scalar_lea.vmem %s10, %s437
        %v440 = vld [vmem:[%s388] sm:$0xff]
        %v441 = vld [vmem:[%s388 + $0x8] sm:$0xff]
        %v442 = vld [vmem:[%s388 + $0x10] sm:$0xff]
        %v443 = vld [vmem:[%s388 + $0x18] sm:$0xff]
        %v444 = vld [vmem:[%s388 + $0x20] sm:$0xff]
        %v445 = vld [vmem:[%s388 + $0x28] sm:$0xff]
        %v446 = vld [vmem:[%s388 + $0x30] sm:$0xff]
        %v447 = vld [vmem:[%s388 + $0x38] sm:$0xff]
        %v448 = vld [vmem:[%s388 + $0x40] sm:$0xff]
        %v449 = vld [vmem:[%s388 + $0x48] sm:$0xff]
        %v450 = vld [vmem:[%s388 + $0x50] sm:$0xff]
        %v451 = vld [vmem:[%s388 + $0x58] sm:$0xff]
        %v452 = vld [vmem:[%s388 + $0x60] sm:$0xff]
        %v453 = vld [vmem:[%s388 + $0x68] sm:$0xff]
        %v454 = vld [vmem:[%s388 + $0x70] sm:$0xff]
        %v455 = vld [vmem:[%s388 + $0x78] sm:$0xff]
        %v456 = vpack.c.bf16 %v442, %v440
        %v457 = vpack.c.bf16 %v443, %v441
        %v458 = vpack.c.bf16 %v446, %v444
        %v459 = vpack.c.bf16 %v447, %v445
        %v460 = vpack.c.bf16 %v450, %v448
        %v461 = vpack.c.bf16 %v451, %v449
        %v462 = vpack.c.bf16 %v454, %v452
        %v463 = vpack.c.bf16 %v455, %v453
        %v464 = vld [vmem:[%s1] sm:$0xf]
        %v465 = vld [vmem:[%s1 + $0x4] sm:$0xf]
        %v466 = vld [vmem:[%s1 + $0x8] sm:$0xf]
        %v467 = vld [vmem:[%s1 + $0xc] sm:$0xf]
        %v468 = vld [vmem:[%s1 + $0x10] sm:$0xf]
        %v469 = vld [vmem:[%s1 + $0x14] sm:$0xf]
        %v470 = vld [vmem:[%s1 + $0x18] sm:$0xf]
        %v471 = vld [vmem:[%s1 + $0x1c] sm:$0xf]
        %v472 = vld [vmem:[%s1 + $0x20] sm:$0xf]
        %v473 = vld [vmem:[%s1 + $0x24] sm:$0xf]
        %v474 = vld [vmem:[%s1 + $0x28] sm:$0xf]
        %v475 = vld [vmem:[%s1 + $0x2c] sm:$0xf]
        %v476 = vld [vmem:[%s1 + $0x30] sm:$0xf]
        %v477 = vld [vmem:[%s1 + $0x34] sm:$0xf]
        %v478 = vld [vmem:[%s1 + $0x38] sm:$0xf]
        %v479 = vld [vmem:[%s1 + $0x3c] sm:$0xf]
        %v480 = vld [vmem:[%s2] sm:$0xff]
        %v481 = vld [vmem:[%s2 + $0x8] sm:$0xff]
        %v482 = vld [vmem:[%s2 + $0x10] sm:$0xff]
        %v483 = vld [vmem:[%s2 + $0x18] sm:$0xff]
        %v484 = vld [vmem:[%s2 + $0x20] sm:$0xff]
        %v485 = vld [vmem:[%s2 + $0x28] sm:$0xff]
        %v486 = vld [vmem:[%s2 + $0x30] sm:$0xff]
        %v487 = vld [vmem:[%s2 + $0x38] sm:$0xff]
        %v488 = vld [vmem:[%s2 + $0x40] sm:$0xff]
        %v489 = vld [vmem:[%s2 + $0x48] sm:$0xff]
        %v490 = vld [vmem:[%s2 + $0x50] sm:$0xff]
        %v491 = vld [vmem:[%s2 + $0x58] sm:$0xff]
        %v492 = vld [vmem:[%s2 + $0x60] sm:$0xff]
        %v493 = vld [vmem:[%s2 + $0x68] sm:$0xff]
        %v494 = vld [vmem:[%s2 + $0x70] sm:$0xff]
        %v495 = vld [vmem:[%s2 + $0x78] sm:$0xff]
        %497 = vset.pattern.permute.xlu0 0
        %498 = vperm.xlu0 %497, %v480
        %v499 = vpop.permute.xlu0 %498
        %502 = vset.pattern.permute.xlu0 0
        %503 = vperm.xlu0 %502, %v481
        %v504 = vpop.permute.xlu0 %503
        %507 = vset.pattern.permute.xlu0 0
        %508 = vperm.xlu0 %507, %v482
        %v509 = vpop.permute.xlu0 %508
        %512 = vset.pattern.permute.xlu0 0
        %513 = vperm.xlu0 %512, %v483
        %v514 = vpop.permute.xlu0 %513
        %517 = vset.pattern.permute.xlu0 0
        %518 = vperm.xlu0 %517, %v484
        %v519 = vpop.permute.xlu0 %518
        %522 = vset.pattern.permute.xlu0 0
        %523 = vperm.xlu0 %522, %v485
        %v524 = vpop.permute.xlu0 %523
        %527 = vset.pattern.permute.xlu0 0
        %528 = vperm.xlu0 %527, %v486
        %v529 = vpop.permute.xlu0 %528
        %532 = vset.pattern.permute.xlu0 0
        %533 = vperm.xlu0 %532, %v487
        %v534 = vpop.permute.xlu0 %533
        %537 = vset.pattern.permute.xlu0 0
        %538 = vperm.xlu0 %537, %v488
        %v539 = vpop.permute.xlu0 %538
        %542 = vset.pattern.permute.xlu0 0
        %543 = vperm.xlu0 %542, %v489
        %v544 = vpop.permute.xlu0 %543
        %547 = vset.pattern.permute.xlu0 0
        %548 = vperm.xlu0 %547, %v490
        %v549 = vpop.permute.xlu0 %548
        %552 = vset.pattern.permute.xlu0 0
        %553 = vperm.xlu0 %552, %v491
        %v554 = vpop.permute.xlu0 %553
        %557 = vset.pattern.permute.xlu0 0
        %558 = vperm.xlu0 %557, %v492
        %v559 = vpop.permute.xlu0 %558
        %562 = vset.pattern.permute.xlu0 0
        %563 = vperm.xlu0 %562, %v493
        %v564 = vpop.permute.xlu0 %563
        %567 = vset.pattern.permute.xlu0 0
        %568 = vperm.xlu0 %567, %v494
        %v569 = vpop.permute.xlu0 %568
        %572 = vset.pattern.permute.xlu0 0
        %573 = vperm.xlu0 %572, %v495
        %v574 = vpop.permute.xlu0 %573
        %v592 = vunpack.c.l.b16 %v464
        %v593 = vunpack.c.l.b16 %v465
        %v594 = vunpack.c.l.b16 %v466
        %v595 = vunpack.c.l.b16 %v467
        %v596 = vunpack.c.l.b16 %v468
        %v597 = vunpack.c.l.b16 %v469
        %v598 = vunpack.c.l.b16 %v470
        %v599 = vunpack.c.l.b16 %v471
        %v600 = vunpack.c.l.b16 %v472
        %v601 = vunpack.c.l.b16 %v473
        %v602 = vunpack.c.l.b16 %v474
        %v603 = vunpack.c.l.b16 %v475
        %v604 = vunpack.c.l.b16 %v476
        %v605 = vunpack.c.l.b16 %v477
        %v606 = vunpack.c.l.b16 %v478
        %v607 = vunpack.c.l.b16 %v479
        %v608 = vpack.c.b16 %v593, %v592
        %v609 = vpack.c.b16 %v595, %v594
        %v610 = vpack.c.b16 %v597, %v596
        %v611 = vpack.c.b16 %v599, %v598
        %v612 = vpack.c.b16 %v601, %v600
        %v613 = vpack.c.b16 %v603, %v602
        %v614 = vpack.c.b16 %v605, %v604
        %v615 = vpack.c.b16 %v607, %v606
        %vm616 = vcmask 523264
        %v618 = vsel %vm616, %v608, 0
        %v621 = vsel %vm616, %v609, 0
        %v624 = vsel %vm616, %v610, 0
        %v627 = vsel %vm616, %v611, 0
        %v630 = vsel %vm616, %v612, 0
        %v633 = vsel %vm616, %v613, 0
        %v636 = vsel %vm616, %v614, 0
        %v639 = vsel %vm616, %v615, 0
        %641 = vmatpush.bf16.msra.mxu0 0
        %642 = vmatpush.bf16.msra.mxu0 0
        %643 = vmatpush.bf16.msra.mxu0 0
        %644 = vmatpush.bf16.msra.mxu0 0
        %645 = vmatpush.bf16.msra.mxu0 %v462
        %646 = vmatpush.bf16.msra.mxu0 %v460
        %647 = vmatpush.bf16.msra.mxu0 %v458
        %648 = vmatpush.bf16.msra.mxu0 %v456
        %649 = vmatmul.bf16.gmra.mxu0 %v618
        %v650 = vpop.f32.mrf.mxu0
        %v651 = vadd.f32 %v499, %v650
        %v652 = vpop.f32.mrf.mxu0
        %v653 = vadd.f32 %v504, %v652
        %654 = vmatmul.bf16.gmra.mxu0 %v621
        %v655 = vpop.f32.mrf.mxu0
        %v656 = vadd.f32 %v509, %v655
        %v657 = vpop.f32.mrf.mxu0
        %v658 = vadd.f32 %v514, %v657
        %659 = vmatmul.bf16.gmra.mxu0 %v624
        %v660 = vpop.f32.mrf.mxu0
        %v661 = vadd.f32 %v519, %v660
        %v662 = vpop.f32.mrf.mxu0
        %v663 = vadd.f32 %v524, %v662
        %664 = vmatmul.bf16.gmra.mxu0 %v627
        %v665 = vpop.f32.mrf.mxu0
        %v666 = vadd.f32 %v529, %v665
        %v667 = vpop.f32.mrf.mxu0
        %v668 = vadd.f32 %v534, %v667
        %669 = vmatmul.bf16.gmra.mxu0 %v630
        %v670 = vpop.f32.mrf.mxu0
        %v671 = vadd.f32 %v539, %v670
        %v672 = vpop.f32.mrf.mxu0
        %v673 = vadd.f32 %v544, %v672
        %674 = vmatmul.bf16.gmra.mxu0 %v633
        %v675 = vpop.f32.mrf.mxu0
        %v676 = vadd.f32 %v549, %v675
        %v677 = vpop.f32.mrf.mxu0
        %v678 = vadd.f32 %v554, %v677
        %679 = vmatmul.bf16.gmra.mxu0 %v636
        %v680 = vpop.f32.mrf.mxu0
        %v681 = vadd.f32 %v559, %v680
        %v682 = vpop.f32.mrf.mxu0
        %v683 = vadd.f32 %v564, %v682
        %684 = vmatmul.bf16.gmra.mxu0 %v639
        %v685 = vpop.f32.mrf.mxu0
        %v686 = vadd.f32 %v569, %v685
        %v687 = vpop.f32.mrf.mxu0
        %v688 = vadd.f32 %v574, %v687
        %689 = vdwg.mxu0
        %690 = vmatpush.bf16.msra.mxu0 0
        %691 = vmatpush.bf16.msra.mxu0 0
        %692 = vmatpush.bf16.msra.mxu0 0
        %693 = vmatpush.bf16.msra.mxu0 0
        %694 = vmatpush.bf16.msra.mxu0 %v463
        %695 = vmatpush.bf16.msra.mxu0 %v461
        %696 = vmatpush.bf16.msra.mxu0 %v459
        %697 = vmatpush.bf16.msra.mxu0 %v457
        %698 = vmatmul.bf16.gmra.mxu0 %v618
        %v699 = vpop.f32.mrf.mxu0
        %v700 = vadd.f32 %v499, %v699
        %v701 = vpop.f32.mrf.mxu0
        %v702 = vadd.f32 %v504, %v701
        %703 = vmatmul.bf16.gmra.mxu0 %v621
        %v704 = vpop.f32.mrf.mxu0
        %v705 = vadd.f32 %v509, %v704
        %v706 = vpop.f32.mrf.mxu0
        %v707 = vadd.f32 %v514, %v706
        %708 = vmatmul.bf16.gmra.mxu0 %v624
        %v709 = vpop.f32.mrf.mxu0
        %v710 = vadd.f32 %v519, %v709
        %v711 = vpop.f32.mrf.mxu0
        %v712 = vadd.f32 %v524, %v711
        %713 = vmatmul.bf16.gmra.mxu0 %v627
        %v714 = vpop.f32.mrf.mxu0
        %v715 = vadd.f32 %v529, %v714
        %v716 = vpop.f32.mrf.mxu0
        %v717 = vadd.f32 %v534, %v716
        %718 = vmatmul.bf16.gmra.mxu0 %v630
        %v719 = vpop.f32.mrf.mxu0
        %v720 = vadd.f32 %v539, %v719
        %v721 = vpop.f32.mrf.mxu0
        %v722 = vadd.f32 %v544, %v721
        %723 = vmatmul.bf16.gmra.mxu0 %v633
        %v724 = vpop.f32.mrf.mxu0
        %v725 = vadd.f32 %v549, %v724
        %v726 = vpop.f32.mrf.mxu0
        %v727 = vadd.f32 %v554, %v726
        %728 = vmatmul.bf16.gmra.mxu0 %v636
        %v729 = vpop.f32.mrf.mxu0
        %v730 = vadd.f32 %v559, %v729
        %v731 = vpop.f32.mrf.mxu0
        %v732 = vadd.f32 %v564, %v731
        %733 = vmatmul.bf16.gmra.mxu0 %v639
        %v734 = vpop.f32.mrf.mxu0
        %v735 = vadd.f32 %v569, %v734
        %v736 = vpop.f32.mrf.mxu0
        %v737 = vadd.f32 %v574, %v736
        %738 = vdwg.mxu0
        %v739 = vpack.c.bf16 %v673, %v671
        %v740 = vpack.c.bf16 %v722, %v720
        %v741 = vpack.c.bf16 %v678, %v676
        %v742 = vpack.c.bf16 %v727, %v725
        %v743 = vpack.c.bf16 %v683, %v681
        %v744 = vpack.c.bf16 %v732, %v730
        %v745 = vpack.c.bf16 %v688, %v686
        %v746 = vpack.c.bf16 %v737, %v735
        %s747 = sld [smem:[#allocation4]]
        %748 = vxpose.xlu0.b32.start [1/16] %v651, 128
        %749 = vxpose.xlu0.b32.cont [2/16] %v653, 128
        %750 = vxpose.xlu0.b32.cont [3/16] %v656, 128
        %751 = vxpose.xlu0.b32.cont [4/16] %v658, 128
        %752 = vxpose.xlu0.b32.cont [5/16] %v661, 128
        %753 = vxpose.xlu0.b32.cont [6/16] %v663, 128
        %754 = vxpose.xlu0.b32.cont [7/16] %v666, 128
        %755 = vxpose.xlu0.b32.cont [8/16] %v668, 128
        %756 = vxpose.xlu0.b32.cont [9/16] 0.0, 128
        %757 = vxpose.xlu0.b32.cont [10/16] 0.0, 128
        %758 = vxpose.xlu0.b32.cont [11/16] 0.0, 128
        %759 = vxpose.xlu0.b32.cont [12/16] 0.0, 128
        %760 = vxpose.xlu0.b32.cont [13/16] 0.0, 128
        %761 = vxpose.xlu0.b32.cont [14/16] 0.0, 128
        %762 = vxpose.xlu0.b32.cont [15/16] 0.0, 128
        %763 = vxpose.xlu0.b32.end [16/16] 0.0, 128
        %v764 = vpop.trf.xlu0
        %v765 = vpop.trf.xlu0
        %v766 = vpop.trf.xlu0
        %v767 = vpop.trf.xlu0
        %v768 = vpop.trf.xlu0
        %v769 = vpop.trf.xlu0
        %v770 = vpop.trf.xlu0
        %v771 = vpop.trf.xlu0
        %v772 = vpop.trf.xlu0
        %v773 = vpop.trf.xlu0
        %v774 = vpop.trf.xlu0
        %v775 = vpop.trf.xlu0
        %v776 = vpop.trf.xlu0
        %v777 = vpop.trf.xlu0
        %v778 = vpop.trf.xlu0
        %v779 = vpop.trf.xlu0
        %780 = vxpose.xlu0.b32.start [1/16] %v700, 128
        %781 = vxpose.xlu0.b32.cont [2/16] %v702, 128
        %782 = vxpose.xlu0.b32.cont [3/16] %v705, 128
        %783 = vxpose.xlu0.b32.cont [4/16] %v707, 128
        %784 = vxpose.xlu0.b32.cont [5/16] %v710, 128
        %785 = vxpose.xlu0.b32.cont [6/16] %v712, 128
        %786 = vxpose.xlu0.b32.cont [7/16] %v715, 128
        %787 = vxpose.xlu0.b32.cont [8/16] %v717, 128
        %788 = vxpose.xlu0.b32.cont [9/16] 0.0, 128
        %789 = vxpose.xlu0.b32.cont [10/16] 0.0, 128
        %790 = vxpose.xlu0.b32.cont [11/16] 0.0, 128
        %791 = vxpose.xlu0.b32.cont [12/16] 0.0, 128
        %792 = vxpose.xlu0.b32.cont [13/16] 0.0, 128
        %793 = vxpose.xlu0.b32.cont [14/16] 0.0, 128
        %794 = vxpose.xlu0.b32.cont [15/16] 0.0, 128
        %795 = vxpose.xlu0.b32.end [16/16] 0.0, 128
        %v796 = vpop.trf.xlu0
        %v797 = vpop.trf.xlu0
        %v798 = vpop.trf.xlu0
        %v799 = vpop.trf.xlu0
        %v800 = vpop.trf.xlu0
        %v801 = vpop.trf.xlu0
        %v802 = vpop.trf.xlu0
        %v803 = vpop.trf.xlu0
        %v804 = vpop.trf.xlu0
        %v805 = vpop.trf.xlu0
        %v806 = vpop.trf.xlu0
        %v807 = vpop.trf.xlu0
        %v808 = vpop.trf.xlu0
        %v809 = vpop.trf.xlu0
        %v810 = vpop.trf.xlu0
        %v811 = vpop.trf.xlu0
        %v812 = vpack.c.bf16 %v764, %v764
        %v813 = vpack.c.bf16 %v765, %v765
        %v814 = vpack.c.bf16 %v766, %v766
        %v815 = vpack.c.bf16 %v767, %v767
        %v816 = vpack.c.bf16 %v768, %v768
        %v817 = vpack.c.bf16 %v769, %v769
        %v818 = vpack.c.bf16 %v770, %v770
        %v819 = vpack.c.bf16 %v771, %v771
        %v820 = vpack.c.bf16 %v772, %v772
        %v821 = vpack.c.bf16 %v773, %v773
        %v822 = vpack.c.bf16 %v774, %v774
        %v823 = vpack.c.bf16 %v775, %v775
        %v824 = vpack.c.bf16 %v776, %v776
        %v825 = vpack.c.bf16 %v777, %v777
        %v826 = vpack.c.bf16 %v778, %v778
        %v827 = vpack.c.bf16 %v779, %v779
        %v828 = vpack.c.bf16 %v796, %v796
        %v829 = vpack.c.bf16 %v797, %v797
        %v830 = vpack.c.bf16 %v798, %v798
        %v831 = vpack.c.bf16 %v799, %v799
        %v832 = vpack.c.bf16 %v800, %v800
        %v833 = vpack.c.bf16 %v801, %v801
        %v834 = vpack.c.bf16 %v802, %v802
        %v835 = vpack.c.bf16 %v803, %v803
        %v836 = vpack.c.bf16 %v804, %v804
        %v837 = vpack.c.bf16 %v805, %v805
        %v838 = vpack.c.bf16 %v806, %v806
        %v839 = vpack.c.bf16 %v807, %v807
        %v840 = vpack.c.bf16 %v808, %v808
        %v841 = vpack.c.bf16 %v809, %v809
        %v842 = vpack.c.bf16 %v810, %v810
        %v843 = vpack.c.bf16 %v811, %v811
        %v860 = vunpack.c.l.b16 %v812
        %v861 = vunpack.c.l.b16 %v813
        %v862 = vunpack.c.l.b16 %v814
        %v863 = vunpack.c.l.b16 %v815
        %v864 = vunpack.c.l.b16 %v816
        %v865 = vunpack.c.l.b16 %v817
        %v866 = vunpack.c.l.b16 %v818
        %v867 = vunpack.c.l.b16 %v819
        %v868 = vunpack.c.l.b16 %v820
        %v869 = vunpack.c.l.b16 %v821
        %v870 = vunpack.c.l.b16 %v822
        %v871 = vunpack.c.l.b16 %v823
        %v872 = vunpack.c.l.b16 %v824
        %v873 = vunpack.c.l.b16 %v825
        %v874 = vunpack.c.l.b16 %v826
        %v875 = vunpack.c.l.b16 %v827
        %v876 = vpack.c.b16 %v861, %v860
        %v877 = vpack.c.b16 %v863, %v862
        %v878 = vpack.c.b16 %v865, %v864
        %v879 = vpack.c.b16 %v867, %v866
        %v880 = vpack.c.b16 %v869, %v868
        %v881 = vpack.c.b16 %v871, %v870
        %v882 = vpack.c.b16 %v873, %v872
        %v883 = vpack.c.b16 %v875, %v874
        %v885 = vsel %vm616, %v876, 0
        %v888 = vsel %vm616, %v877, 0
        %v891 = vsel %vm616, %v878, 0
        %v894 = vsel %vm616, %v879, 0
        %v897 = vsel %vm616, %v880, 0
        %v900 = vsel %vm616, %v881, 0
        %v903 = vsel %vm616, %v882, 0
        %v906 = vsel %vm616, %v883, 0
        %908 = vmatpush.bf16.msra.mxu0 0
        %909 = vmatpush.bf16.msra.mxu0 0
        %910 = vmatpush.bf16.msra.mxu0 0
        %911 = vmatpush.bf16.msra.mxu0 0
        %912 = vmatpush.bf16.msra.mxu0 %v462
        %913 = vmatpush.bf16.msra.mxu0 %v460
        %914 = vmatpush.bf16.msra.mxu0 %v458
        %915 = vmatpush.bf16.msra.mxu0 %v456
        %916 = vmatmul.bf16.gmra.mxu0 %v885
        %v917 = vpop.f32.mrf.mxu0
        %v918 = vadd.f32 0.0, %v917
        %v919 = vpop.f32.mrf.mxu0
        %v920 = vadd.f32 0.0, %v919
        %921 = vmatmul.bf16.gmra.mxu0 %v888
        %v922 = vpop.f32.mrf.mxu0
        %v923 = vadd.f32 0.0, %v922
        %v924 = vpop.f32.mrf.mxu0
        %v925 = vadd.f32 0.0, %v924
        %926 = vmatmul.bf16.gmra.mxu0 %v891
        %v927 = vpop.f32.mrf.mxu0
        %v928 = vadd.f32 0.0, %v927
        %v929 = vpop.f32.mrf.mxu0
        %v930 = vadd.f32 0.0, %v929
        %931 = vmatmul.bf16.gmra.mxu0 %v894
        %v932 = vpop.f32.mrf.mxu0
        %v933 = vadd.f32 0.0, %v932
        %v934 = vpop.f32.mrf.mxu0
        %v935 = vadd.f32 0.0, %v934
        %936 = vmatmul.bf16.gmra.mxu0 %v897
        %v937 = vpop.f32.mrf.mxu0
        %v938 = vadd.f32 0.0, %v937
        %v939 = vpop.f32.mrf.mxu0
        %v940 = vadd.f32 0.0, %v939
        %941 = vmatmul.bf16.gmra.mxu0 %v900
        %v942 = vpop.f32.mrf.mxu0
        %v943 = vadd.f32 0.0, %v942
        %v944 = vpop.f32.mrf.mxu0
        %v945 = vadd.f32 0.0, %v944
        %946 = vmatmul.bf16.gmra.mxu0 %v903
        %v947 = vpop.f32.mrf.mxu0
        %v948 = vadd.f32 0.0, %v947
        %v949 = vpop.f32.mrf.mxu0
        %v950 = vadd.f32 0.0, %v949
        %951 = vmatmul.bf16.gmra.mxu0 %v906
        %v952 = vpop.f32.mrf.mxu0
        %v953 = vadd.f32 0.0, %v952
        %v954 = vpop.f32.mrf.mxu0
        %v955 = vadd.f32 0.0, %v954
        %956 = vdwg.mxu0
        %957 = vmatpush.bf16.msra.mxu0 0
        %958 = vmatpush.bf16.msra.mxu0 0
        %959 = vmatpush.bf16.msra.mxu0 0
        %960 = vmatpush.bf16.msra.mxu0 0
        %961 = vmatpush.bf16.msra.mxu0 %v463
        %962 = vmatpush.bf16.msra.mxu0 %v461
        %963 = vmatpush.bf16.msra.mxu0 %v459
        %964 = vmatpush.bf16.msra.mxu0 %v457
        %965 = vmatmul.bf16.gmra.mxu0 %v885
        %v966 = vpop.f32.mrf.mxu0
        %v967 = vadd.f32 0.0, %v966
        %v968 = vpop.f32.mrf.mxu0
        %v969 = vadd.f32 0.0, %v968
        %970 = vmatmul.bf16.gmra.mxu0 %v888
        %v971 = vpop.f32.mrf.mxu0
        %v972 = vadd.f32 0.0, %v971
        %v973 = vpop.f32.mrf.mxu0
        %v974 = vadd.f32 0.0, %v973
        %975 = vmatmul.bf16.gmra.mxu0 %v891
        %v976 = vpop.f32.mrf.mxu0
        %v977 = vadd.f32 0.0, %v976
        %v978 = vpop.f32.mrf.mxu0
        %v979 = vadd.f32 0.0, %v978
        %980 = vmatmul.bf16.gmra.mxu0 %v894
        %v981 = vpop.f32.mrf.mxu0
        %v982 = vadd.f32 0.0, %v981
        %v983 = vpop.f32.mrf.mxu0
        %v984 = vadd.f32 0.0, %v983
        %985 = vmatmul.bf16.gmra.mxu0 %v897
        %v986 = vpop.f32.mrf.mxu0
        %v987 = vadd.f32 0.0, %v986
        %v988 = vpop.f32.mrf.mxu0
        %v989 = vadd.f32 0.0, %v988
        %990 = vmatmul.bf16.gmra.mxu0 %v900
        %v991 = vpop.f32.mrf.mxu0
        %v992 = vadd.f32 0.0, %v991
        %v993 = vpop.f32.mrf.mxu0
        %v994 = vadd.f32 0.0, %v993
        %995 = vmatmul.bf16.gmra.mxu0 %v903
        %v996 = vpop.f32.mrf.mxu0
        %v997 = vadd.f32 0.0, %v996
        %v998 = vpop.f32.mrf.mxu0
        %v999 = vadd.f32 0.0, %v998
        %1000 = vmatmul.bf16.gmra.mxu0 %v906
        %v1001 = vpop.f32.mrf.mxu0
        %v1002 = vadd.f32 0.0, %v1001
        %v1003 = vpop.f32.mrf.mxu0
        %v1004 = vadd.f32 0.0, %v1003
        %1005 = vdwg.mxu0
        %v1006 = vmax.f32 %v918, %v967
        %1007 = vmax.xlane.f32.xlu0 %v1006
        %v1008 = vpop.xlane.xlu0 %1007
        %v1009 = vmax.f32 %v920, %v969
        %1010 = vmax.xlane.f32.xlu0 %v1009
        %v1011 = vpop.xlane.xlu0 %1010
        %v1012 = vmax.f32 %v923, %v972
        %1013 = vmax.xlane.f32.xlu0 %v1012
        %v1014 = vpop.xlane.xlu0 %1013
        %v1015 = vmax.f32 %v925, %v974
        %1016 = vmax.xlane.f32.xlu0 %v1015
        %v1017 = vpop.xlane.xlu0 %1016
        %v1018 = vmax.f32 %v928, %v977
        %1019 = vmax.xlane.f32.xlu0 %v1018
        %v1020 = vpop.xlane.xlu0 %1019
        %v1021 = vmax.f32 %v930, %v979
        %1022 = vmax.xlane.f32.xlu0 %v1021
        %v1023 = vpop.xlane.xlu0 %1022
        %v1024 = vmax.f32 %v933, %v982
        %1025 = vmax.xlane.f32.xlu0 %v1024
        %v1026 = vpop.xlane.xlu0 %1025
        %v1027 = vmax.f32 %v935, %v984
        %1028 = vmax.xlane.f32.xlu0 %v1027
        %v1029 = vpop.xlane.xlu0 %1028
        %v1030 = vmax.f32 %v938, %v987
        %1031 = vmax.xlane.f32.xlu0 %v1030
        %v1032 = vpop.xlane.xlu0 %1031
        %v1033 = vmax.f32 %v940, %v989
        %1034 = vmax.xlane.f32.xlu0 %v1033
        %v1035 = vpop.xlane.xlu0 %1034
        %v1036 = vmax.f32 %v943, %v992
        %1037 = vmax.xlane.f32.xlu0 %v1036
        %v1038 = vpop.xlane.xlu0 %1037
        %v1039 = vmax.f32 %v945, %v994
        %1040 = vmax.xlane.f32.xlu0 %v1039
        %v1041 = vpop.xlane.xlu0 %1040
        %v1042 = vmax.f32 %v948, %v997
        %1043 = vmax.xlane.f32.xlu0 %v1042
        %v1044 = vpop.xlane.xlu0 %1043
        %v1045 = vmax.f32 %v950, %v999
        %1046 = vmax.xlane.f32.xlu0 %v1045
        %v1047 = vpop.xlane.xlu0 %1046
        %v1048 = vmax.f32 %v953, %v1002
        %1049 = vmax.xlane.f32.xlu0 %v1048
        %v1050 = vpop.xlane.xlu0 %1049
        %v1051 = vmax.f32 %v955, %v1004
        %1052 = vmax.xlane.f32.xlu0 %v1051
        %v1053 = vpop.xlane.xlu0 %1052
        %v1054 = vsub.f32 %v918, %v1008
        %v1055 = vsub.f32 %v967, %v1008
        %v1056 = vsub.f32 %v920, %v1011
        %v1057 = vsub.f32 %v969, %v1011
        %v1058 = vsub.f32 %v923, %v1014
        %v1059 = vsub.f32 %v972, %v1014
        %v1060 = vsub.f32 %v925, %v1017
        %v1061 = vsub.f32 %v974, %v1017
        %v1062 = vsub.f32 %v928, %v1020
        %v1063 = vsub.f32 %v977, %v1020
        %v1064 = vsub.f32 %v930, %v1023
        %v1065 = vsub.f32 %v979, %v1023
        %v1066 = vsub.f32 %v933, %v1026
        %v1067 = vsub.f32 %v982, %v1026
        %v1068 = vsub.f32 %v935, %v1029
        %v1069 = vsub.f32 %v984, %v1029
        %v1070 = vsub.f32 %v938, %v1032
        %v1071 = vsub.f32 %v987, %v1032
        %v1072 = vsub.f32 %v940, %v1035
        %v1073 = vsub.f32 %v989, %v1035
        %v1074 = vsub.f32 %v943, %v1038
        %v1075 = vsub.f32 %v992, %v1038
        %v1076 = vsub.f32 %v945, %v1041
        %v1077 = vsub.f32 %v994, %v1041
        %v1078 = vsub.f32 %v948, %v1044
        %v1079 = vsub.f32 %v997, %v1044
        %v1080 = vsub.f32 %v950, %v1047
        %v1081 = vsub.f32 %v999, %v1047
        %v1082 = vsub.f32 %v953, %v1050
        %v1083 = vsub.f32 %v1002, %v1050
        %v1084 = vsub.f32 %v955, %v1053
        %v1085 = vsub.f32 %v1004, %v1053
        %v1086 = vmul.f32 %v1054, 1.442695
        %v1087 = vpow.pop %v1086
        %v1088 = vmul.f32 %v1055, 1.442695
        %v1089 = vpow.pop %v1088
        %v1090 = vmul.f32 %v1056, 1.442695
        %v1091 = vpow.pop %v1090
        %v1092 = vmul.f32 %v1057, 1.442695
        %v1093 = vpow.pop %v1092
        %v1094 = vmul.f32 %v1058, 1.442695
        %v1095 = vpow.pop %v1094
        %v1096 = vmul.f32 %v1059, 1.442695
        %v1097 = vpow.pop %v1096
        %v1098 = vmul.f32 %v1060, 1.442695
        %v1099 = vpow.pop %v1098
        %v1100 = vmul.f32 %v1061, 1.442695
        %v1101 = vpow.pop %v1100
        %v1102 = vmul.f32 %v1062, 1.442695
        %v1103 = vpow.pop %v1102
        %v1104 = vmul.f32 %v1063, 1.442695
        %v1105 = vpow.pop %v1104
        %v1106 = vmul.f32 %v1064, 1.442695
        %v1107 = vpow.pop %v1106
        %v1108 = vmul.f32 %v1065, 1.442695
        %v1109 = vpow.pop %v1108
        %v1110 = vmul.f32 %v1066, 1.442695
        %v1111 = vpow.pop %v1110
        %v1112 = vmul.f32 %v1067, 1.442695
        %v1113 = vpow.pop %v1112
        %v1114 = vmul.f32 %v1068, 1.442695
        %v1115 = vpow.pop %v1114
        %v1116 = vmul.f32 %v1069, 1.442695
        %v1117 = vpow.pop %v1116
        %v1118 = vmul.f32 %v1070, 1.442695
        %v1119 = vpow.pop %v1118
        %v1120 = vmul.f32 %v1071, 1.442695
        %v1121 = vpow.pop %v1120
        %v1122 = vmul.f32 %v1072, 1.442695
        %v1123 = vpow.pop %v1122
        %v1124 = vmul.f32 %v1073, 1.442695
        %v1125 = vpow.pop %v1124
        %v1126 = vmul.f32 %v1074, 1.442695
        %v1127 = vpow.pop %v1126
        %v1128 = vmul.f32 %v1075, 1.442695
        %v1129 = vpow.pop %v1128
        %v1130 = vmul.f32 %v1076, 1.442695
        %v1131 = vpow.pop %v1130
        %v1132 = vmul.f32 %v1077, 1.442695
        %v1133 = vpow.pop %v1132
        %v1134 = vmul.f32 %v1078, 1.442695
        %v1135 = vpow.pop %v1134
        %v1136 = vmul.f32 %v1079, 1.442695
        %v1137 = vpow.pop %v1136
        %v1138 = vmul.f32 %v1080, 1.442695
        %v1139 = vpow.pop %v1138
        %v1140 = vmul.f32 %v1081, 1.442695
        %v1141 = vpow.pop %v1140
        %v1142 = vmul.f32 %v1082, 1.442695
        %v1143 = vpow.pop %v1142
        %v1144 = vmul.f32 %v1083, 1.442695
        %v1145 = vpow.pop %v1144
        %v1146 = vmul.f32 %v1084, 1.442695
        %v1147 = vpow.pop %v1146
        %v1148 = vmul.f32 %v1085, 1.442695
        %v1149 = vpow.pop %v1148
        %v1150 = vadd.f32 %v1087, %v1089
        %1151 = vadd.xlane.f32.xlu0 %v1150
        %v1152 = vpop.xlane.xlu0 %1151
        %v1153 = vadd.f32 %v1091, %v1093
        %1154 = vadd.xlane.f32.xlu0 %v1153
        %v1155 = vpop.xlane.xlu0 %1154
        %v1156 = vadd.f32 %v1095, %v1097
        %1157 = vadd.xlane.f32.xlu0 %v1156
        %v1158 = vpop.xlane.xlu0 %1157
        %v1159 = vadd.f32 %v1099, %v1101
        %1160 = vadd.xlane.f32.xlu0 %v1159
        %v1161 = vpop.xlane.xlu0 %1160
        %v1162 = vadd.f32 %v1103, %v1105
        %1163 = vadd.xlane.f32.xlu0 %v1162
        %v1164 = vpop.xlane.xlu0 %1163
        %v1165 = vadd.f32 %v1107, %v1109
        %1166 = vadd.xlane.f32.xlu0 %v1165
        %v1167 = vpop.xlane.xlu0 %1166
        %v1168 = vadd.f32 %v1111, %v1113
        %1169 = vadd.xlane.f32.xlu0 %v1168
        %v1170 = vpop.xlane.xlu0 %1169
        %v1171 = vadd.f32 %v1115, %v1117
        %1172 = vadd.xlane.f32.xlu0 %v1171
        %v1173 = vpop.xlane.xlu0 %1172
        %v1174 = vadd.f32 %v1119, %v1121
        %1175 = vadd.xlane.f32.xlu0 %v1174
        %v1176 = vpop.xlane.xlu0 %1175
        %v1177 = vadd.f32 %v1123, %v1125
        %1178 = vadd.xlane.f32.xlu0 %v1177
        %v1179 = vpop.xlane.xlu0 %1178
        %v1180 = vadd.f32 %v1127, %v1129
        %1181 = vadd.xlane.f32.xlu0 %v1180
        %v1182 = vpop.xlane.xlu0 %1181
        %v1183 = vadd.f32 %v1131, %v1133
        %1184 = vadd.xlane.f32.xlu0 %v1183
        %v1185 = vpop.xlane.xlu0 %1184
        %v1186 = vadd.f32 %v1135, %v1137
        %1187 = vadd.xlane.f32.xlu0 %v1186
        %v1188 = vpop.xlane.xlu0 %1187
        %v1189 = vadd.f32 %v1139, %v1141
        %1190 = vadd.xlane.f32.xlu0 %v1189
        %v1191 = vpop.xlane.xlu0 %1190
        %v1192 = vadd.f32 %v1143, %v1145
        %1193 = vadd.xlane.f32.xlu0 %v1192
        %v1194 = vpop.xlane.xlu0 %1193
        %v1195 = vadd.f32 %v1147, %v1149
        %1196 = vadd.xlane.f32.xlu0 %v1195
        %v1197 = vpop.xlane.xlu0 %1196
        %v1198 = vrcp.pop %v1152
        %v1199 = vrcp.pop %v1155
        %v1200 = vrcp.pop %v1158
        %v1201 = vrcp.pop %v1161
        %v1202 = vrcp.pop %v1164
        %v1203 = vrcp.pop %v1167
        %v1204 = vrcp.pop %v1170
        %v1205 = vrcp.pop %v1173
        %v1206 = vrcp.pop %v1176
        %v1207 = vrcp.pop %v1179
        %v1208 = vrcp.pop %v1182
        %v1209 = vrcp.pop %v1185
        %v1210 = vrcp.pop %v1188
        %v1211 = vrcp.pop %v1191
        %v1212 = vrcp.pop %v1194
        %v1213 = vrcp.pop %v1197
        %v1214 = vstv %s747
        %v1215 = vmul.f32 %v1214, %v1198
        %v1216 = vmul.f32 %v1214, %v1199
        %v1217 = vmul.f32 %v1214, %v1200
        %v1218 = vmul.f32 %v1214, %v1201
        %v1219 = vmul.f32 %v1214, %v1202
        %v1220 = vmul.f32 %v1214, %v1203
        %v1221 = vmul.f32 %v1214, %v1204
        %v1222 = vmul.f32 %v1214, %v1205
        %v1223 = vmul.f32 %v1214, %v1206
        %v1224 = vmul.f32 %v1214, %v1207
        %v1225 = vmul.f32 %v1214, %v1208
        %v1226 = vmul.f32 %v1214, %v1209
        %v1227 = vmul.f32 %v1214, %v1210
        %v1228 = vmul.f32 %v1214, %v1211
        %v1229 = vmul.f32 %v1214, %v1212
        %v1230 = vmul.f32 %v1214, %v1213
        %v1231 = vmul.f32 %v1087, %v1215
        %v1232 = vmul.f32 %v1089, %v1215
        %v1233 = vmul.f32 %v1091, %v1216
        %v1234 = vmul.f32 %v1093, %v1216
        %v1235 = vmul.f32 %v1095, %v1217
        %v1236 = vmul.f32 %v1097, %v1217
        %v1237 = vmul.f32 %v1099, %v1218
        %v1238 = vmul.f32 %v1101, %v1218
        %v1239 = vmul.f32 %v1103, %v1219
        %v1240 = vmul.f32 %v1105, %v1219
        %v1241 = vmul.f32 %v1107, %v1220
        %v1242 = vmul.f32 %v1109, %v1220
        %v1243 = vmul.f32 %v1111, %v1221
        %v1244 = vmul.f32 %v1113, %v1221
        %v1245 = vmul.f32 %v1115, %v1222
        %v1246 = vmul.f32 %v1117, %v1222
        %v1247 = vmul.f32 %v1119, %v1223
        %v1248 = vmul.f32 %v1121, %v1223
        %v1249 = vmul.f32 %v1123, %v1224
        %v1250 = vmul.f32 %v1125, %v1224
        %v1251 = vmul.f32 %v1127, %v1225
        %v1252 = vmul.f32 %v1129, %v1225
        %v1253 = vmul.f32 %v1131, %v1226
        %v1254 = vmul.f32 %v1133, %v1226
        %v1255 = vmul.f32 %v1135, %v1227
        %v1256 = vmul.f32 %v1137, %v1227
        %v1257 = vmul.f32 %v1139, %v1228
        %v1258 = vmul.f32 %v1141, %v1228
        %v1259 = vmul.f32 %v1143, %v1229
        %v1260 = vmul.f32 %v1145, %v1229
        %v1261 = vmul.f32 %v1147, %v1230
        %v1262 = vmul.f32 %v1149, %v1230
        %v1263 = vpack.c.bf16 %v1233, %v1231
        %v1264 = vpack.c.bf16 %v1234, %v1232
        %v1265 = vpack.c.bf16 %v1237, %v1235
        %v1266 = vpack.c.bf16 %v1238, %v1236
        %v1267 = vpack.c.bf16 %v1241, %v1239
        %v1268 = vpack.c.bf16 %v1242, %v1240
        %v1269 = vpack.c.bf16 %v1245, %v1243
        %v1270 = vpack.c.bf16 %v1246, %v1244
        %v1271 = vpack.c.bf16 %v1249, %v1247
        %v1272 = vpack.c.bf16 %v1250, %v1248
        %v1273 = vpack.c.bf16 %v1253, %v1251
        %v1274 = vpack.c.bf16 %v1254, %v1252
        %v1275 = vpack.c.bf16 %v1257, %v1255
        %v1276 = vpack.c.bf16 %v1258, %v1256
        %v1277 = vpack.c.bf16 %v1261, %v1259
        %v1278 = vpack.c.bf16 %v1262, %v1260
        %1279 = vmatpush.bf16.xpose.msra.mxu0 %v1277
        %1280 = vmatpush.bf16.xpose.msra.mxu0 %v1275
        %1281 = vmatpush.bf16.xpose.msra.mxu0 %v1273
        %1282 = vmatpush.bf16.xpose.msra.mxu0 %v1271
        %1283 = vmatpush.bf16.xpose.msra.mxu0 %v1269
        %1284 = vmatpush.bf16.xpose.msra.mxu0 %v1267
        %1285 = vmatpush.bf16.xpose.msra.mxu0 %v1265
        %1286 = vmatpush.bf16.xpose.msra.mxu0 %v1263
        %1287 = vmatmul.bf16.gmra.mxu0 %v739
        %v1288 = vpop.f32.mrf.mxu0
        %v1289 = vadd.f32 %v440, %v1288
        %v1290 = vpop.f32.mrf.mxu0
        %v1291 = vadd.f32 %v442, %v1290
        %1292 = vmatmul.bf16.gmra.mxu0 %v741
        %v1293 = vpop.f32.mrf.mxu0
        %v1294 = vadd.f32 %v444, %v1293
        %v1295 = vpop.f32.mrf.mxu0
        %v1296 = vadd.f32 %v446, %v1295
        %1297 = vmatmul.bf16.gmra.mxu0 %v743
        %v1298 = vpop.f32.mrf.mxu0
        %v1299 = vadd.f32 %v448, %v1298
        %v1300 = vpop.f32.mrf.mxu0
        %v1301 = vadd.f32 %v450, %v1300
        %1302 = vmatmul.bf16.gmra.mxu0 %v745
        %v1303 = vpop.f32.mrf.mxu0
        %v1304 = vadd.f32 %v452, %v1303
        %v1305 = vpop.f32.mrf.mxu0
        %v1306 = vadd.f32 %v454, %v1305
        %1307 = vdwg.mxu0
        %1308 = vmatpush.bf16.xpose.msra.mxu0 %v1278
        %1309 = vmatpush.bf16.xpose.msra.mxu0 %v1276
        %1310 = vmatpush.bf16.xpose.msra.mxu0 %v1274
        %1311 = vmatpush.bf16.xpose.msra.mxu0 %v1272
        %1312 = vmatpush.bf16.xpose.msra.mxu0 %v1270
        %1313 = vmatpush.bf16.xpose.msra.mxu0 %v1268
        %1314 = vmatpush.bf16.xpose.msra.mxu0 %v1266
        %1315 = vmatpush.bf16.xpose.msra.mxu0 %v1264
        %1316 = vmatmul.bf16.gmra.mxu0 %v740
        %v1317 = vpop.f32.mrf.mxu0
        %v1318 = vadd.f32 %v1289, %v1317
        %v1319 = vpop.f32.mrf.mxu0
        %v1320 = vadd.f32 %v1291, %v1319
        %1321 = vmatmul.bf16.gmra.mxu0 %v742
        %v1322 = vpop.f32.mrf.mxu0
        %v1323 = vadd.f32 %v1294, %v1322
        %v1324 = vpop.f32.mrf.mxu0
        %v1325 = vadd.f32 %v1296, %v1324
        %1326 = vmatmul.bf16.gmra.mxu0 %v744
        %v1327 = vpop.f32.mrf.mxu0
        %v1328 = vadd.f32 %v1299, %v1327
        %v1329 = vpop.f32.mrf.mxu0
        %v1330 = vadd.f32 %v1301, %v1329
        %1331 = vmatmul.bf16.gmra.mxu0 %v746
        %v1332 = vpop.f32.mrf.mxu0
        %v1333 = vadd.f32 %v1304, %v1332
        %v1334 = vpop.f32.mrf.mxu0
        %v1335 = vadd.f32 %v1306, %v1334
        %1336 = vdwg.mxu0
        %v1353 = vunpack.c.l.b16 %v828
        %v1354 = vunpack.c.l.b16 %v829
        %v1355 = vunpack.c.l.b16 %v830
        %v1356 = vunpack.c.l.b16 %v831
        %v1357 = vunpack.c.l.b16 %v832
        %v1358 = vunpack.c.l.b16 %v833
        %v1359 = vunpack.c.l.b16 %v834
        %v1360 = vunpack.c.l.b16 %v835
        %v1361 = vunpack.c.l.b16 %v836
        %v1362 = vunpack.c.l.b16 %v837
        %v1363 = vunpack.c.l.b16 %v838
        %v1364 = vunpack.c.l.b16 %v839
        %v1365 = vunpack.c.l.b16 %v840
        %v1366 = vunpack.c.l.b16 %v841
        %v1367 = vunpack.c.l.b16 %v842
        %v1368 = vunpack.c.l.b16 %v843
        %v1369 = vpack.c.b16 %v1354, %v1353
        %v1370 = vpack.c.b16 %v1356, %v1355
        %v1371 = vpack.c.b16 %v1358, %v1357
        %v1372 = vpack.c.b16 %v1360, %v1359
        %v1373 = vpack.c.b16 %v1362, %v1361
        %v1374 = vpack.c.b16 %v1364, %v1363
        %v1375 = vpack.c.b16 %v1366, %v1365
        %v1376 = vpack.c.b16 %v1368, %v1367
        %v1378 = vsel %vm616, %v1369, 0
        %v1381 = vsel %vm616, %v1370, 0
        %v1384 = vsel %vm616, %v1371, 0
        %v1387 = vsel %vm616, %v1372, 0
        %v1390 = vsel %vm616, %v1373, 0
        %v1393 = vsel %vm616, %v1374, 0
        %v1396 = vsel %vm616, %v1375, 0
        %v1399 = vsel %vm616, %v1376, 0
        %1401 = vmatpush.bf16.msra.mxu0 0
        %1402 = vmatpush.bf16.msra.mxu0 0
        %1403 = vmatpush.bf16.msra.mxu0 0
        %1404 = vmatpush.bf16.msra.mxu0 0
        %1405 = vmatpush.bf16.msra.mxu0 %v462
        %1406 = vmatpush.bf16.msra.mxu0 %v460
        %1407 = vmatpush.bf16.msra.mxu0 %v458
        %1408 = vmatpush.bf16.msra.mxu0 %v456
        %1409 = vmatmul.bf16.gmra.mxu0 %v1378
        %v1410 = vpop.f32.mrf.mxu0
        %v1411 = vadd.f32 0.0, %v1410
        %v1412 = vpop.f32.mrf.mxu0
        %v1413 = vadd.f32 0.0, %v1412
        %1414 = vmatmul.bf16.gmra.mxu0 %v1381
        %v1415 = vpop.f32.mrf.mxu0
        %v1416 = vadd.f32 0.0, %v1415
        %v1417 = vpop.f32.mrf.mxu0
        %v1418 = vadd.f32 0.0, %v1417
        %1419 = vmatmul.bf16.gmra.mxu0 %v1384
        %v1420 = vpop.f32.mrf.mxu0
        %v1421 = vadd.f32 0.0, %v1420
        %v1422 = vpop.f32.mrf.mxu0
        %v1423 = vadd.f32 0.0, %v1422
        %1424 = vmatmul.bf16.gmra.mxu0 %v1387
        %v1425 = vpop.f32.mrf.mxu0
        %v1426 = vadd.f32 0.0, %v1425
        %v1427 = vpop.f32.mrf.mxu0
        %v1428 = vadd.f32 0.0, %v1427
        %1429 = vmatmul.bf16.gmra.mxu0 %v1390
        %v1430 = vpop.f32.mrf.mxu0
        %v1431 = vadd.f32 0.0, %v1430
        %v1432 = vpop.f32.mrf.mxu0
        %v1433 = vadd.f32 0.0, %v1432
        %1434 = vmatmul.bf16.gmra.mxu0 %v1393
        %v1435 = vpop.f32.mrf.mxu0
        %v1436 = vadd.f32 0.0, %v1435
        %v1437 = vpop.f32.mrf.mxu0
        %v1438 = vadd.f32 0.0, %v1437
        %1439 = vmatmul.bf16.gmra.mxu0 %v1396
        %v1440 = vpop.f32.mrf.mxu0
        %v1441 = vadd.f32 0.0, %v1440
        %v1442 = vpop.f32.mrf.mxu0
        %v1443 = vadd.f32 0.0, %v1442
        %1444 = vmatmul.bf16.gmra.mxu0 %v1399
        %v1445 = vpop.f32.mrf.mxu0
        %v1446 = vadd.f32 0.0, %v1445
        %v1447 = vpop.f32.mrf.mxu0
        %v1448 = vadd.f32 0.0, %v1447
        %1449 = vdwg.mxu0
        %1450 = vmatpush.bf16.msra.mxu0 0
        %1451 = vmatpush.bf16.msra.mxu0 0
        %1452 = vmatpush.bf16.msra.mxu0 0
        %1453 = vmatpush.bf16.msra.mxu0 0
        %1454 = vmatpush.bf16.msra.mxu0 %v463
        %1455 = vmatpush.bf16.msra.mxu0 %v461
        %1456 = vmatpush.bf16.msra.mxu0 %v459
        %1457 = vmatpush.bf16.msra.mxu0 %v457
        %1458 = vmatmul.bf16.gmra.mxu0 %v1378
        %v1459 = vpop.f32.mrf.mxu0
        %v1460 = vadd.f32 0.0, %v1459
        %v1461 = vpop.f32.mrf.mxu0
        %v1462 = vadd.f32 0.0, %v1461
        %1463 = vmatmul.bf16.gmra.mxu0 %v1381
        %v1464 = vpop.f32.mrf.mxu0
        %v1465 = vadd.f32 0.0, %v1464
        %v1466 = vpop.f32.mrf.mxu0
        %v1467 = vadd.f32 0.0, %v1466
        %1468 = vmatmul.bf16.gmra.mxu0 %v1384
        %v1469 = vpop.f32.mrf.mxu0
        %v1470 = vadd.f32 0.0, %v1469
        %v1471 = vpop.f32.mrf.mxu0
        %v1472 = vadd.f32 0.0, %v1471
        %1473 = vmatmul.bf16.gmra.mxu0 %v1387
        %v1474 = vpop.f32.mrf.mxu0
        %v1475 = vadd.f32 0.0, %v1474
        %v1476 = vpop.f32.mrf.mxu0
        %v1477 = vadd.f32 0.0, %v1476
        %1478 = vmatmul.bf16.gmra.mxu0 %v1390
        %v1479 = vpop.f32.mrf.mxu0
        %v1480 = vadd.f32 0.0, %v1479
        %v1481 = vpop.f32.mrf.mxu0
        %v1482 = vadd.f32 0.0, %v1481
        %1483 = vmatmul.bf16.gmra.mxu0 %v1393
        %v1484 = vpop.f32.mrf.mxu0
        %v1485 = vadd.f32 0.0, %v1484
        %v1486 = vpop.f32.mrf.mxu0
        %v1487 = vadd.f32 0.0, %v1486
        %1488 = vmatmul.bf16.gmra.mxu0 %v1396
        %v1489 = vpop.f32.mrf.mxu0
        %v1490 = vadd.f32 0.0, %v1489
        %v1491 = vpop.f32.mrf.mxu0
        %v1492 = vadd.f32 0.0, %v1491
        %1493 = vmatmul.bf16.gmra.mxu0 %v1399
        %v1494 = vpop.f32.mrf.mxu0
        %v1495 = vadd.f32 0.0, %v1494
        %v1496 = vpop.f32.mrf.mxu0
        %v1497 = vadd.f32 0.0, %v1496
        %1498 = vdwg.mxu0
        %v1499 = vmax.f32 %v1411, %v1460
        %1500 = vmax.xlane.f32.xlu0 %v1499
        %v1501 = vpop.xlane.xlu0 %1500
        %v1502 = vmax.f32 %v1413, %v1462
        %1503 = vmax.xlane.f32.xlu0 %v1502
        %v1504 = vpop.xlane.xlu0 %1503
        %v1505 = vmax.f32 %v1416, %v1465
        %1506 = vmax.xlane.f32.xlu0 %v1505
        %v1507 = vpop.xlane.xlu0 %1506
        %v1508 = vmax.f32 %v1418, %v1467
        %1509 = vmax.xlane.f32.xlu0 %v1508
        %v1510 = vpop.xlane.xlu0 %1509
        %v1511 = vmax.f32 %v1421, %v1470
        %1512 = vmax.xlane.f32.xlu0 %v1511
        %v1513 = vpop.xlane.xlu0 %1512
        %v1514 = vmax.f32 %v1423, %v1472
        %1515 = vmax.xlane.f32.xlu0 %v1514
        %v1516 = vpop.xlane.xlu0 %1515
        %v1517 = vmax.f32 %v1426, %v1475
        %1518 = vmax.xlane.f32.xlu0 %v1517
        %v1519 = vpop.xlane.xlu0 %1518
        %v1520 = vmax.f32 %v1428, %v1477
        %1521 = vmax.xlane.f32.xlu0 %v1520
        %v1522 = vpop.xlane.xlu0 %1521
        %v1523 = vmax.f32 %v1431, %v1480
        %1524 = vmax.xlane.f32.xlu0 %v1523
        %v1525 = vpop.xlane.xlu0 %1524
        %v1526 = vmax.f32 %v1433, %v1482
        %1527 = vmax.xlane.f32.xlu0 %v1526
        %v1528 = vpop.xlane.xlu0 %1527
        %v1529 = vmax.f32 %v1436, %v1485
        %1530 = vmax.xlane.f32.xlu0 %v1529
        %v1531 = vpop.xlane.xlu0 %1530
        %v1532 = vmax.f32 %v1438, %v1487
        %1533 = vmax.xlane.f32.xlu0 %v1532
        %v1534 = vpop.xlane.xlu0 %1533
        %v1535 = vmax.f32 %v1441, %v1490
        %1536 = vmax.xlane.f32.xlu0 %v1535
        %v1537 = vpop.xlane.xlu0 %1536
        %v1538 = vmax.f32 %v1443, %v1492
        %1539 = vmax.xlane.f32.xlu0 %v1538
        %v1540 = vpop.xlane.xlu0 %1539
        %v1541 = vmax.f32 %v1446, %v1495
        %1542 = vmax.xlane.f32.xlu0 %v1541
        %v1543 = vpop.xlane.xlu0 %1542
        %v1544 = vmax.f32 %v1448, %v1497
        %1545 = vmax.xlane.f32.xlu0 %v1544
        %v1546 = vpop.xlane.xlu0 %1545
        %v1547 = vsub.f32 %v1411, %v1501
        %v1548 = vsub.f32 %v1460, %v1501
        %v1549 = vsub.f32 %v1413, %v1504
        %v1550 = vsub.f32 %v1462, %v1504
        %v1551 = vsub.f32 %v1416, %v1507
        %v1552 = vsub.f32 %v1465, %v1507
        %v1553 = vsub.f32 %v1418, %v1510
        %v1554 = vsub.f32 %v1467, %v1510
        %v1555 = vsub.f32 %v1421, %v1513
        %v1556 = vsub.f32 %v1470, %v1513
        %v1557 = vsub.f32 %v1423, %v1516
        %v1558 = vsub.f32 %v1472, %v1516
        %v1559 = vsub.f32 %v1426, %v1519
        %v1560 = vsub.f32 %v1475, %v1519
        %v1561 = vsub.f32 %v1428, %v1522
        %v1562 = vsub.f32 %v1477, %v1522
        %v1563 = vsub.f32 %v1431, %v1525
        %v1564 = vsub.f32 %v1480, %v1525
        %v1565 = vsub.f32 %v1433, %v1528
        %v1566 = vsub.f32 %v1482, %v1528
        %v1567 = vsub.f32 %v1436, %v1531
        %v1568 = vsub.f32 %v1485, %v1531
        %v1569 = vsub.f32 %v1438, %v1534
        %v1570 = vsub.f32 %v1487, %v1534
        %v1571 = vsub.f32 %v1441, %v1537
        %v1572 = vsub.f32 %v1490, %v1537
        %v1573 = vsub.f32 %v1443, %v1540
        %v1574 = vsub.f32 %v1492, %v1540
        %v1575 = vsub.f32 %v1446, %v1543
        %v1576 = vsub.f32 %v1495, %v1543
        %v1577 = vsub.f32 %v1448, %v1546
        %v1578 = vsub.f32 %v1497, %v1546
        %v1579 = vmul.f32 %v1547, 1.442695
        %v1580 = vpow.pop %v1579
        %v1581 = vmul.f32 %v1548, 1.442695
        %v1582 = vpow.pop %v1581
        %v1583 = vmul.f32 %v1549, 1.442695
        %v1584 = vpow.pop %v1583
        %v1585 = vmul.f32 %v1550, 1.442695
        %v1586 = vpow.pop %v1585
        %v1587 = vmul.f32 %v1551, 1.442695
        %v1588 = vpow.pop %v1587
        %v1589 = vmul.f32 %v1552, 1.442695
        %v1590 = vpow.pop %v1589
        %v1591 = vmul.f32 %v1553, 1.442695
        %v1592 = vpow.pop %v1591
        %v1593 = vmul.f32 %v1554, 1.442695
        %v1594 = vpow.pop %v1593
        %v1595 = vmul.f32 %v1555, 1.442695
        %v1596 = vpow.pop %v1595
        %v1597 = vmul.f32 %v1556, 1.442695
        %v1598 = vpow.pop %v1597
        %v1599 = vmul.f32 %v1557, 1.442695
        %v1600 = vpow.pop %v1599
        %v1601 = vmul.f32 %v1558, 1.442695
        %v1602 = vpow.pop %v1601
        %v1603 = vmul.f32 %v1559, 1.442695
        %v1604 = vpow.pop %v1603
        %v1605 = vmul.f32 %v1560, 1.442695
        %v1606 = vpow.pop %v1605
        %v1607 = vmul.f32 %v1561, 1.442695
        %v1608 = vpow.pop %v1607
        %v1609 = vmul.f32 %v1562, 1.442695
        %v1610 = vpow.pop %v1609
        %v1611 = vmul.f32 %v1563, 1.442695
        %v1612 = vpow.pop %v1611
        %v1613 = vmul.f32 %v1564, 1.442695
        %v1614 = vpow.pop %v1613
        %v1615 = vmul.f32 %v1565, 1.442695
        %v1616 = vpow.pop %v1615
        %v1617 = vmul.f32 %v1566, 1.442695
        %v1618 = vpow.pop %v1617
        %v1619 = vmul.f32 %v1567, 1.442695
        %v1620 = vpow.pop %v1619
        %v1621 = vmul.f32 %v1568, 1.442695
        %v1622 = vpow.pop %v1621
        %v1623 = vmul.f32 %v1569, 1.442695
        %v1624 = vpow.pop %v1623
        %v1625 = vmul.f32 %v1570, 1.442695
        %v1626 = vpow.pop %v1625
        %v1627 = vmul.f32 %v1571, 1.442695
        %v1628 = vpow.pop %v1627
        %v1629 = vmul.f32 %v1572, 1.442695
        %v1630 = vpow.pop %v1629
        %v1631 = vmul.f32 %v1573, 1.442695
        %v1632 = vpow.pop %v1631
        %v1633 = vmul.f32 %v1574, 1.442695
        %v1634 = vpow.pop %v1633
        %v1635 = vmul.f32 %v1575, 1.442695
        %v1636 = vpow.pop %v1635
        %v1637 = vmul.f32 %v1576, 1.442695
        %v1638 = vpow.pop %v1637
        %v1639 = vmul.f32 %v1577, 1.442695
        %v1640 = vpow.pop %v1639
        %v1641 = vmul.f32 %v1578, 1.442695
        %v1642 = vpow.pop %v1641
        %v1643 = vadd.f32 %v1580, %v1582
        %1644 = vadd.xlane.f32.xlu0 %v1643
        %v1645 = vpop.xlane.xlu0 %1644
        %v1646 = vadd.f32 %v1584, %v1586
        %1647 = vadd.xlane.f32.xlu0 %v1646
        %v1648 = vpop.xlane.xlu0 %1647
        %v1649 = vadd.f32 %v1588, %v1590
        %1650 = vadd.xlane.f32.xlu0 %v1649
        %v1651 = vpop.xlane.xlu0 %1650
        %v1652 = vadd.f32 %v1592, %v1594
        %1653 = vadd.xlane.f32.xlu0 %v1652
        %v1654 = vpop.xlane.xlu0 %1653
        %v1655 = vadd.f32 %v1596, %v1598
        %1656 = vadd.xlane.f32.xlu0 %v1655
        %v1657 = vpop.xlane.xlu0 %1656
        %v1658 = vadd.f32 %v1600, %v1602
        %1659 = vadd.xlane.f32.xlu0 %v1658
        %v1660 = vpop.xlane.xlu0 %1659
        %v1661 = vadd.f32 %v1604, %v1606
        %1662 = vadd.xlane.f32.xlu0 %v1661
        %v1663 = vpop.xlane.xlu0 %1662
        %v1664 = vadd.f32 %v1608, %v1610
        %1665 = vadd.xlane.f32.xlu0 %v1664
        %v1666 = vpop.xlane.xlu0 %1665
        %v1667 = vadd.f32 %v1612, %v1614
        %1668 = vadd.xlane.f32.xlu0 %v1667
        %v1669 = vpop.xlane.xlu0 %1668
        %v1670 = vadd.f32 %v1616, %v1618
        %1671 = vadd.xlane.f32.xlu0 %v1670
        %v1672 = vpop.xlane.xlu0 %1671
        %v1673 = vadd.f32 %v1620, %v1622
        %1674 = vadd.xlane.f32.xlu0 %v1673
        %v1675 = vpop.xlane.xlu0 %1674
        %v1676 = vadd.f32 %v1624, %v1626
        %1677 = vadd.xlane.f32.xlu0 %v1676
        %v1678 = vpop.xlane.xlu0 %1677
        %v1679 = vadd.f32 %v1628, %v1630
        %1680 = vadd.xlane.f32.xlu0 %v1679
        %v1681 = vpop.xlane.xlu0 %1680
        %v1682 = vadd.f32 %v1632, %v1634
        %1683 = vadd.xlane.f32.xlu0 %v1682
        %v1684 = vpop.xlane.xlu0 %1683
        %v1685 = vadd.f32 %v1636, %v1638
        %1686 = vadd.xlane.f32.xlu0 %v1685
        %v1687 = vpop.xlane.xlu0 %1686
        %v1688 = vadd.f32 %v1640, %v1642
        %1689 = vadd.xlane.f32.xlu0 %v1688
        %v1690 = vpop.xlane.xlu0 %1689
        %v1691 = vrcp.pop %v1645
        %v1692 = vrcp.pop %v1648
        %v1693 = vrcp.pop %v1651
        %v1694 = vrcp.pop %v1654
        %v1695 = vrcp.pop %v1657
        %v1696 = vrcp.pop %v1660
        %v1697 = vrcp.pop %v1663
        %v1698 = vrcp.pop %v1666
        %v1699 = vrcp.pop %v1669
        %v1700 = vrcp.pop %v1672
        %v1701 = vrcp.pop %v1675
        %v1702 = vrcp.pop %v1678
        %v1703 = vrcp.pop %v1681
        %v1704 = vrcp.pop %v1684
        %v1705 = vrcp.pop %v1687
        %v1706 = vrcp.pop %v1690
        %v1707 = vmul.f32 %v1214, %v1691
        %v1708 = vmul.f32 %v1214, %v1692
        %v1709 = vmul.f32 %v1214, %v1693
        %v1710 = vmul.f32 %v1214, %v1694
        %v1711 = vmul.f32 %v1214, %v1695
        %v1712 = vmul.f32 %v1214, %v1696
        %v1713 = vmul.f32 %v1214, %v1697
        %v1714 = vmul.f32 %v1214, %v1698
        %v1715 = vmul.f32 %v1214, %v1699
        %v1716 = vmul.f32 %v1214, %v1700
        %v1717 = vmul.f32 %v1214, %v1701
        %v1718 = vmul.f32 %v1214, %v1702
        %v1719 = vmul.f32 %v1214, %v1703
        %v1720 = vmul.f32 %v1214, %v1704
        %v1721 = vmul.f32 %v1214, %v1705
        %v1722 = vmul.f32 %v1214, %v1706
        %v1723 = vmul.f32 %v1580, %v1707
        %v1724 = vmul.f32 %v1582, %v1707
        %v1725 = vmul.f32 %v1584, %v1708
        %v1726 = vmul.f32 %v1586, %v1708
        %v1727 = vmul.f32 %v1588, %v1709
        %v1728 = vmul.f32 %v1590, %v1709
        %v1729 = vmul.f32 %v1592, %v1710
        %v1730 = vmul.f32 %v1594, %v1710
        %v1731 = vmul.f32 %v1596, %v1711
        %v1732 = vmul.f32 %v1598, %v1711
        %v1733 = vmul.f32 %v1600, %v1712
        %v1734 = vmul.f32 %v1602, %v1712
        %v1735 = vmul.f32 %v1604, %v1713
        %v1736 = vmul.f32 %v1606, %v1713
        %v1737 = vmul.f32 %v1608, %v1714
        %v1738 = vmul.f32 %v1610, %v1714
        %v1739 = vmul.f32 %v1612, %v1715
        %v1740 = vmul.f32 %v1614, %v1715
        %v1741 = vmul.f32 %v1616, %v1716
        %v1742 = vmul.f32 %v1618, %v1716
        %v1743 = vmul.f32 %v1620, %v1717
        %v1744 = vmul.f32 %v1622, %v1717
        %v1745 = vmul.f32 %v1624, %v1718
        %v1746 = vmul.f32 %v1626, %v1718
        %v1747 = vmul.f32 %v1628, %v1719
        %v1748 = vmul.f32 %v1630, %v1719
        %v1749 = vmul.f32 %v1632, %v1720
        %v1750 = vmul.f32 %v1634, %v1720
        %v1751 = vmul.f32 %v1636, %v1721
        %v1752 = vmul.f32 %v1638, %v1721
        %v1753 = vmul.f32 %v1640, %v1722
        %v1754 = vmul.f32 %v1642, %v1722
        %v1755 = vpack.c.bf16 %v1725, %v1723
        %v1756 = vpack.c.bf16 %v1726, %v1724
        %v1757 = vpack.c.bf16 %v1729, %v1727
        %v1758 = vpack.c.bf16 %v1730, %v1728
        %v1759 = vpack.c.bf16 %v1733, %v1731
        %v1760 = vpack.c.bf16 %v1734, %v1732
        %v1761 = vpack.c.bf16 %v1737, %v1735
        %v1762 = vpack.c.bf16 %v1738, %v1736
        %v1763 = vpack.c.bf16 %v1741, %v1739
        %v1764 = vpack.c.bf16 %v1742, %v1740
        %v1765 = vpack.c.bf16 %v1745, %v1743
        %v1766 = vpack.c.bf16 %v1746, %v1744
        %v1767 = vpack.c.bf16 %v1749, %v1747
        %v1768 = vpack.c.bf16 %v1750, %v1748
        %v1769 = vpack.c.bf16 %v1753, %v1751
        %v1770 = vpack.c.bf16 %v1754, %v1752
        %1771 = vmatpush.bf16.xpose.msra.mxu0 %v1769
        %1772 = vmatpush.bf16.xpose.msra.mxu0 %v1767
        %1773 = vmatpush.bf16.xpose.msra.mxu0 %v1765
        %1774 = vmatpush.bf16.xpose.msra.mxu0 %v1763
        %1775 = vmatpush.bf16.xpose.msra.mxu0 %v1761
        %1776 = vmatpush.bf16.xpose.msra.mxu0 %v1759
        %1777 = vmatpush.bf16.xpose.msra.mxu0 %v1757
        %1778 = vmatpush.bf16.xpose.msra.mxu0 %v1755
        %1779 = vmatmul.bf16.gmra.mxu0 %v739
        %v1780 = vpop.f32.mrf.mxu0
        %v1781 = vadd.f32 %v441, %v1780
        %v1782 = vpop.f32.mrf.mxu0
        %v1783 = vadd.f32 %v443, %v1782
        %1784 = vmatmul.bf16.gmra.mxu0 %v741
        %v1785 = vpop.f32.mrf.mxu0
        %v1786 = vadd.f32 %v445, %v1785
        %v1787 = vpop.f32.mrf.mxu0
        %v1788 = vadd.f32 %v447, %v1787
        %1789 = vmatmul.bf16.gmra.mxu0 %v743
        %v1790 = vpop.f32.mrf.mxu0
        %v1791 = vadd.f32 %v449, %v1790
        %v1792 = vpop.f32.mrf.mxu0
        %v1793 = vadd.f32 %v451, %v1792
        %1794 = vmatmul.bf16.gmra.mxu0 %v745
        %v1795 = vpop.f32.mrf.mxu0
        %v1796 = vadd.f32 %v453, %v1795
        %v1797 = vpop.f32.mrf.mxu0
        %v1798 = vadd.f32 %v455, %v1797
        %1799 = vdwg.mxu0
        %1800 = vmatpush.bf16.xpose.msra.mxu0 %v1770
        %1801 = vmatpush.bf16.xpose.msra.mxu0 %v1768
        %1802 = vmatpush.bf16.xpose.msra.mxu0 %v1766
        %1803 = vmatpush.bf16.xpose.msra.mxu0 %v1764
        %1804 = vmatpush.bf16.xpose.msra.mxu0 %v1762
        %1805 = vmatpush.bf16.xpose.msra.mxu0 %v1760
        %1806 = vmatpush.bf16.xpose.msra.mxu0 %v1758
        %1807 = vmatpush.bf16.xpose.msra.mxu0 %v1756
        %1808 = vmatmul.bf16.gmra.mxu0 %v740
        %v1809 = vpop.f32.mrf.mxu0
        %v1810 = vadd.f32 %v1781, %v1809
        %v1811 = vpop.f32.mrf.mxu0
        %v1812 = vadd.f32 %v1783, %v1811
        %1813 = vmatmul.bf16.gmra.mxu0 %v742
        %v1814 = vpop.f32.mrf.mxu0
        %v1815 = vadd.f32 %v1786, %v1814
        %v1816 = vpop.f32.mrf.mxu0
        %v1817 = vadd.f32 %v1788, %v1816
        %1818 = vmatmul.bf16.gmra.mxu0 %v744
        %v1819 = vpop.f32.mrf.mxu0
        %v1820 = vadd.f32 %v1791, %v1819
        %v1821 = vpop.f32.mrf.mxu0
        %v1822 = vadd.f32 %v1793, %v1821
        %1823 = vmatmul.bf16.gmra.mxu0 %v746
        %v1824 = vpop.f32.mrf.mxu0
        %v1825 = vadd.f32 %v1796, %v1824
        %v1826 = vpop.f32.mrf.mxu0
        %v1827 = vadd.f32 %v1798, %v1826
        %1828 = vdwg.mxu0
        %v1829 = vpack.c.bf16 %v1320, %v1318
        %v1830 = vpack.c.bf16 %v1812, %v1810
        %v1831 = vpack.c.bf16 %v1325, %v1323
        %v1832 = vpack.c.bf16 %v1817, %v1815
        %v1833 = vpack.c.bf16 %v1330, %v1328
        %v1834 = vpack.c.bf16 %v1822, %v1820
        %v1835 = vpack.c.bf16 %v1335, %v1333
        %v1836 = vpack.c.bf16 %v1827, %v1825
        %s1837 = scalar_lea.vmem %s1, 64
        %v1838 = vld [vmem:[%s1837] sm:$0xf]
        %v1839 = vld [vmem:[%s1837 + $0x4] sm:$0xf]
        %v1840 = vld [vmem:[%s1837 + $0x8] sm:$0xf]
        %v1841 = vld [vmem:[%s1837 + $0xc] sm:$0xf]
        %v1842 = vld [vmem:[%s1837 + $0x10] sm:$0xf]
        %v1843 = vld [vmem:[%s1837 + $0x14] sm:$0xf]
        %v1844 = vld [vmem:[%s1837 + $0x18] sm:$0xf]
        %v1845 = vld [vmem:[%s1837 + $0x1c] sm:$0xf]
        %v1846 = vld [vmem:[%s1837 + $0x20] sm:$0xf]
        %v1847 = vld [vmem:[%s1837 + $0x24] sm:$0xf]
        %v1848 = vld [vmem:[%s1837 + $0x28] sm:$0xf]
        %v1849 = vld [vmem:[%s1837 + $0x2c] sm:$0xf]
        %v1850 = vld [vmem:[%s1837 + $0x30] sm:$0xf]
        %v1851 = vld [vmem:[%s1837 + $0x34] sm:$0xf]
        %v1852 = vld [vmem:[%s1837 + $0x38] sm:$0xf]
        %v1853 = vld [vmem:[%s1837 + $0x3c] sm:$0xf]
        %s1854 = scalar_lea.vmem %s2, 128
        %v1855 = vld [vmem:[%s1854] sm:$0xff]
        %v1856 = vld [vmem:[%s1854 + $0x8] sm:$0xff]
        %v1857 = vld [vmem:[%s1854 + $0x10] sm:$0xff]
        %v1858 = vld [vmem:[%s1854 + $0x18] sm:$0xff]
        %v1859 = vld [vmem:[%s1854 + $0x20] sm:$0xff]
        %v1860 = vld [vmem:[%s1854 + $0x28] sm:$0xff]
        %v1861 = vld [vmem:[%s1854 + $0x30] sm:$0xff]
        %v1862 = vld [vmem:[%s1854 + $0x38] sm:$0xff]
        %v1863 = vld [vmem:[%s1854 + $0x40] sm:$0xff]
        %v1864 = vld [vmem:[%s1854 + $0x48] sm:$0xff]
        %v1865 = vld [vmem:[%s1854 + $0x50] sm:$0xff]
        %v1866 = vld [vmem:[%s1854 + $0x58] sm:$0xff]
        %v1867 = vld [vmem:[%s1854 + $0x60] sm:$0xff]
        %v1868 = vld [vmem:[%s1854 + $0x68] sm:$0xff]
        %v1869 = vld [vmem:[%s1854 + $0x70] sm:$0xff]
        %v1870 = vld [vmem:[%s1854 + $0x78] sm:$0xff]
        %1872 = vset.pattern.permute.xlu0 0
        %1873 = vperm.xlu0 %1872, %v1855
        %v1874 = vpop.permute.xlu0 %1873
        %1877 = vset.pattern.permute.xlu0 0
        %1878 = vperm.xlu0 %1877, %v1856
        %v1879 = vpop.permute.xlu0 %1878
        %1882 = vset.pattern.permute.xlu0 0
        %1883 = vperm.xlu0 %1882, %v1857
        %v1884 = vpop.permute.xlu0 %1883
        %1887 = vset.pattern.permute.xlu0 0
        %1888 = vperm.xlu0 %1887, %v1858
        %v1889 = vpop.permute.xlu0 %1888
        %1892 = vset.pattern.permute.xlu0 0
        %1893 = vperm.xlu0 %1892, %v1859
        %v1894 = vpop.permute.xlu0 %1893
        %1897 = vset.pattern.permute.xlu0 0
        %1898 = vperm.xlu0 %1897, %v1860
        %v1899 = vpop.permute.xlu0 %1898
        %1902 = vset.pattern.permute.xlu0 0
        %1903 = vperm.xlu0 %1902, %v1861
        %v1904 = vpop.permute.xlu0 %1903
        %1907 = vset.pattern.permute.xlu0 0
        %1908 = vperm.xlu0 %1907, %v1862
        %v1909 = vpop.permute.xlu0 %1908
        %1912 = vset.pattern.permute.xlu0 0
        %1913 = vperm.xlu0 %1912, %v1863
        %v1914 = vpop.permute.xlu0 %1913
        %1917 = vset.pattern.permute.xlu0 0
        %1918 = vperm.xlu0 %1917, %v1864
        %v1919 = vpop.permute.xlu0 %1918
        %1922 = vset.pattern.permute.xlu0 0
        %1923 = vperm.xlu0 %1922, %v1865
        %v1924 = vpop.permute.xlu0 %1923
        %1927 = vset.pattern.permute.xlu0 0
        %1928 = vperm.xlu0 %1927, %v1866
        %v1929 = vpop.permute.xlu0 %1928
        %1932 = vset.pattern.permute.xlu0 0
        %1933 = vperm.xlu0 %1932, %v1867
        %v1934 = vpop.permute.xlu0 %1933
        %1937 = vset.pattern.permute.xlu0 0
        %1938 = vperm.xlu0 %1937, %v1868
        %v1939 = vpop.permute.xlu0 %1938
        %1942 = vset.pattern.permute.xlu0 0
        %1943 = vperm.xlu0 %1942, %v1869
        %v1944 = vpop.permute.xlu0 %1943
        %1947 = vset.pattern.permute.xlu0 0
        %1948 = vperm.xlu0 %1947, %v1870
        %v1949 = vpop.permute.xlu0 %1948
        %v1967 = vunpack.c.l.b16 %v1838
        %v1968 = vunpack.c.l.b16 %v1839
        %v1969 = vunpack.c.l.b16 %v1840
        %v1970 = vunpack.c.l.b16 %v1841
        %v1971 = vunpack.c.l.b16 %v1842
        %v1972 = vunpack.c.l.b16 %v1843
        %v1973 = vunpack.c.l.b16 %v1844
        %v1974 = vunpack.c.l.b16 %v1845
        %v1975 = vunpack.c.l.b16 %v1846
        %v1976 = vunpack.c.l.b16 %v1847
        %v1977 = vunpack.c.l.b16 %v1848
        %v1978 = vunpack.c.l.b16 %v1849
        %v1979 = vunpack.c.l.b16 %v1850
        %v1980 = vunpack.c.l.b16 %v1851
        %v1981 = vunpack.c.l.b16 %v1852
        %v1982 = vunpack.c.l.b16 %v1853
        %v1983 = vpack.c.b16 %v1968, %v1967
        %v1984 = vpack.c.b16 %v1970, %v1969
        %v1985 = vpack.c.b16 %v1972, %v1971
        %v1986 = vpack.c.b16 %v1974, %v1973
        %v1987 = vpack.c.b16 %v1976, %v1975
        %v1988 = vpack.c.b16 %v1978, %v1977
        %v1989 = vpack.c.b16 %v1980, %v1979
        %v1990 = vpack.c.b16 %v1982, %v1981
        %v1992 = vsel %vm616, %v1983, 0
        %v1995 = vsel %vm616, %v1984, 0
        %v1998 = vsel %vm616, %v1985, 0
        %v2001 = vsel %vm616, %v1986, 0
        %v2004 = vsel %vm616, %v1987, 0
        %v2007 = vsel %vm616, %v1988, 0
        %v2010 = vsel %vm616, %v1989, 0
        %v2013 = vsel %vm616, %v1990, 0
        %2015 = vmatpush.bf16.msra.mxu0 0
        %2016 = vmatpush.bf16.msra.mxu0 0
        %2017 = vmatpush.bf16.msra.mxu0 0
        %2018 = vmatpush.bf16.msra.mxu0 0
        %2019 = vmatpush.bf16.msra.mxu0 %v1835
        %2020 = vmatpush.bf16.msra.mxu0 %v1833
        %2021 = vmatpush.bf16.msra.mxu0 %v1831
        %2022 = vmatpush.bf16.msra.mxu0 %v1829
        %2023 = vmatmul.bf16.gmra.mxu0 %v1992
        %v2024 = vpop.f32.mrf.mxu0
        %v2025 = vadd.f32 %v1874, %v2024
        %v2026 = vpop.f32.mrf.mxu0
        %v2027 = vadd.f32 %v1879, %v2026
        %2028 = vmatmul.bf16.gmra.mxu0 %v1995
        %v2029 = vpop.f32.mrf.mxu0
        %v2030 = vadd.f32 %v1884, %v2029
        %v2031 = vpop.f32.mrf.mxu0
        %v2032 = vadd.f32 %v1889, %v2031
        %2033 = vmatmul.bf16.gmra.mxu0 %v1998
        %v2034 = vpop.f32.mrf.mxu0
        %v2035 = vadd.f32 %v1894, %v2034
        %v2036 = vpop.f32.mrf.mxu0
        %v2037 = vadd.f32 %v1899, %v2036
        %2038 = vmatmul.bf16.gmra.mxu0 %v2001
        %v2039 = vpop.f32.mrf.mxu0
        %v2040 = vadd.f32 %v1904, %v2039
        %v2041 = vpop.f32.mrf.mxu0
        %v2042 = vadd.f32 %v1909, %v2041
        %2043 = vmatmul.bf16.gmra.mxu0 %v2004
        %v2044 = vpop.f32.mrf.mxu0
        %v2045 = vadd.f32 %v1914, %v2044
        %v2046 = vpop.f32.mrf.mxu0
        %v2047 = vadd.f32 %v1919, %v2046
        %2048 = vmatmul.bf16.gmra.mxu0 %v2007
        %v2049 = vpop.f32.mrf.mxu0
        %v2050 = vadd.f32 %v1924, %v2049
        %v2051 = vpop.f32.mrf.mxu0
        %v2052 = vadd.f32 %v1929, %v2051
        %2053 = vmatmul.bf16.gmra.mxu0 %v2010
        %v2054 = vpop.f32.mrf.mxu0
        %v2055 = vadd.f32 %v1934, %v2054
        %v2056 = vpop.f32.mrf.mxu0
        %v2057 = vadd.f32 %v1939, %v2056
        %2058 = vmatmul.bf16.gmra.mxu0 %v2013
        %v2059 = vpop.f32.mrf.mxu0
        %v2060 = vadd.f32 %v1944, %v2059
        %v2061 = vpop.f32.mrf.mxu0
        %v2062 = vadd.f32 %v1949, %v2061
        %2063 = vdwg.mxu0
        %2064 = vmatpush.bf16.msra.mxu0 0
        %2065 = vmatpush.bf16.msra.mxu0 0
        %2066 = vmatpush.bf16.msra.mxu0 0
        %2067 = vmatpush.bf16.msra.mxu0 0
        %2068 = vmatpush.bf16.msra.mxu0 %v1836
        %2069 = vmatpush.bf16.msra.mxu0 %v1834
        %2070 = vmatpush.bf16.msra.mxu0 %v1832
        %2071 = vmatpush.bf16.msra.mxu0 %v1830
        %2072 = vmatmul.bf16.gmra.mxu0 %v1992
        %v2073 = vpop.f32.mrf.mxu0
        %v2074 = vadd.f32 %v1874, %v2073
        %v2075 = vpop.f32.mrf.mxu0
        %v2076 = vadd.f32 %v1879, %v2075
        %2077 = vmatmul.bf16.gmra.mxu0 %v1995
        %v2078 = vpop.f32.mrf.mxu0
        %v2079 = vadd.f32 %v1884, %v2078
        %v2080 = vpop.f32.mrf.mxu0
        %v2081 = vadd.f32 %v1889, %v2080
        %2082 = vmatmul.bf16.gmra.mxu0 %v1998
        %v2083 = vpop.f32.mrf.mxu0
        %v2084 = vadd.f32 %v1894, %v2083
        %v2085 = vpop.f32.mrf.mxu0
        %v2086 = vadd.f32 %v1899, %v2085
        %2087 = vmatmul.bf16.gmra.mxu0 %v2001
        %v2088 = vpop.f32.mrf.mxu0
        %v2089 = vadd.f32 %v1904, %v2088
        %v2090 = vpop.f32.mrf.mxu0
        %v2091 = vadd.f32 %v1909, %v2090
        %2092 = vmatmul.bf16.gmra.mxu0 %v2004
        %v2093 = vpop.f32.mrf.mxu0
        %v2094 = vadd.f32 %v1914, %v2093
        %v2095 = vpop.f32.mrf.mxu0
        %v2096 = vadd.f32 %v1919, %v2095
        %2097 = vmatmul.bf16.gmra.mxu0 %v2007
        %v2098 = vpop.f32.mrf.mxu0
        %v2099 = vadd.f32 %v1924, %v2098
        %v2100 = vpop.f32.mrf.mxu0
        %v2101 = vadd.f32 %v1929, %v2100
        %2102 = vmatmul.bf16.gmra.mxu0 %v2010
        %v2103 = vpop.f32.mrf.mxu0
        %v2104 = vadd.f32 %v1934, %v2103
        %v2105 = vpop.f32.mrf.mxu0
        %v2106 = vadd.f32 %v1939, %v2105
        %2107 = vmatmul.bf16.gmra.mxu0 %v2013
        %v2108 = vpop.f32.mrf.mxu0
        %v2109 = vadd.f32 %v1944, %v2108
        %v2110 = vpop.f32.mrf.mxu0
        %v2111 = vadd.f32 %v1949, %v2110
        %2112 = vdwg.mxu0
        %v2113 = vpack.c.bf16 %v2047, %v2045
        %v2114 = vpack.c.bf16 %v2096, %v2094
        %v2115 = vpack.c.bf16 %v2052, %v2050
        %v2116 = vpack.c.bf16 %v2101, %v2099
        %v2117 = vpack.c.bf16 %v2057, %v2055
        %v2118 = vpack.c.bf16 %v2106, %v2104
        %v2119 = vpack.c.bf16 %v2062, %v2060
        %v2120 = vpack.c.bf16 %v2111, %v2109
        %s2121 = sld [smem:[#allocation4 + $0x1]]
        %2122 = vxpose.xlu0.b32.start [1/16] %v2025, 128
        %2123 = vxpose.xlu0.b32.cont [2/16] %v2027, 128
        %2124 = vxpose.xlu0.b32.cont [3/16] %v2030, 128
        %2125 = vxpose.xlu0.b32.cont [4/16] %v2032, 128
        %2126 = vxpose.xlu0.b32.cont [5/16] %v2035, 128
        %2127 = vxpose.xlu0.b32.cont [6/16] %v2037, 128
        %2128 = vxpose.xlu0.b32.cont [7/16] %v2040, 128
        %2129 = vxpose.xlu0.b32.cont [8/16] %v2042, 128
        %2130 = vxpose.xlu0.b32.cont [9/16] 0.0, 128
        %2131 = vxpose.xlu0.b32.cont [10/16] 0.0, 128
        %2132 = vxpose.xlu0.b32.cont [11/16] 0.0, 128
        %2133 = vxpose.xlu0.b32.cont [12/16] 0.0, 128
        %2134 = vxpose.xlu0.b32.cont [13/16] 0.0, 128
        %2135 = vxpose.xlu0.b32.cont [14/16] 0.0, 128
        %2136 = vxpose.xlu0.b32.cont [15/16] 0.0, 128
        %2137 = vxpose.xlu0.b32.end [16/16] 0.0, 128
        %v2138 = vpop.trf.xlu0
        %v2139 = vpop.trf.xlu0
        %v2140 = vpop.trf.xlu0
        %v2141 = vpop.trf.xlu0
        %v2142 = vpop.trf.xlu0
        %v2143 = vpop.trf.xlu0
        %v2144 = vpop.trf.xlu0
        %v2145 = vpop.trf.xlu0
        %v2146 = vpop.trf.xlu0
        %v2147 = vpop.trf.xlu0
        %v2148 = vpop.trf.xlu0
        %v2149 = vpop.trf.xlu0
        %v2150 = vpop.trf.xlu0
        %v2151 = vpop.trf.xlu0
        %v2152 = vpop.trf.xlu0
        %v2153 = vpop.trf.xlu0
        %2154 = vxpose.xlu0.b32.start [1/16] %v2074, 128
        %2155 = vxpose.xlu0.b32.cont [2/16] %v2076, 128
        %2156 = vxpose.xlu0.b32.cont [3/16] %v2079, 128
        %2157 = vxpose.xlu0.b32.cont [4/16] %v2081, 128
        %2158 = vxpose.xlu0.b32.cont [5/16] %v2084, 128
        %2159 = vxpose.xlu0.b32.cont [6/16] %v2086, 128
        %2160 = vxpose.xlu0.b32.cont [7/16] %v2089, 128
        %2161 = vxpose.xlu0.b32.cont [8/16] %v2091, 128
        %2162 = vxpose.xlu0.b32.cont [9/16] 0.0, 128
        %2163 = vxpose.xlu0.b32.cont [10/16] 0.0, 128
        %2164 = vxpose.xlu0.b32.cont [11/16] 0.0, 128
        %2165 = vxpose.xlu0.b32.cont [12/16] 0.0, 128
        %2166 = vxpose.xlu0.b32.cont [13/16] 0.0, 128
        %2167 = vxpose.xlu0.b32.cont [14/16] 0.0, 128
        %2168 = vxpose.xlu0.b32.cont [15/16] 0.0, 128
        %2169 = vxpose.xlu0.b32.end [16/16] 0.0, 128
        %v2170 = vpop.trf.xlu0
        %v2171 = vpop.trf.xlu0
        %v2172 = vpop.trf.xlu0
        %v2173 = vpop.trf.xlu0
        %v2174 = vpop.trf.xlu0
        %v2175 = vpop.trf.xlu0
        %v2176 = vpop.trf.xlu0
        %v2177 = vpop.trf.xlu0
        %v2178 = vpop.trf.xlu0
        %v2179 = vpop.trf.xlu0
        %v2180 = vpop.trf.xlu0
        %v2181 = vpop.trf.xlu0
        %v2182 = vpop.trf.xlu0
        %v2183 = vpop.trf.xlu0
        %v2184 = vpop.trf.xlu0
        %v2185 = vpop.trf.xlu0
        %v2186 = vpack.c.bf16 %v2138, %v2138
        %v2187 = vpack.c.bf16 %v2139, %v2139
        %v2188 = vpack.c.bf16 %v2140, %v2140
        %v2189 = vpack.c.bf16 %v2141, %v2141
        %v2190 = vpack.c.bf16 %v2142, %v2142
        %v2191 = vpack.c.bf16 %v2143, %v2143
        %v2192 = vpack.c.bf16 %v2144, %v2144
        %v2193 = vpack.c.bf16 %v2145, %v2145
        %v2194 = vpack.c.bf16 %v2146, %v2146
        %v2195 = vpack.c.bf16 %v2147, %v2147
        %v2196 = vpack.c.bf16 %v2148, %v2148
        %v2197 = vpack.c.bf16 %v2149, %v2149
        %v2198 = vpack.c.bf16 %v2150, %v2150
        %v2199 = vpack.c.bf16 %v2151, %v2151
        %v2200 = vpack.c.bf16 %v2152, %v2152
        %v2201 = vpack.c.bf16 %v2153, %v2153
        %v2202 = vpack.c.bf16 %v2170, %v2170
        %v2203 = vpack.c.bf16 %v2171, %v2171
        %v2204 = vpack.c.bf16 %v2172, %v2172
        %v2205 = vpack.c.bf16 %v2173, %v2173
        %v2206 = vpack.c.bf16 %v2174, %v2174
        %v2207 = vpack.c.bf16 %v2175, %v2175
        %v2208 = vpack.c.bf16 %v2176, %v2176
        %v2209 = vpack.c.bf16 %v2177, %v2177
        %v2210 = vpack.c.bf16 %v2178, %v2178
        %v2211 = vpack.c.bf16 %v2179, %v2179
        %v2212 = vpack.c.bf16 %v2180, %v2180
        %v2213 = vpack.c.bf16 %v2181, %v2181
        %v2214 = vpack.c.bf16 %v2182, %v2182
        %v2215 = vpack.c.bf16 %v2183, %v2183
        %v2216 = vpack.c.bf16 %v2184, %v2184
        %v2217 = vpack.c.bf16 %v2185, %v2185
        %v2234 = vunpack.c.l.b16 %v2186
        %v2235 = vunpack.c.l.b16 %v2187
        %v2236 = vunpack.c.l.b16 %v2188
        %v2237 = vunpack.c.l.b16 %v2189
        %v2238 = vunpack.c.l.b16 %v2190
        %v2239 = vunpack.c.l.b16 %v2191
        %v2240 = vunpack.c.l.b16 %v2192
        %v2241 = vunpack.c.l.b16 %v2193
        %v2242 = vunpack.c.l.b16 %v2194
        %v2243 = vunpack.c.l.b16 %v2195
        %v2244 = vunpack.c.l.b16 %v2196
        %v2245 = vunpack.c.l.b16 %v2197
        %v2246 = vunpack.c.l.b16 %v2198
        %v2247 = vunpack.c.l.b16 %v2199
        %v2248 = vunpack.c.l.b16 %v2200
        %v2249 = vunpack.c.l.b16 %v2201
        %v2250 = vpack.c.b16 %v2235, %v2234
        %v2251 = vpack.c.b16 %v2237, %v2236
        %v2252 = vpack.c.b16 %v2239, %v2238
        %v2253 = vpack.c.b16 %v2241, %v2240
        %v2254 = vpack.c.b16 %v2243, %v2242
        %v2255 = vpack.c.b16 %v2245, %v2244
        %v2256 = vpack.c.b16 %v2247, %v2246
        %v2257 = vpack.c.b16 %v2249, %v2248
        %v2259 = vsel %vm616, %v2250, 0
        %v2262 = vsel %vm616, %v2251, 0
        %v2265 = vsel %vm616, %v2252, 0
        %v2268 = vsel %vm616, %v2253, 0
        %v2271 = vsel %vm616, %v2254, 0
        %v2274 = vsel %vm616, %v2255, 0
        %v2277 = vsel %vm616, %v2256, 0
        %v2280 = vsel %vm616, %v2257, 0
        %2282 = vmatpush.bf16.msra.mxu0 0
        %2283 = vmatpush.bf16.msra.mxu0 0
        %2284 = vmatpush.bf16.msra.mxu0 0
        %2285 = vmatpush.bf16.msra.mxu0 0
        %2286 = vmatpush.bf16.msra.mxu0 %v1835
        %2287 = vmatpush.bf16.msra.mxu0 %v1833
        %2288 = vmatpush.bf16.msra.mxu0 %v1831
        %2289 = vmatpush.bf16.msra.mxu0 %v1829
        %2290 = vmatmul.bf16.gmra.mxu0 %v2259
        %v2291 = vpop.f32.mrf.mxu0
        %v2292 = vadd.f32 0.0, %v2291
        %v2293 = vpop.f32.mrf.mxu0
        %v2294 = vadd.f32 0.0, %v2293
        %2295 = vmatmul.bf16.gmra.mxu0 %v2262
        %v2296 = vpop.f32.mrf.mxu0
        %v2297 = vadd.f32 0.0, %v2296
        %v2298 = vpop.f32.mrf.mxu0
        %v2299 = vadd.f32 0.0, %v2298
        %2300 = vmatmul.bf16.gmra.mxu0 %v2265
        %v2301 = vpop.f32.mrf.mxu0
        %v2302 = vadd.f32 0.0, %v2301
        %v2303 = vpop.f32.mrf.mxu0
        %v2304 = vadd.f32 0.0, %v2303
        %2305 = vmatmul.bf16.gmra.mxu0 %v2268
        %v2306 = vpop.f32.mrf.mxu0
        %v2307 = vadd.f32 0.0, %v2306
        %v2308 = vpop.f32.mrf.mxu0
        %v2309 = vadd.f32 0.0, %v2308
        %2310 = vmatmul.bf16.gmra.mxu0 %v2271
        %v2311 = vpop.f32.mrf.mxu0
        %v2312 = vadd.f32 0.0, %v2311
        %v2313 = vpop.f32.mrf.mxu0
        %v2314 = vadd.f32 0.0, %v2313
        %2315 = vmatmul.bf16.gmra.mxu0 %v2274
        %v2316 = vpop.f32.mrf.mxu0
        %v2317 = vadd.f32 0.0, %v2316
        %v2318 = vpop.f32.mrf.mxu0
        %v2319 = vadd.f32 0.0, %v2318
        %2320 = vmatmul.bf16.gmra.mxu0 %v2277
        %v2321 = vpop.f32.mrf.mxu0
        %v2322 = vadd.f32 0.0, %v2321
        %v2323 = vpop.f32.mrf.mxu0
        %v2324 = vadd.f32 0.0, %v2323
        %2325 = vmatmul.bf16.gmra.mxu0 %v2280
        %v2326 = vpop.f32.mrf.mxu0
        %v2327 = vadd.f32 0.0, %v2326
        %v2328 = vpop.f32.mrf.mxu0
        %v2329 = vadd.f32 0.0, %v2328
        %2330 = vdwg.mxu0
        %2331 = vmatpush.bf16.msra.mxu0 0
        %2332 = vmatpush.bf16.msra.mxu0 0
        %2333 = vmatpush.bf16.msra.mxu0 0
        %2334 = vmatpush.bf16.msra.mxu0 0
        %2335 = vmatpush.bf16.msra.mxu0 %v1836
        %2336 = vmatpush.bf16.msra.mxu0 %v1834
        %2337 = vmatpush.bf16.msra.mxu0 %v1832
        %2338 = vmatpush.bf16.msra.mxu0 %v1830
        %2339 = vmatmul.bf16.gmra.mxu0 %v2259
        %v2340 = vpop.f32.mrf.mxu0
        %v2341 = vadd.f32 0.0, %v2340
        %v2342 = vpop.f32.mrf.mxu0
        %v2343 = vadd.f32 0.0, %v2342
        %2344 = vmatmul.bf16.gmra.mxu0 %v2262
        %v2345 = vpop.f32.mrf.mxu0
        %v2346 = vadd.f32 0.0, %v2345
        %v2347 = vpop.f32.mrf.mxu0
        %v2348 = vadd.f32 0.0, %v2347
        %2349 = vmatmul.bf16.gmra.mxu0 %v2265
        %v2350 = vpop.f32.mrf.mxu0
        %v2351 = vadd.f32 0.0, %v2350
        %v2352 = vpop.f32.mrf.mxu0
        %v2353 = vadd.f32 0.0, %v2352
        %2354 = vmatmul.bf16.gmra.mxu0 %v2268
        %v2355 = vpop.f32.mrf.mxu0
        %v2356 = vadd.f32 0.0, %v2355
        %v2357 = vpop.f32.mrf.mxu0
        %v2358 = vadd.f32 0.0, %v2357
        %2359 = vmatmul.bf16.gmra.mxu0 %v2271
        %v2360 = vpop.f32.mrf.mxu0
        %v2361 = vadd.f32 0.0, %v2360
        %v2362 = vpop.f32.mrf.mxu0
        %v2363 = vadd.f32 0.0, %v2362
        %2364 = vmatmul.bf16.gmra.mxu0 %v2274
        %v2365 = vpop.f32.mrf.mxu0
        %v2366 = vadd.f32 0.0, %v2365
        %v2367 = vpop.f32.mrf.mxu0
        %v2368 = vadd.f32 0.0, %v2367
        %2369 = vmatmul.bf16.gmra.mxu0 %v2277
        %v2370 = vpop.f32.mrf.mxu0
        %v2371 = vadd.f32 0.0, %v2370
        %v2372 = vpop.f32.mrf.mxu0
        %v2373 = vadd.f32 0.0, %v2372
        %2374 = vmatmul.bf16.gmra.mxu0 %v2280
        %v2375 = vpop.f32.mrf.mxu0
        %v2376 = vadd.f32 0.0, %v2375
        %v2377 = vpop.f32.mrf.mxu0
        %v2378 = vadd.f32 0.0, %v2377
        %2379 = vdwg.mxu0
        %v2380 = vmax.f32 %v2292, %v2341
        %2381 = vmax.xlane.f32.xlu0 %v2380
        %v2382 = vpop.xlane.xlu0 %2381
        %v2383 = vmax.f32 %v2294, %v2343
        %2384 = vmax.xlane.f32.xlu0 %v2383
        %v2385 = vpop.xlane.xlu0 %2384
        %v2386 = vmax.f32 %v2297, %v2346
        %2387 = vmax.xlane.f32.xlu0 %v2386
        %v2388 = vpop.xlane.xlu0 %2387
        %v2389 = vmax.f32 %v2299, %v2348
        %2390 = vmax.xlane.f32.xlu0 %v2389
        %v2391 = vpop.xlane.xlu0 %2390
        %v2392 = vmax.f32 %v2302, %v2351
        %2393 = vmax.xlane.f32.xlu0 %v2392
        %v2394 = vpop.xlane.xlu0 %2393
        %v2395 = vmax.f32 %v2304, %v2353
        %2396 = vmax.xlane.f32.xlu0 %v2395
        %v2397 = vpop.xlane.xlu0 %2396
        %v2398 = vmax.f32 %v2307, %v2356
        %2399 = vmax.xlane.f32.xlu0 %v2398
        %v2400 = vpop.xlane.xlu0 %2399
        %v2401 = vmax.f32 %v2309, %v2358
        %2402 = vmax.xlane.f32.xlu0 %v2401
        %v2403 = vpop.xlane.xlu0 %2402
        %v2404 = vmax.f32 %v2312, %v2361
        %2405 = vmax.xlane.f32.xlu0 %v2404
        %v2406 = vpop.xlane.xlu0 %2405
        %v2407 = vmax.f32 %v2314, %v2363
        %2408 = vmax.xlane.f32.xlu0 %v2407
        %v2409 = vpop.xlane.xlu0 %2408
        %v2410 = vmax.f32 %v2317, %v2366
        %2411 = vmax.xlane.f32.xlu0 %v2410
        %v2412 = vpop.xlane.xlu0 %2411
        %v2413 = vmax.f32 %v2319, %v2368
        %2414 = vmax.xlane.f32.xlu0 %v2413
        %v2415 = vpop.xlane.xlu0 %2414
        %v2416 = vmax.f32 %v2322, %v2371
        %2417 = vmax.xlane.f32.xlu0 %v2416
        %v2418 = vpop.xlane.xlu0 %2417
        %v2419 = vmax.f32 %v2324, %v2373
        %2420 = vmax.xlane.f32.xlu0 %v2419
        %v2421 = vpop.xlane.xlu0 %2420
        %v2422 = vmax.f32 %v2327, %v2376
        %2423 = vmax.xlane.f32.xlu0 %v2422
        %v2424 = vpop.xlane.xlu0 %2423
        %v2425 = vmax.f32 %v2329, %v2378
        %2426 = vmax.xlane.f32.xlu0 %v2425
        %v2427 = vpop.xlane.xlu0 %2426
        %v2428 = vsub.f32 %v2292, %v2382
        %v2429 = vsub.f32 %v2341, %v2382
        %v2430 = vsub.f32 %v2294, %v2385
        %v2431 = vsub.f32 %v2343, %v2385
        %v2432 = vsub.f32 %v2297, %v2388
        %v2433 = vsub.f32 %v2346, %v2388
        %v2434 = vsub.f32 %v2299, %v2391
        %v2435 = vsub.f32 %v2348, %v2391
        %v2436 = vsub.f32 %v2302, %v2394
        %v2437 = vsub.f32 %v2351, %v2394
        %v2438 = vsub.f32 %v2304, %v2397
        %v2439 = vsub.f32 %v2353, %v2397
        %v2440 = vsub.f32 %v2307, %v2400
        %v2441 = vsub.f32 %v2356, %v2400
        %v2442 = vsub.f32 %v2309, %v2403
        %v2443 = vsub.f32 %v2358, %v2403
        %v2444 = vsub.f32 %v2312, %v2406
        %v2445 = vsub.f32 %v2361, %v2406
        %v2446 = vsub.f32 %v2314, %v2409
        %v2447 = vsub.f32 %v2363, %v2409
        %v2448 = vsub.f32 %v2317, %v2412
        %v2449 = vsub.f32 %v2366, %v2412
        %v2450 = vsub.f32 %v2319, %v2415
        %v2451 = vsub.f32 %v2368, %v2415
        %v2452 = vsub.f32 %v2322, %v2418
        %v2453 = vsub.f32 %v2371, %v2418
        %v2454 = vsub.f32 %v2324, %v2421
        %v2455 = vsub.f32 %v2373, %v2421
        %v2456 = vsub.f32 %v2327, %v2424
        %v2457 = vsub.f32 %v2376, %v2424
        %v2458 = vsub.f32 %v2329, %v2427
        %v2459 = vsub.f32 %v2378, %v2427
        %v2460 = vmul.f32 %v2428, 1.442695
        %v2461 = vpow.pop %v2460
        %v2462 = vmul.f32 %v2429, 1.442695
        %v2463 = vpow.pop %v2462
        %v2464 = vmul.f32 %v2430, 1.442695
        %v2465 = vpow.pop %v2464
        %v2466 = vmul.f32 %v2431, 1.442695
        %v2467 = vpow.pop %v2466
        %v2468 = vmul.f32 %v2432, 1.442695
        %v2469 = vpow.pop %v2468
        %v2470 = vmul.f32 %v2433, 1.442695
        %v2471 = vpow.pop %v2470
        %v2472 = vmul.f32 %v2434, 1.442695
        %v2473 = vpow.pop %v2472
        %v2474 = vmul.f32 %v2435, 1.442695
        %v2475 = vpow.pop %v2474
        %v2476 = vmul.f32 %v2436, 1.442695
        %v2477 = vpow.pop %v2476
        %v2478 = vmul.f32 %v2437, 1.442695
        %v2479 = vpow.pop %v2478
        %v2480 = vmul.f32 %v2438, 1.442695
        %v2481 = vpow.pop %v2480
        %v2482 = vmul.f32 %v2439, 1.442695
        %v2483 = vpow.pop %v2482
        %v2484 = vmul.f32 %v2440, 1.442695
        %v2485 = vpow.pop %v2484
        %v2486 = vmul.f32 %v2441, 1.442695
        %v2487 = vpow.pop %v2486
        %v2488 = vmul.f32 %v2442, 1.442695
        %v2489 = vpow.pop %v2488
        %v2490 = vmul.f32 %v2443, 1.442695
        %v2491 = vpow.pop %v2490
        %v2492 = vmul.f32 %v2444, 1.442695
        %v2493 = vpow.pop %v2492
        %v2494 = vmul.f32 %v2445, 1.442695
        %v2495 = vpow.pop %v2494
        %v2496 = vmul.f32 %v2446, 1.442695
        %v2497 = vpow.pop %v2496
        %v2498 = vmul.f32 %v2447, 1.442695
        %v2499 = vpow.pop %v2498
        %v2500 = vmul.f32 %v2448, 1.442695
        %v2501 = vpow.pop %v2500
        %v2502 = vmul.f32 %v2449, 1.442695
        %v2503 = vpow.pop %v2502
        %v2504 = vmul.f32 %v2450, 1.442695
        %v2505 = vpow.pop %v2504
        %v2506 = vmul.f32 %v2451, 1.442695
        %v2507 = vpow.pop %v2506
        %v2508 = vmul.f32 %v2452, 1.442695
        %v2509 = vpow.pop %v2508
        %v2510 = vmul.f32 %v2453, 1.442695
        %v2511 = vpow.pop %v2510
        %v2512 = vmul.f32 %v2454, 1.442695
        %v2513 = vpow.pop %v2512
        %v2514 = vmul.f32 %v2455, 1.442695
        %v2515 = vpow.pop %v2514
        %v2516 = vmul.f32 %v2456, 1.442695
        %v2517 = vpow.pop %v2516
        %v2518 = vmul.f32 %v2457, 1.442695
        %v2519 = vpow.pop %v2518
        %v2520 = vmul.f32 %v2458, 1.442695
        %v2521 = vpow.pop %v2520
        %v2522 = vmul.f32 %v2459, 1.442695
        %v2523 = vpow.pop %v2522
        %v2524 = vadd.f32 %v2461, %v2463
        %2525 = vadd.xlane.f32.xlu0 %v2524
        %v2526 = vpop.xlane.xlu0 %2525
        %v2527 = vadd.f32 %v2465, %v2467
        %2528 = vadd.xlane.f32.xlu0 %v2527
        %v2529 = vpop.xlane.xlu0 %2528
        %v2530 = vadd.f32 %v2469, %v2471
        %2531 = vadd.xlane.f32.xlu0 %v2530
        %v2532 = vpop.xlane.xlu0 %2531
        %v2533 = vadd.f32 %v2473, %v2475
        %2534 = vadd.xlane.f32.xlu0 %v2533
        %v2535 = vpop.xlane.xlu0 %2534
        %v2536 = vadd.f32 %v2477, %v2479
        %2537 = vadd.xlane.f32.xlu0 %v2536
        %v2538 = vpop.xlane.xlu0 %2537
        %v2539 = vadd.f32 %v2481, %v2483
        %2540 = vadd.xlane.f32.xlu0 %v2539
        %v2541 = vpop.xlane.xlu0 %2540
        %v2542 = vadd.f32 %v2485, %v2487
        %2543 = vadd.xlane.f32.xlu0 %v2542
        %v2544 = vpop.xlane.xlu0 %2543
        %v2545 = vadd.f32 %v2489, %v2491
        %2546 = vadd.xlane.f32.xlu0 %v2545
        %v2547 = vpop.xlane.xlu0 %2546
        %v2548 = vadd.f32 %v2493, %v2495
        %2549 = vadd.xlane.f32.xlu0 %v2548
        %v2550 = vpop.xlane.xlu0 %2549
        %v2551 = vadd.f32 %v2497, %v2499
        %2552 = vadd.xlane.f32.xlu0 %v2551
        %v2553 = vpop.xlane.xlu0 %2552
        %v2554 = vadd.f32 %v2501, %v2503
        %2555 = vadd.xlane.f32.xlu0 %v2554
        %v2556 = vpop.xlane.xlu0 %2555
        %v2557 = vadd.f32 %v2505, %v2507
        %2558 = vadd.xlane.f32.xlu0 %v2557
        %v2559 = vpop.xlane.xlu0 %2558
        %v2560 = vadd.f32 %v2509, %v2511
        %2561 = vadd.xlane.f32.xlu0 %v2560
        %v2562 = vpop.xlane.xlu0 %2561
        %v2563 = vadd.f32 %v2513, %v2515
        %2564 = vadd.xlane.f32.xlu0 %v2563
        %v2565 = vpop.xlane.xlu0 %2564
        %v2566 = vadd.f32 %v2517, %v2519
        %2567 = vadd.xlane.f32.xlu0 %v2566
        %v2568 = vpop.xlane.xlu0 %2567
        %v2569 = vadd.f32 %v2521, %v2523
        %2570 = vadd.xlane.f32.xlu0 %v2569
        %v2571 = vpop.xlane.xlu0 %2570
        %v2572 = vrcp.pop %v2526
        %v2573 = vrcp.pop %v2529
        %v2574 = vrcp.pop %v2532
        %v2575 = vrcp.pop %v2535
        %v2576 = vrcp.pop %v2538
        %v2577 = vrcp.pop %v2541
        %v2578 = vrcp.pop %v2544
        %v2579 = vrcp.pop %v2547
        %v2580 = vrcp.pop %v2550
        %v2581 = vrcp.pop %v2553
        %v2582 = vrcp.pop %v2556
        %v2583 = vrcp.pop %v2559
        %v2584 = vrcp.pop %v2562
        %v2585 = vrcp.pop %v2565
        %v2586 = vrcp.pop %v2568
        %v2587 = vrcp.pop %v2571
        %v2588 = vstv %s2121
        %v2589 = vmul.f32 %v2588, %v2572
        %v2590 = vmul.f32 %v2588, %v2573
        %v2591 = vmul.f32 %v2588, %v2574
        %v2592 = vmul.f32 %v2588, %v2575
        %v2593 = vmul.f32 %v2588, %v2576
        %v2594 = vmul.f32 %v2588, %v2577
        %v2595 = vmul.f32 %v2588, %v2578
        %v2596 = vmul.f32 %v2588, %v2579
        %v2597 = vmul.f32 %v2588, %v2580
        %v2598 = vmul.f32 %v2588, %v2581
        %v2599 = vmul.f32 %v2588, %v2582
        %v2600 = vmul.f32 %v2588, %v2583
        %v2601 = vmul.f32 %v2588, %v2584
        %v2602 = vmul.f32 %v2588, %v2585
        %v2603 = vmul.f32 %v2588, %v2586
        %v2604 = vmul.f32 %v2588, %v2587
        %v2605 = vmul.f32 %v2461, %v2589
        %v2606 = vmul.f32 %v2463, %v2589
        %v2607 = vmul.f32 %v2465, %v2590
        %v2608 = vmul.f32 %v2467, %v2590
        %v2609 = vmul.f32 %v2469, %v2591
        %v2610 = vmul.f32 %v2471, %v2591
        %v2611 = vmul.f32 %v2473, %v2592
        %v2612 = vmul.f32 %v2475, %v2592
        %v2613 = vmul.f32 %v2477, %v2593
        %v2614 = vmul.f32 %v2479, %v2593
        %v2615 = vmul.f32 %v2481, %v2594
        %v2616 = vmul.f32 %v2483, %v2594
        %v2617 = vmul.f32 %v2485, %v2595
        %v2618 = vmul.f32 %v2487, %v2595
        %v2619 = vmul.f32 %v2489, %v2596
        %v2620 = vmul.f32 %v2491, %v2596
        %v2621 = vmul.f32 %v2493, %v2597
        %v2622 = vmul.f32 %v2495, %v2597
        %v2623 = vmul.f32 %v2497, %v2598
        %v2624 = vmul.f32 %v2499, %v2598
        %v2625 = vmul.f32 %v2501, %v2599
        %v2626 = vmul.f32 %v2503, %v2599
        %v2627 = vmul.f32 %v2505, %v2600
        %v2628 = vmul.f32 %v2507, %v2600
        %v2629 = vmul.f32 %v2509, %v2601
        %v2630 = vmul.f32 %v2511, %v2601
        %v2631 = vmul.f32 %v2513, %v2602
        %v2632 = vmul.f32 %v2515, %v2602
        %v2633 = vmul.f32 %v2517, %v2603
        %v2634 = vmul.f32 %v2519, %v2603
        %v2635 = vmul.f32 %v2521, %v2604
        %v2636 = vmul.f32 %v2523, %v2604
        %v2637 = vpack.c.bf16 %v2607, %v2605
        %v2638 = vpack.c.bf16 %v2608, %v2606
        %v2639 = vpack.c.bf16 %v2611, %v2609
        %v2640 = vpack.c.bf16 %v2612, %v2610
        %v2641 = vpack.c.bf16 %v2615, %v2613
        %v2642 = vpack.c.bf16 %v2616, %v2614
        %v2643 = vpack.c.bf16 %v2619, %v2617
        %v2644 = vpack.c.bf16 %v2620, %v2618
        %v2645 = vpack.c.bf16 %v2623, %v2621
        %v2646 = vpack.c.bf16 %v2624, %v2622
        %v2647 = vpack.c.bf16 %v2627, %v2625
        %v2648 = vpack.c.bf16 %v2628, %v2626
        %v2649 = vpack.c.bf16 %v2631, %v2629
        %v2650 = vpack.c.bf16 %v2632, %v2630
        %v2651 = vpack.c.bf16 %v2635, %v2633
        %v2652 = vpack.c.bf16 %v2636, %v2634
        %2653 = vmatpush.bf16.xpose.msra.mxu0 %v2651
        %2654 = vmatpush.bf16.xpose.msra.mxu0 %v2649
        %2655 = vmatpush.bf16.xpose.msra.mxu0 %v2647
        %2656 = vmatpush.bf16.xpose.msra.mxu0 %v2645
        %2657 = vmatpush.bf16.xpose.msra.mxu0 %v2643
        %2658 = vmatpush.bf16.xpose.msra.mxu0 %v2641
        %2659 = vmatpush.bf16.xpose.msra.mxu0 %v2639
        %2660 = vmatpush.bf16.xpose.msra.mxu0 %v2637
        %2661 = vmatmul.bf16.gmra.mxu0 %v2113
        %v2662 = vpop.f32.mrf.mxu0
        %v2663 = vadd.f32 %v1318, %v2662
        %v2664 = vpop.f32.mrf.mxu0
        %v2665 = vadd.f32 %v1320, %v2664
        %2666 = vmatmul.bf16.gmra.mxu0 %v2115
        %v2667 = vpop.f32.mrf.mxu0
        %v2668 = vadd.f32 %v1323, %v2667
        %v2669 = vpop.f32.mrf.mxu0
        %v2670 = vadd.f32 %v1325, %v2669
        %2671 = vmatmul.bf16.gmra.mxu0 %v2117
        %v2672 = vpop.f32.mrf.mxu0
        %v2673 = vadd.f32 %v1328, %v2672
        %v2674 = vpop.f32.mrf.mxu0
        %v2675 = vadd.f32 %v1330, %v2674
        %2676 = vmatmul.bf16.gmra.mxu0 %v2119
        %v2677 = vpop.f32.mrf.mxu0
        %v2678 = vadd.f32 %v1333, %v2677
        %v2679 = vpop.f32.mrf.mxu0
        %v2680 = vadd.f32 %v1335, %v2679
        %2681 = vdwg.mxu0
        %2682 = vmatpush.bf16.xpose.msra.mxu0 %v2652
        %2683 = vmatpush.bf16.xpose.msra.mxu0 %v2650
        %2684 = vmatpush.bf16.xpose.msra.mxu0 %v2648
        %2685 = vmatpush.bf16.xpose.msra.mxu0 %v2646
        %2686 = vmatpush.bf16.xpose.msra.mxu0 %v2644
        %2687 = vmatpush.bf16.xpose.msra.mxu0 %v2642
        %2688 = vmatpush.bf16.xpose.msra.mxu0 %v2640
        %2689 = vmatpush.bf16.xpose.msra.mxu0 %v2638
        %2690 = vmatmul.bf16.gmra.mxu0 %v2114
        %v2691 = vpop.f32.mrf.mxu0
        %v2692 = vadd.f32 %v2663, %v2691
        %v2693 = vpop.f32.mrf.mxu0
        %v2694 = vadd.f32 %v2665, %v2693
        %2695 = vmatmul.bf16.gmra.mxu0 %v2116
        %v2696 = vpop.f32.mrf.mxu0
        %v2697 = vadd.f32 %v2668, %v2696
        %v2698 = vpop.f32.mrf.mxu0
        %v2699 = vadd.f32 %v2670, %v2698
        %2700 = vmatmul.bf16.gmra.mxu0 %v2118
        %v2701 = vpop.f32.mrf.mxu0
        %v2702 = vadd.f32 %v2673, %v2701
        %v2703 = vpop.f32.mrf.mxu0
        %v2704 = vadd.f32 %v2675, %v2703
        %2705 = vmatmul.bf16.gmra.mxu0 %v2120
        %v2706 = vpop.f32.mrf.mxu0
        %v2707 = vadd.f32 %v2678, %v2706
        %v2708 = vpop.f32.mrf.mxu0
        %v2709 = vadd.f32 %v2680, %v2708
        %2710 = vdwg.mxu0
        %v2727 = vunpack.c.l.b16 %v2202
        %v2728 = vunpack.c.l.b16 %v2203
        %v2729 = vunpack.c.l.b16 %v2204
        %v2730 = vunpack.c.l.b16 %v2205
        %v2731 = vunpack.c.l.b16 %v2206
        %v2732 = vunpack.c.l.b16 %v2207
        %v2733 = vunpack.c.l.b16 %v2208
        %v2734 = vunpack.c.l.b16 %v2209
        %v2735 = vunpack.c.l.b16 %v2210
        %v2736 = vunpack.c.l.b16 %v2211
        %v2737 = vunpack.c.l.b16 %v2212
        %v2738 = vunpack.c.l.b16 %v2213
        %v2739 = vunpack.c.l.b16 %v2214
        %v2740 = vunpack.c.l.b16 %v2215
        %v2741 = vunpack.c.l.b16 %v2216
        %v2742 = vunpack.c.l.b16 %v2217
        %v2743 = vpack.c.b16 %v2728, %v2727
        %v2744 = vpack.c.b16 %v2730, %v2729
        %v2745 = vpack.c.b16 %v2732, %v2731
        %v2746 = vpack.c.b16 %v2734, %v2733
        %v2747 = vpack.c.b16 %v2736, %v2735
        %v2748 = vpack.c.b16 %v2738, %v2737
        %v2749 = vpack.c.b16 %v2740, %v2739
        %v2750 = vpack.c.b16 %v2742, %v2741
        %v2752 = vsel %vm616, %v2743, 0
        %v2755 = vsel %vm616, %v2744, 0
        %v2758 = vsel %vm616, %v2745, 0
        %v2761 = vsel %vm616, %v2746, 0
        %v2764 = vsel %vm616, %v2747, 0
        %v2767 = vsel %vm616, %v2748, 0
        %v2770 = vsel %vm616, %v2749, 0
        %v2773 = vsel %vm616, %v2750, 0
        %2775 = vmatpush.bf16.msra.mxu0 0
        %2776 = vmatpush.bf16.msra.mxu0 0
        %2777 = vmatpush.bf16.msra.mxu0 0
        %2778 = vmatpush.bf16.msra.mxu0 0
        %2779 = vmatpush.bf16.msra.mxu0 %v1835
        %2780 = vmatpush.bf16.msra.mxu0 %v1833
        %2781 = vmatpush.bf16.msra.mxu0 %v1831
        %2782 = vmatpush.bf16.msra.mxu0 %v1829
        %2783 = vmatmul.bf16.gmra.mxu0 %v2752
        %v2784 = vpop.f32.mrf.mxu0
        %v2785 = vadd.f32 0.0, %v2784
        %v2786 = vpop.f32.mrf.mxu0
        %v2787 = vadd.f32 0.0, %v2786
        %2788 = vmatmul.bf16.gmra.mxu0 %v2755
        %v2789 = vpop.f32.mrf.mxu0
        %v2790 = vadd.f32 0.0, %v2789
        %v2791 = vpop.f32.mrf.mxu0
        %v2792 = vadd.f32 0.0, %v2791
        %2793 = vmatmul.bf16.gmra.mxu0 %v2758
        %v2794 = vpop.f32.mrf.mxu0
        %v2795 = vadd.f32 0.0, %v2794
        %v2796 = vpop.f32.mrf.mxu0
        %v2797 = vadd.f32 0.0, %v2796
        %2798 = vmatmul.bf16.gmra.mxu0 %v2761
        %v2799 = vpop.f32.mrf.mxu0
        %v2800 = vadd.f32 0.0, %v2799
        %v2801 = vpop.f32.mrf.mxu0
        %v2802 = vadd.f32 0.0, %v2801
        %2803 = vmatmul.bf16.gmra.mxu0 %v2764
        %v2804 = vpop.f32.mrf.mxu0
        %v2805 = vadd.f32 0.0, %v2804
        %v2806 = vpop.f32.mrf.mxu0
        %v2807 = vadd.f32 0.0, %v2806
        %2808 = vmatmul.bf16.gmra.mxu0 %v2767
        %v2809 = vpop.f32.mrf.mxu0
        %v2810 = vadd.f32 0.0, %v2809
        %v2811 = vpop.f32.mrf.mxu0
        %v2812 = vadd.f32 0.0, %v2811
        %2813 = vmatmul.bf16.gmra.mxu0 %v2770
        %v2814 = vpop.f32.mrf.mxu0
        %v2815 = vadd.f32 0.0, %v2814
        %v2816 = vpop.f32.mrf.mxu0
        %v2817 = vadd.f32 0.0, %v2816
        %2818 = vmatmul.bf16.gmra.mxu0 %v2773
        %v2819 = vpop.f32.mrf.mxu0
        %v2820 = vadd.f32 0.0, %v2819
        %v2821 = vpop.f32.mrf.mxu0
        %v2822 = vadd.f32 0.0, %v2821
        %2823 = vdwg.mxu0
        %2824 = vmatpush.bf16.msra.mxu0 0
        %2825 = vmatpush.bf16.msra.mxu0 0
        %2826 = vmatpush.bf16.msra.mxu0 0
        %2827 = vmatpush.bf16.msra.mxu0 0
        %2828 = vmatpush.bf16.msra.mxu0 %v1836
        %2829 = vmatpush.bf16.msra.mxu0 %v1834
        %2830 = vmatpush.bf16.msra.mxu0 %v1832
        %2831 = vmatpush.bf16.msra.mxu0 %v1830
        %2832 = vmatmul.bf16.gmra.mxu0 %v2752
        %v2833 = vpop.f32.mrf.mxu0
        %v2834 = vadd.f32 0.0, %v2833
        %v2835 = vpop.f32.mrf.mxu0
        %v2836 = vadd.f32 0.0, %v2835
        %2837 = vmatmul.bf16.gmra.mxu0 %v2755
        %v2838 = vpop.f32.mrf.mxu0
        %v2839 = vadd.f32 0.0, %v2838
        %v2840 = vpop.f32.mrf.mxu0
        %v2841 = vadd.f32 0.0, %v2840
        %2842 = vmatmul.bf16.gmra.mxu0 %v2758
        %v2843 = vpop.f32.mrf.mxu0
        %v2844 = vadd.f32 0.0, %v2843
        %v2845 = vpop.f32.mrf.mxu0
        %v2846 = vadd.f32 0.0, %v2845
        %2847 = vmatmul.bf16.gmra.mxu0 %v2761
        %v2848 = vpop.f32.mrf.mxu0
        %v2849 = vadd.f32 0.0, %v2848
        %v2850 = vpop.f32.mrf.mxu0
        %v2851 = vadd.f32 0.0, %v2850
        %2852 = vmatmul.bf16.gmra.mxu0 %v2764
        %v2853 = vpop.f32.mrf.mxu0
        %v2854 = vadd.f32 0.0, %v2853
        %v2855 = vpop.f32.mrf.mxu0
        %v2856 = vadd.f32 0.0, %v2855
        %2857 = vmatmul.bf16.gmra.mxu0 %v2767
        %v2858 = vpop.f32.mrf.mxu0
        %v2859 = vadd.f32 0.0, %v2858
        %v2860 = vpop.f32.mrf.mxu0
        %v2861 = vadd.f32 0.0, %v2860
        %2862 = vmatmul.bf16.gmra.mxu0 %v2770
        %v2863 = vpop.f32.mrf.mxu0
        %v2864 = vadd.f32 0.0, %v2863
        %v2865 = vpop.f32.mrf.mxu0
        %v2866 = vadd.f32 0.0, %v2865
        %2867 = vmatmul.bf16.gmra.mxu0 %v2773
        %v2868 = vpop.f32.mrf.mxu0
        %v2869 = vadd.f32 0.0, %v2868
        %v2870 = vpop.f32.mrf.mxu0
        %v2871 = vadd.f32 0.0, %v2870
        %2872 = vdwg.mxu0
        %v2873 = vmax.f32 %v2785, %v2834
        %2874 = vmax.xlane.f32.xlu0 %v2873
        %v2875 = vpop.xlane.xlu0 %2874
        %v2876 = vmax.f32 %v2787, %v2836
        %2877 = vmax.xlane.f32.xlu0 %v2876
        %v2878 = vpop.xlane.xlu0 %2877
        %v2879 = vmax.f32 %v2790, %v2839
        %2880 = vmax.xlane.f32.xlu0 %v2879
        %v2881 = vpop.xlane.xlu0 %2880
        %v2882 = vmax.f32 %v2792, %v2841
        %2883 = vmax.xlane.f32.xlu0 %v2882
        %v2884 = vpop.xlane.xlu0 %2883
        %v2885 = vmax.f32 %v2795, %v2844
        %2886 = vmax.xlane.f32.xlu0 %v2885
        %v2887 = vpop.xlane.xlu0 %2886
        %v2888 = vmax.f32 %v2797, %v2846
        %2889 = vmax.xlane.f32.xlu0 %v2888
        %v2890 = vpop.xlane.xlu0 %2889
        %v2891 = vmax.f32 %v2800, %v2849
        %2892 = vmax.xlane.f32.xlu0 %v2891
        %v2893 = vpop.xlane.xlu0 %2892
        %v2894 = vmax.f32 %v2802, %v2851
        %2895 = vmax.xlane.f32.xlu0 %v2894
        %v2896 = vpop.xlane.xlu0 %2895
        %v2897 = vmax.f32 %v2805, %v2854
        %2898 = vmax.xlane.f32.xlu0 %v2897
        %v2899 = vpop.xlane.xlu0 %2898
        %v2900 = vmax.f32 %v2807, %v2856
        %2901 = vmax.xlane.f32.xlu0 %v2900
        %v2902 = vpop.xlane.xlu0 %2901
        %v2903 = vmax.f32 %v2810, %v2859
        %2904 = vmax.xlane.f32.xlu0 %v2903
        %v2905 = vpop.xlane.xlu0 %2904
        %v2906 = vmax.f32 %v2812, %v2861
        %2907 = vmax.xlane.f32.xlu0 %v2906
        %v2908 = vpop.xlane.xlu0 %2907
        %v2909 = vmax.f32 %v2815, %v2864
        %2910 = vmax.xlane.f32.xlu0 %v2909
        %v2911 = vpop.xlane.xlu0 %2910
        %v2912 = vmax.f32 %v2817, %v2866
        %2913 = vmax.xlane.f32.xlu0 %v2912
        %v2914 = vpop.xlane.xlu0 %2913
        %v2915 = vmax.f32 %v2820, %v2869
        %2916 = vmax.xlane.f32.xlu0 %v2915
        %v2917 = vpop.xlane.xlu0 %2916
        %v2918 = vmax.f32 %v2822, %v2871
        %2919 = vmax.xlane.f32.xlu0 %v2918
        %v2920 = vpop.xlane.xlu0 %2919
        %v2921 = vsub.f32 %v2785, %v2875
        %v2922 = vsub.f32 %v2834, %v2875
        %v2923 = vsub.f32 %v2787, %v2878
        %v2924 = vsub.f32 %v2836, %v2878
        %v2925 = vsub.f32 %v2790, %v2881
        %v2926 = vsub.f32 %v2839, %v2881
        %v2927 = vsub.f32 %v2792, %v2884
        %v2928 = vsub.f32 %v2841, %v2884
        %v2929 = vsub.f32 %v2795, %v2887
        %v2930 = vsub.f32 %v2844, %v2887
        %v2931 = vsub.f32 %v2797, %v2890
        %v2932 = vsub.f32 %v2846, %v2890
        %v2933 = vsub.f32 %v2800, %v2893
        %v2934 = vsub.f32 %v2849, %v2893
        %v2935 = vsub.f32 %v2802, %v2896
        %v2936 = vsub.f32 %v2851, %v2896
        %v2937 = vsub.f32 %v2805, %v2899
        %v2938 = vsub.f32 %v2854, %v2899
        %v2939 = vsub.f32 %v2807, %v2902
        %v2940 = vsub.f32 %v2856, %v2902
        %v2941 = vsub.f32 %v2810, %v2905
        %v2942 = vsub.f32 %v2859, %v2905
        %v2943 = vsub.f32 %v2812, %v2908
        %v2944 = vsub.f32 %v2861, %v2908
        %v2945 = vsub.f32 %v2815, %v2911
        %v2946 = vsub.f32 %v2864, %v2911
        %v2947 = vsub.f32 %v2817, %v2914
        %v2948 = vsub.f32 %v2866, %v2914
        %v2949 = vsub.f32 %v2820, %v2917
        %v2950 = vsub.f32 %v2869, %v2917
        %v2951 = vsub.f32 %v2822, %v2920
        %v2952 = vsub.f32 %v2871, %v2920
        %v2953 = vmul.f32 %v2921, 1.442695
        %v2954 = vpow.pop %v2953
        %v2955 = vmul.f32 %v2922, 1.442695
        %v2956 = vpow.pop %v2955
        %v2957 = vmul.f32 %v2923, 1.442695
        %v2958 = vpow.pop %v2957
        %v2959 = vmul.f32 %v2924, 1.442695
        %v2960 = vpow.pop %v2959
        %v2961 = vmul.f32 %v2925, 1.442695
        %v2962 = vpow.pop %v2961
        %v2963 = vmul.f32 %v2926, 1.442695
        %v2964 = vpow.pop %v2963
        %v2965 = vmul.f32 %v2927, 1.442695
        %v2966 = vpow.pop %v2965
        %v2967 = vmul.f32 %v2928, 1.442695
        %v2968 = vpow.pop %v2967
        %v2969 = vmul.f32 %v2929, 1.442695
        %v2970 = vpow.pop %v2969
        %v2971 = vmul.f32 %v2930, 1.442695
        %v2972 = vpow.pop %v2971
        %v2973 = vmul.f32 %v2931, 1.442695
        %v2974 = vpow.pop %v2973
        %v2975 = vmul.f32 %v2932, 1.442695
        %v2976 = vpow.pop %v2975
        %v2977 = vmul.f32 %v2933, 1.442695
        %v2978 = vpow.pop %v2977
        %v2979 = vmul.f32 %v2934, 1.442695
        %v2980 = vpow.pop %v2979
        %v2981 = vmul.f32 %v2935, 1.442695
        %v2982 = vpow.pop %v2981
        %v2983 = vmul.f32 %v2936, 1.442695
        %v2984 = vpow.pop %v2983
        %v2985 = vmul.f32 %v2937, 1.442695
        %v2986 = vpow.pop %v2985
        %v2987 = vmul.f32 %v2938, 1.442695
        %v2988 = vpow.pop %v2987
        %v2989 = vmul.f32 %v2939, 1.442695
        %v2990 = vpow.pop %v2989
        %v2991 = vmul.f32 %v2940, 1.442695
        %v2992 = vpow.pop %v2991
        %v2993 = vmul.f32 %v2941, 1.442695
        %v2994 = vpow.pop %v2993
        %v2995 = vmul.f32 %v2942, 1.442695
        %v2996 = vpow.pop %v2995
        %v2997 = vmul.f32 %v2943, 1.442695
        %v2998 = vpow.pop %v2997
        %v2999 = vmul.f32 %v2944, 1.442695
        %v3000 = vpow.pop %v2999
        %v3001 = vmul.f32 %v2945, 1.442695
        %v3002 = vpow.pop %v3001
        %v3003 = vmul.f32 %v2946, 1.442695
        %v3004 = vpow.pop %v3003
        %v3005 = vmul.f32 %v2947, 1.442695
        %v3006 = vpow.pop %v3005
        %v3007 = vmul.f32 %v2948, 1.442695
        %v3008 = vpow.pop %v3007
        %v3009 = vmul.f32 %v2949, 1.442695
        %v3010 = vpow.pop %v3009
        %v3011 = vmul.f32 %v2950, 1.442695
        %v3012 = vpow.pop %v3011
        %v3013 = vmul.f32 %v2951, 1.442695
        %v3014 = vpow.pop %v3013
        %v3015 = vmul.f32 %v2952, 1.442695
        %v3016 = vpow.pop %v3015
        %v3017 = vadd.f32 %v2954, %v2956
        %3018 = vadd.xlane.f32.xlu0 %v3017
        %v3019 = vpop.xlane.xlu0 %3018
        %v3020 = vadd.f32 %v2958, %v2960
        %3021 = vadd.xlane.f32.xlu0 %v3020
        %v3022 = vpop.xlane.xlu0 %3021
        %v3023 = vadd.f32 %v2962, %v2964
        %3024 = vadd.xlane.f32.xlu0 %v3023
        %v3025 = vpop.xlane.xlu0 %3024
        %v3026 = vadd.f32 %v2966, %v2968
        %3027 = vadd.xlane.f32.xlu0 %v3026
        %v3028 = vpop.xlane.xlu0 %3027
        %v3029 = vadd.f32 %v2970, %v2972
        %3030 = vadd.xlane.f32.xlu0 %v3029
        %v3031 = vpop.xlane.xlu0 %3030
        %v3032 = vadd.f32 %v2974, %v2976
        %3033 = vadd.xlane.f32.xlu0 %v3032
        %v3034 = vpop.xlane.xlu0 %3033
        %v3035 = vadd.f32 %v2978, %v2980
        %3036 = vadd.xlane.f32.xlu0 %v3035
        %v3037 = vpop.xlane.xlu0 %3036
        %v3038 = vadd.f32 %v2982, %v2984
        %3039 = vadd.xlane.f32.xlu0 %v3038
        %v3040 = vpop.xlane.xlu0 %3039
        %v3041 = vadd.f32 %v2986, %v2988
        %3042 = vadd.xlane.f32.xlu0 %v3041
        %v3043 = vpop.xlane.xlu0 %3042
        %v3044 = vadd.f32 %v2990, %v2992
        %3045 = vadd.xlane.f32.xlu0 %v3044
        %v3046 = vpop.xlane.xlu0 %3045
        %v3047 = vadd.f32 %v2994, %v2996
        %3048 = vadd.xlane.f32.xlu0 %v3047
        %v3049 = vpop.xlane.xlu0 %3048
        %v3050 = vadd.f32 %v2998, %v3000
        %3051 = vadd.xlane.f32.xlu0 %v3050
        %v3052 = vpop.xlane.xlu0 %3051
        %v3053 = vadd.f32 %v3002, %v3004
        %3054 = vadd.xlane.f32.xlu0 %v3053
        %v3055 = vpop.xlane.xlu0 %3054
        %v3056 = vadd.f32 %v3006, %v3008
        %3057 = vadd.xlane.f32.xlu0 %v3056
        %v3058 = vpop.xlane.xlu0 %3057
        %v3059 = vadd.f32 %v3010, %v3012
        %3060 = vadd.xlane.f32.xlu0 %v3059
        %v3061 = vpop.xlane.xlu0 %3060
        %v3062 = vadd.f32 %v3014, %v3016
        %3063 = vadd.xlane.f32.xlu0 %v3062
        %v3064 = vpop.xlane.xlu0 %3063
        %v3065 = vrcp.pop %v3019
        %v3066 = vrcp.pop %v3022
        %v3067 = vrcp.pop %v3025
        %v3068 = vrcp.pop %v3028
        %v3069 = vrcp.pop %v3031
        %v3070 = vrcp.pop %v3034
        %v3071 = vrcp.pop %v3037
        %v3072 = vrcp.pop %v3040
        %v3073 = vrcp.pop %v3043
        %v3074 = vrcp.pop %v3046
        %v3075 = vrcp.pop %v3049
        %v3076 = vrcp.pop %v3052
        %v3077 = vrcp.pop %v3055
        %v3078 = vrcp.pop %v3058
        %v3079 = vrcp.pop %v3061
        %v3080 = vrcp.pop %v3064
        %v3081 = vmul.f32 %v2588, %v3065
        %v3082 = vmul.f32 %v2588, %v3066
        %v3083 = vmul.f32 %v2588, %v3067
        %v3084 = vmul.f32 %v2588, %v3068
        %v3085 = vmul.f32 %v2588, %v3069
        %v3086 = vmul.f32 %v2588, %v3070
        %v3087 = vmul.f32 %v2588, %v3071
        %v3088 = vmul.f32 %v2588, %v3072
        %v3089 = vmul.f32 %v2588, %v3073
        %v3090 = vmul.f32 %v2588, %v3074
        %v3091 = vmul.f32 %v2588, %v3075
        %v3092 = vmul.f32 %v2588, %v3076
        %v3093 = vmul.f32 %v2588, %v3077
        %v3094 = vmul.f32 %v2588, %v3078
        %v3095 = vmul.f32 %v2588, %v3079
        %v3096 = vmul.f32 %v2588, %v3080
        %v3097 = vmul.f32 %v2954, %v3081
        %v3098 = vmul.f32 %v2956, %v3081
        %v3099 = vmul.f32 %v2958, %v3082
        %v3100 = vmul.f32 %v2960, %v3082
        %v3101 = vmul.f32 %v2962, %v3083
        %v3102 = vmul.f32 %v2964, %v3083
        %v3103 = vmul.f32 %v2966, %v3084
        %v3104 = vmul.f32 %v2968, %v3084
        %v3105 = vmul.f32 %v2970, %v3085
        %v3106 = vmul.f32 %v2972, %v3085
        %v3107 = vmul.f32 %v2974, %v3086
        %v3108 = vmul.f32 %v2976, %v3086
        %v3109 = vmul.f32 %v2978, %v3087
        %v3110 = vmul.f32 %v2980, %v3087
        %v3111 = vmul.f32 %v2982, %v3088
        %v3112 = vmul.f32 %v2984, %v3088
        %v3113 = vmul.f32 %v2986, %v3089
        %v3114 = vmul.f32 %v2988, %v3089
        %v3115 = vmul.f32 %v2990, %v3090
        %v3116 = vmul.f32 %v2992, %v3090
        %v3117 = vmul.f32 %v2994, %v3091
        %v3118 = vmul.f32 %v2996, %v3091
        %v3119 = vmul.f32 %v2998, %v3092
        %v3120 = vmul.f32 %v3000, %v3092
        %v3121 = vmul.f32 %v3002, %v3093
        %v3122 = vmul.f32 %v3004, %v3093
        %v3123 = vmul.f32 %v3006, %v3094
        %v3124 = vmul.f32 %v3008, %v3094
        %v3125 = vmul.f32 %v3010, %v3095
        %v3126 = vmul.f32 %v3012, %v3095
        %v3127 = vmul.f32 %v3014, %v3096
        %v3128 = vmul.f32 %v3016, %v3096
        %v3129 = vpack.c.bf16 %v3099, %v3097
        %v3130 = vpack.c.bf16 %v3100, %v3098
        %v3131 = vpack.c.bf16 %v3103, %v3101
        %v3132 = vpack.c.bf16 %v3104, %v3102
        %v3133 = vpack.c.bf16 %v3107, %v3105
        %v3134 = vpack.c.bf16 %v3108, %v3106
        %v3135 = vpack.c.bf16 %v3111, %v3109
        %v3136 = vpack.c.bf16 %v3112, %v3110
        %v3137 = vpack.c.bf16 %v3115, %v3113
        %v3138 = vpack.c.bf16 %v3116, %v3114
        %v3139 = vpack.c.bf16 %v3119, %v3117
        %v3140 = vpack.c.bf16 %v3120, %v3118
        %v3141 = vpack.c.bf16 %v3123, %v3121
        %v3142 = vpack.c.bf16 %v3124, %v3122
        %v3143 = vpack.c.bf16 %v3127, %v3125
        %v3144 = vpack.c.bf16 %v3128, %v3126
        %3145 = vmatpush.bf16.xpose.msra.mxu0 %v3143
        %3146 = vmatpush.bf16.xpose.msra.mxu0 %v3141
        %3147 = vmatpush.bf16.xpose.msra.mxu0 %v3139
        %3148 = vmatpush.bf16.xpose.msra.mxu0 %v3137
        %3149 = vmatpush.bf16.xpose.msra.mxu0 %v3135
        %3150 = vmatpush.bf16.xpose.msra.mxu0 %v3133
        %3151 = vmatpush.bf16.xpose.msra.mxu0 %v3131
        %3152 = vmatpush.bf16.xpose.msra.mxu0 %v3129
        %3153 = vmatmul.bf16.gmra.mxu0 %v2113
        %v3154 = vpop.f32.mrf.mxu0
        %v3155 = vadd.f32 %v1810, %v3154
        %v3156 = vpop.f32.mrf.mxu0
        %v3157 = vadd.f32 %v1812, %v3156
        %3158 = vmatmul.bf16.gmra.mxu0 %v2115
        %v3159 = vpop.f32.mrf.mxu0
        %v3160 = vadd.f32 %v1815, %v3159
        %v3161 = vpop.f32.mrf.mxu0
        %v3162 = vadd.f32 %v1817, %v3161
        %3163 = vmatmul.bf16.gmra.mxu0 %v2117
        %v3164 = vpop.f32.mrf.mxu0
        %v3165 = vadd.f32 %v1820, %v3164
        %v3166 = vpop.f32.mrf.mxu0
        %v3167 = vadd.f32 %v1822, %v3166
        %3168 = vmatmul.bf16.gmra.mxu0 %v2119
        %v3169 = vpop.f32.mrf.mxu0
        %v3170 = vadd.f32 %v1825, %v3169
        %v3171 = vpop.f32.mrf.mxu0
        %v3172 = vadd.f32 %v1827, %v3171
        %3173 = vdwg.mxu0
        %3174 = vmatpush.bf16.xpose.msra.mxu0 %v3144
        %3175 = vmatpush.bf16.xpose.msra.mxu0 %v3142
        %3176 = vmatpush.bf16.xpose.msra.mxu0 %v3140
        %3177 = vmatpush.bf16.xpose.msra.mxu0 %v3138
        %3178 = vmatpush.bf16.xpose.msra.mxu0 %v3136
        %3179 = vmatpush.bf16.xpose.msra.mxu0 %v3134
        %3180 = vmatpush.bf16.xpose.msra.mxu0 %v3132
        %3181 = vmatpush.bf16.xpose.msra.mxu0 %v3130
        %3182 = vmatmul.bf16.gmra.mxu0 %v2114
        %v3183 = vpop.f32.mrf.mxu0
        %v3184 = vadd.f32 %v3155, %v3183
        %v3185 = vpop.f32.mrf.mxu0
        %v3186 = vadd.f32 %v3157, %v3185
        %3187 = vmatmul.bf16.gmra.mxu0 %v2116
        %v3188 = vpop.f32.mrf.mxu0
        %v3189 = vadd.f32 %v3160, %v3188
        %v3190 = vpop.f32.mrf.mxu0
        %v3191 = vadd.f32 %v3162, %v3190
        %3192 = vmatmul.bf16.gmra.mxu0 %v2118
        %v3193 = vpop.f32.mrf.mxu0
        %v3194 = vadd.f32 %v3165, %v3193
        %v3195 = vpop.f32.mrf.mxu0
        %v3196 = vadd.f32 %v3167, %v3195
        %3197 = vmatmul.bf16.gmra.mxu0 %v2120
        %v3198 = vpop.f32.mrf.mxu0
        %v3199 = vadd.f32 %v3170, %v3198
        %v3200 = vpop.f32.mrf.mxu0
        %v3201 = vadd.f32 %v3172, %v3200
        %3202 = vdwg.mxu0
        %v3203 = vadd.f32 %v2692, %v3184
        %3204 = vadd.xlane.f32.xlu0 %v3203
        %v3205 = vpop.xlane.xlu0 %3204
        %v3206 = vadd.f32 %v2694, %v3186
        %3207 = vadd.xlane.f32.xlu0 %v3206
        %v3208 = vpop.xlane.xlu0 %3207
        %v3209 = vadd.f32 %v2697, %v3189
        %3210 = vadd.xlane.f32.xlu0 %v3209
        %v3211 = vpop.xlane.xlu0 %3210
        %v3212 = vadd.f32 %v2699, %v3191
        %3213 = vadd.xlane.f32.xlu0 %v3212
        %v3214 = vpop.xlane.xlu0 %3213
        %v3215 = vadd.f32 %v2702, %v3194
        %3216 = vadd.xlane.f32.xlu0 %v3215
        %v3217 = vpop.xlane.xlu0 %3216
        %v3218 = vadd.f32 %v2704, %v3196
        %3219 = vadd.xlane.f32.xlu0 %v3218
        %v3220 = vpop.xlane.xlu0 %3219
        %v3221 = vadd.f32 %v2707, %v3199
        %3222 = vadd.xlane.f32.xlu0 %v3221
        %v3223 = vpop.xlane.xlu0 %3222
        %v3224 = vadd.f32 %v2709, %v3201
        %3225 = vadd.xlane.f32.xlu0 %v3224
        %v3226 = vpop.xlane.xlu0 %3225
        %v3227 = vrcp.pop 256.0
        %v3228 = vmul.f32 256.0, %v3227
        %v3229 = vsub.f32 1.0, %v3228
        %v3230 = vmul.f32 %v3227, %v3229
        %v3231 = vadd.f32 %v3227, %v3230
        %vm3232 = vweird.f32 %v3227
        %v3233 = vsel %vm3232, %v3227, %v3231
        %v3234 = vmul.f32 %v3205, %v3233
        %v3235 = vmul.f32 %v3208, %v3233
        %v3236 = vmul.f32 %v3211, %v3233
        %v3237 = vmul.f32 %v3214, %v3233
        %v3238 = vmul.f32 %v3217, %v3233
        %v3239 = vmul.f32 %v3220, %v3233
        %v3240 = vmul.f32 %v3223, %v3233
        %v3241 = vmul.f32 %v3226, %v3233
        %v3242 = vld [vmem:[%s5] sm:$0xff]
        %v3243 = vld [vmem:[%s5 + $0x8] sm:$0xff]
        %v3244 = vld [vmem:[%s5 + $0x10] sm:$0xff]
        %v3245 = vld [vmem:[%s5 + $0x18] sm:$0xff]
        %v3246 = vld [vmem:[%s5 + $0x20] sm:$0xff]
        %v3247 = vld [vmem:[%s5 + $0x28] sm:$0xff]
        %v3248 = vld [vmem:[%s5 + $0x30] sm:$0xff]
        %v3249 = vld [vmem:[%s5 + $0x38] sm:$0xff]
        %v3250 = vmul.f32 %v3242, %v3234
        %v3251 = vmul.f32 %v3243, %v3235
        %v3252 = vmul.f32 %v3244, %v3236
        %v3253 = vmul.f32 %v3245, %v3237
        %v3254 = vmul.f32 %v3246, %v3238
        %v3255 = vmul.f32 %v3247, %v3239
        %v3256 = vmul.f32 %v3248, %v3240
        %v3257 = vmul.f32 %v3249, %v3241
        %vm3258 = vcmask 261120
        %v3259 = vsel %vm3258, %v3250, 0.0
        %v3260 = vsel %vm3258, %v3251, 0.0
        %v3261 = vadd.f32 %v3259, %v3260
        %v3262 = vsel %vm3258, %v3252, 0.0
        %v3263 = vadd.f32 %v3261, %v3262
        %v3264 = vsel %vm3258, %v3253, 0.0
        %v3265 = vadd.f32 %v3263, %v3264
        %v3266 = vsel %vm3258, %v3254, 0.0
        %v3267 = vadd.f32 %v3265, %v3266
        %v3268 = vsel %vm3258, %v3255, 0.0
        %v3269 = vadd.f32 %v3267, %v3268
        %v3270 = vsel %vm3258, %v3256, 0.0
        %v3271 = vadd.f32 %v3269, %v3270
        %v3272 = vsel %vm3258, %v3257, 0.0
        %v3273 = vadd.f32 %v3271, %v3272
        %v3274 = vrot.slane %v3273, 4
        %v3275 = vadd.f32 %v3273, %v3274
        %v3276 = vrot.slane %v3275, 2
        %v3277 = vadd.f32 %v3275, %v3276
        %v3278 = vrot.slane %v3277, 1
        %v3279 = vadd.f32 %v3277, %v3278
        %v3280 = vld [vmem:[%s6] sm:$0xff]
        %v3281 = vld [vmem:[%s435] sm:$0xff]
        %3283 = vset.pattern.permute.xlu0 0
        %3284 = vperm.xlu0 %3283, %v3281
        %v3285 = vpop.permute.xlu0 %3284
        %v3287 = vmul.f32 %v3280, %v3285
        %v3288 = vsel %vm3258, %v3287, 0.0
        %v3289 = vrot.slane %v3288, 4
        %v3290 = vadd.f32 %v3288, %v3289
        %v3291 = vrot.slane %v3290, 2
        %v3292 = vadd.f32 %v3290, %v3291
        %v3293 = vrot.slane %v3292, 1
        %v3294 = vadd.f32 %v3292, %v3293
        %v3295 = vadd.f32 %v3279, %v3294
        %v3296 = vld [vmem:[%s7] sm:$0x1]
        %v3297 = vadd.f32 %v3295, %v3296
        %v3298 = vld [vmem:[%s8] sm:$0x1]
        %v3299 = vmul.f32 %v3298, %v3297
        %vm3300 = vcmask 253952
        %v3301 = vsel %vm3300, %v3299, 0.0
        %3302 = vadd.xlane.f32.xlu0 %v3301
        %v3303 = vpop.xlane.xlu0 %3302
        %s3304 = sld [smem:[#allocation2]]
        %v3305 = vstv %s3304
        %v3306 = vadd.f32 %v3303, %v3305
        %3307 = vst [vmem:[%s438] sm:$0x1] %v3306
        %p3308 = scmp.lt.s32.totalorder %s23, 1
        %s3309 = scalar_select %p3308, %s23, 1
        %s3310 = scalar_lea.vmem %s10, %s3309
        // Predicated region
        $region88: #{_lambda_.1} parent=78 // pred_check
          %p3311 = pneg %p261
        $region89: #{_lambda_.1} parent=78 // pred_check_branch
          %3313 = sbr.rel (%p3311) target = $region91
        $region90: #{_lambda_.1} parent=78 // pred_region
          _
        $region91: #{_lambda_.1} parent=78 // pred_fallthru
          _
      $region79: #{_lambda_.1} parent=5 // pred_fallthru
        _
      %p3314 = scmp.le.s32.totalorder 2, %s18
      // Predicated region
      $region92: #{_lambda_.1} parent=5 // pred_check
        %p3315 = pneg %p3314
      $region93: #{_lambda_.1} parent=5 // pred_check_branch
        %3317 = sbr.rel (%p3315) target = $region95
      $region94: #{_lambda_.1} parent=5 // pred_region
        %s3318 = ssub.s32 %s18, 2
        // Predicated region
        $region96: #{_lambda_.1} parent=94 // pred_check
          %p3319 = pneg %p267
        $region97: #{_lambda_.1} parent=94 // pred_check_branch
          %3321 = sbr.rel (%p3319) target = $region99
        $region98: #{_lambda_.1} parent=94 // pred_region
          %p3322 = scmp.lt.s32.totalorder %s24, 1
          %s3323 = scalar_select %p3322, %s24, 1
          %s3324 = scalar_lea.vmem %s10, %s3323
        $region99: #{_lambda_.1} parent=94 // pred_fallthru
          _
      $region95: #{_lambda_.1} parent=5 // pred_fallthru
        _
    $region6: #{_lambda_.1} parent=1 // loop_footer
      %s22 = sadd.s32 1, %s18
    $region7: #{_lambda_.1} parent=1 // loop_footer_branch
      %17 = sbr.rel target = $region3
    $region8: #{_lambda_.1} parent=1 // loop_exit
      _
    %3325 = vsyncpa [#allocation5], 1
    %s3326 = scalar_lea.sflag [#allocation5], 1
    %3327 = vsyncpa %s3326, 1

</llo_original>
